<compile_context>
chip_gen: v6e
topology: v6e:2x2x1
jax: 0.10.0
libtpu: 0.0.40
codegen_flags: <defaults>
</compile_context>

<pallas_src>
import functools

import jax
import jax.numpy as jnp
from jax import lax
from jax.experimental import pallas as pl
from jax.experimental.pallas import tpu as pltpu


def _round_up(x, m):
    return (x + m - 1) // m * m


def _pick_td(D, H, W, C, itemsize, budget_bytes=20 * 1024 * 1024):
    """Largest depth-tile (divisor of D, <= 8) whose double-buffered blocks fit budget."""
    c_pad = _round_up(C, 128)
    w_pad = _round_up(W, 8)
    plane_bytes = H * w_pad * c_pad * itemsize
    td = 1
    for cand in range(1, min(D, 8) + 1):
        if D % cand != 0:
            continue
        # double-buffered: input slab (cand + 2 halo planes) + output slab (cand planes)
        if 2 * (2 * cand + 2) * plane_bytes <= budget_bytes:
            td = cand
    return td


def _dwconv3d_kernel(xc_ref, xp_ref, xn_ref, w_ref, b_ref, o_ref, *, TD, H, W):
    """One (batch, depth-tile) slab per grid step.

    xc_ref: (1, TD, H, W, C)  center slab
    xp_ref: (1, 1,  H, W, C)  plane just below the slab (index clamped at d=0)
    xn_ref: (1, 1,  H, W, C)  plane just above the slab (index clamped at d=D-1)
    w_ref : (27, C)           depthwise taps, row = kd*9 + kh*3 + kw
    b_ref : (1, C)            bias
    o_ref : (1, TD, H, W, C)  output slab
    """
    t = pl.program_id(1)
    n_t = pl.num_programs(1)

    w = w_ref[...].astype(jnp.float32)                                  # (27, C)
    C = w.shape[1]
    bias_plane = jnp.broadcast_to(b_ref[0].astype(jnp.float32), (H, W, C))

    # Zero borders, hoisted out of the loops (JAX does not CSE broadcasts).
    zcol = jnp.zeros((H, 1, C), jnp.float32)
    zrow = jnp.zeros((1, W, C), jnp.float32)

    # Depth-halo planes, zero-masked at the volume boundary (replaces host pad).
    prev_plane = xp_ref[0, 0].astype(jnp.float32) * (t > 0).astype(jnp.float32)
    next_plane = xn_ref[0, 0].astype(jnp.float32) * (t + 1 < n_t).astype(jnp.float32)

    def load_plane(i):  # i is a static Python int in [-1, TD]
        if i == -1:
            return prev_plane
        if i == TD:
            return next_plane
        return xc_ref[0, i].astype(jnp.float32)

    # Per-plane accumulation: one (H, W, C) f32 accumulator live at a time.
    for od in range(TD):
        acc = bias_plane
        for kd in range(3):
            p = load_plane(od + kd - 1)                                 # (H, W, C)
            pw = jnp.concatenate([zcol, p, zcol], axis=1)               # (H, W+2, C)
            for kw in range(3):
                q = pw[:, kw:kw + W, :]                                 # W (sublane) shift
                qh = jnp.concatenate([zrow, q, zrow], axis=0)           # (H+2, W, C)
                for kh in range(3):
                    acc = acc + qh[kh:kh + H] * w[kd * 9 + kh * 3 + kw]
        o_ref[0, od] = acc.astype(o_ref.dtype)


def dwconv3d(x, weight, bias, D, H, W, *, td=None):
    """Pallas DWConv3d forward.

    x:      (B, N, C) with N == D*H*W
    weight: (C, 1, 3, 3, 3)  -- PyTorch Conv3d(groups=C) weight layout
    bias:   (C,)
    returns (B, N, C)
    """
    B, N, C = x.shape
    assert N == D * H * W

    # (B, N, C) -> channels-last volume (B, D, H, W, C); no spatial padding.
    x_vol = x.reshape(B, D, H, W, C)
    w27 = weight[:, 0].reshape(C, 27).T          # (27, C), row = kd*9 + kh*3 + kw
    b2 = bias.reshape(1, C)

    if td is None:
        td = _pick_td(D, H, W, C, x.dtype.itemsize)
    assert D % td == 0, "depth tile must divide D"
    n_t = D // td

    c_pad = _round_up(C, 128)
    w_pad = _round_up(W, 8)
    plane_bytes = H * w_pad * c_pad * x.dtype.itemsize
    blk_bytes = (2 * td + 2) * plane_bytes
    vmem_limit = int(min(48 * 1024 * 1024, max(16 * 1024 * 1024, 4 * blk_bytes)))

    kernel = functools.partial(_dwconv3d_kernel, TD=td, H=H, W=W)

    out = pl.pallas_call(
        kernel,
        out_shape=jax.ShapeDtypeStruct((B, D, H, W, C), x.dtype),
        grid_spec=pltpu.PrefetchScalarGridSpec(
            num_scalar_prefetch=0,
            grid=(B, n_t),
            in_specs=[
                # center slab
                pl.BlockSpec((1, td, H, W, C), lambda b, t: (b, t, 0, 0, 0)),
                # plane below the slab (clamped; masked to zero in-kernel at t == 0)
                pl.BlockSpec((1, 1, H, W, C),
                             lambda b, t: (b, jnp.maximum(t * td - 1, 0), 0, 0, 0)),
                # plane above the slab (clamped; masked to zero in-kernel at last tile)
                pl.BlockSpec((1, 1, H, W, C),
                             lambda b, t: (b, jnp.minimum((t + 1) * td, D - 1), 0, 0, 0)),
                # flat depthwise weights and bias
                pl.BlockSpec((27, C), lambda b, t: (0, 0)),
                pl.BlockSpec((1, C), lambda b, t: (0, 0)),
            ],
            out_specs=pl.BlockSpec((1, td, H, W, C), lambda b, t: (b, t, 0, 0, 0)),
        ),
        compiler_params=pltpu.CompilerParams(
            dimension_semantics=("parallel", "parallel"),
            vmem_limit_bytes=vmem_limit),
    )(x_vol, x_vol, x_vol, w27, b2)

    return out.reshape(B, N, C)


def dwconv3d_reference(x, weight, bias, D, H, W):
    """Pure-JAX reference mirroring the PyTorch module exactly (NCDHW conv)."""
    B, N, C = x.shape
    x_ncdhw = jnp.transpose(x, (0, 2, 1)).reshape(B, C, D, H, W)
    y = lax.conv_general_dilated(
        x_ncdhw, weight,
        window_strides=(1, 1, 1),
        padding=((1, 1), (1, 1), (1, 1)),
        feature_group_count=C,
        dimension_numbers=("NCDHW", "OIDHW", "NCDHW"))
    y = y + bias.reshape(1, C, 1, 1, 1)
    return jnp.transpose(y.reshape(B, C, N), (0, 2, 1))


if __name__ == "__main__":
    # Small deterministic example consistent with the module's forward:
    # x: (B, N, C) with N = D*H*W.
    B, C = 2, 32
    D, H, W = 4, 8, 8
    N = D * H * W

    key = jax.random.PRNGKey(0)
    kx, kw, kb = jax.random.split(key, 3)

    x = jax.random.normal(kx, (B, N, C), dtype=jnp.float32)

    # Deterministic param init mimicking PyTorch Conv3d default:
    # uniform(-1/sqrt(fan_in), 1/sqrt(fan_in)), fan_in = (C/groups)*3*3*3 = 27.
    bound = 1.0 / jnp.sqrt(27.0)
    weight = jax.random.uniform(kw, (C, 1, 3, 3, 3), jnp.float32,
                                minval=-bound, maxval=bound)
    bias = jax.random.uniform(kb, (C,), jnp.float32,
                              minval=-bound, maxval=bound)

    ref = jax.block_until_ready(dwconv3d_reference(x, weight, bias, D, H, W))

    # Default depth tiling (whole D extent fits in one slab here).
    out = jax.block_until_ready(dwconv3d(x, weight, bias, D, H, W))
    assert out.shape == (B, N, C)
    assert jnp.allclose(out, ref, atol=1e-4, rtol=1e-4)

    # Forced multi-tile depth split to exercise the cross-tile halo path.
    out_tiled = jax.block_until_ready(dwconv3d(x, weight, bias, D, H, W, td=2))
    assert jnp.allclose(out_tiled, ref, atol=1e-4, rtol=1e-4)

    print("KERNEL_OK")
</pallas_src>

<mosaic_0001>
module attributes {stable_mosaic.version = 11 : i64} {
  func.func @_dwconv3d_kernel(%arg0: i32, %arg1: i32, %arg2: memref<1x4x8x8x32xf32, #tpu.memory_space<vmem>>, %arg3: memref<1x1x8x8x32xf32, #tpu.memory_space<vmem>>, %arg4: memref<1x1x8x8x32xf32, #tpu.memory_space<vmem>>, %arg5: memref<27x32xf32, #tpu.memory_space<vmem>>, %arg6: memref<1x32xf32, #tpu.memory_space<vmem>>, %arg7: memref<1x4x8x8x32xf32, #tpu.memory_space<vmem>>) attributes {dimension_semantics = [#tpu.dimension_semantics<parallel>, #tpu.dimension_semantics<parallel>], iteration_bounds = array<i64: 2, 1>, scalar_prefetch = 0 : i64, scratch_operands = 0 : i64, tpu.core_type = #tpu.core_type<tc>, window_params = [{transform_indices = @transform_0, window_bounds = array<i64: 1, 4, 8, 8, 32>}, {transform_indices = @transform_1, window_bounds = array<i64: 1, 1, 8, 8, 32>}, {transform_indices = @transform_2, window_bounds = array<i64: 1, 1, 8, 8, 32>}, {pipeline_mode = #tpu.pipeline_mode<synchronous>, transform_indices = @transform_3, window_bounds = array<i64: 27, 32>}, {pipeline_mode = #tpu.pipeline_mode<synchronous>, transform_indices = @transform_4, window_bounds = array<i64: 1, 32>}, {transform_indices = @transform_5, window_bounds = array<i64: 1, 4, 8, 8, 32>}]} {
    %c0 = arith.constant 0 : index
    %c0_0 = arith.constant 0 : index
    %0 = vector.load %arg5[%c0, %c0_0] : memref<27x32xf32, #tpu.memory_space<vmem>>, vector<27x32xf32>
    %c0_1 = arith.constant 0 : index
    %c0_2 = arith.constant 0 : index
    %1 = vector.load %arg6[%c0_1, %c0_2] : memref<1x32xf32, #tpu.memory_space<vmem>>, vector<1x32xf32>
    %2 = vector.shape_cast %1 : vector<1x32xf32> to vector<32xf32>
    %3 = vector.shape_cast %2 : vector<32xf32> to vector<1x1x32xf32>
    %4 = vector.broadcast %3 : vector<1x1x32xf32> to vector<8x8x32xf32>
    %cst = arith.constant 0.000000e+00 : f32
    %5 = vector.broadcast %cst : f32 to vector<8x1x32xf32>
    %cst_3 = arith.constant 0.000000e+00 : f32
    %6 = vector.broadcast %cst_3 : f32 to vector<1x8x32xf32>
    %c0_4 = arith.constant 0 : index
    %c0_5 = arith.constant 0 : index
    %c0_6 = arith.constant 0 : index
    %c0_7 = arith.constant 0 : index
    %c0_8 = arith.constant 0 : index
    %7 = vector.load %arg3[%c0_4, %c0_5, %c0_6, %c0_7, %c0_8] : memref<1x1x8x8x32xf32, #tpu.memory_space<vmem>>, vector<1x1x8x8x32xf32>
    %8 = vector.shape_cast %7 : vector<1x1x8x8x32xf32> to vector<8x8x32xf32>
    %c0_i32 = arith.constant 0 : i32
    %9 = arith.cmpi sgt, %arg1, %c0_i32 : i32
    %10 = arith.extui %9 : i1 to i32
    %11 = arith.sitofp %10 : i32 to f32
    %12 = vector.broadcast %11 : f32 to vector<8x8x32xf32>
    %13 = arith.mulf %8, %12 : vector<8x8x32xf32>
    %c0_9 = arith.constant 0 : index
    %c0_10 = arith.constant 0 : index
    %c0_11 = arith.constant 0 : index
    %c0_12 = arith.constant 0 : index
    %c0_13 = arith.constant 0 : index
    %14 = vector.load %arg4[%c0_9, %c0_10, %c0_11, %c0_12, %c0_13] : memref<1x1x8x8x32xf32, #tpu.memory_space<vmem>>, vector<1x1x8x8x32xf32>
    %15 = vector.shape_cast %14 : vector<1x1x8x8x32xf32> to vector<8x8x32xf32>
    %c1_i32 = arith.constant 1 : i32
    %16 = arith.addi %arg1, %c1_i32 : i32
    %c1_i32_14 = arith.constant 1 : i32
    %17 = arith.cmpi slt, %16, %c1_i32_14 : i32
    %18 = arith.extui %17 : i1 to i32
    %19 = arith.sitofp %18 : i32 to f32
    %20 = vector.broadcast %19 : f32 to vector<8x8x32xf32>
    %21 = arith.mulf %15, %20 : vector<8x8x32xf32>
    %22 = tpu.concatenate %5, %13, %5 in 1 : vector<8x1x32xf32>, vector<8x8x32xf32>, vector<8x1x32xf32> -> vector<8x10x32xf32>
    %23 = vector.extract_strided_slice %22 {offsets = [0, 0, 0], sizes = [8, 8, 32], strides = [1, 1, 1]} : vector<8x10x32xf32> to vector<8x8x32xf32>
    %24 = tpu.concatenate %6, %23, %6 in 0 : vector<1x8x32xf32>, vector<8x8x32xf32>, vector<1x8x32xf32> -> vector<10x8x32xf32>
    %25 = vector.extract_strided_slice %24 {offsets = [0, 0, 0], sizes = [8, 8, 32], strides = [1, 1, 1]} : vector<10x8x32xf32> to vector<8x8x32xf32>
    %26 = vector.extract_strided_slice %0 {offsets = [0, 0], sizes = [1, 32], strides = [1, 1]} : vector<27x32xf32> to vector<1x32xf32>
    %27 = vector.shape_cast %26 : vector<1x32xf32> to vector<32xf32>
    %28 = vector.shape_cast %27 : vector<32xf32> to vector<1x1x32xf32>
    %29 = vector.broadcast %28 : vector<1x1x32xf32> to vector<8x8x32xf32>
    %30 = arith.mulf %25, %29 : vector<8x8x32xf32>
    %31 = arith.addf %4, %30 : vector<8x8x32xf32>
    %32 = vector.extract_strided_slice %24 {offsets = [1, 0, 0], sizes = [8, 8, 32], strides = [1, 1, 1]} : vector<10x8x32xf32> to vector<8x8x32xf32>
    %33 = vector.extract_strided_slice %0 {offsets = [3, 0], sizes = [1, 32], strides = [1, 1]} : vector<27x32xf32> to vector<1x32xf32>
    %34 = vector.shape_cast %33 : vector<1x32xf32> to vector<32xf32>
    %35 = vector.shape_cast %34 : vector<32xf32> to vector<1x1x32xf32>
    %36 = vector.broadcast %35 : vector<1x1x32xf32> to vector<8x8x32xf32>
    %37 = arith.mulf %32, %36 : vector<8x8x32xf32>
    %38 = arith.addf %31, %37 : vector<8x8x32xf32>
    %39 = vector.extract_strided_slice %24 {offsets = [2, 0, 0], sizes = [8, 8, 32], strides = [1, 1, 1]} : vector<10x8x32xf32> to vector<8x8x32xf32>
    %40 = vector.extract_strided_slice %0 {offsets = [6, 0], sizes = [1, 32], strides = [1, 1]} : vector<27x32xf32> to vector<1x32xf32>
    %41 = vector.shape_cast %40 : vector<1x32xf32> to vector<32xf32>
    %42 = vector.shape_cast %41 : vector<32xf32> to vector<1x1x32xf32>
    %43 = vector.broadcast %42 : vector<1x1x32xf32> to vector<8x8x32xf32>
    %44 = arith.mulf %39, %43 : vector<8x8x32xf32>
    %45 = arith.addf %38, %44 : vector<8x8x32xf32>
    %46 = vector.extract_strided_slice %22 {offsets = [0, 1, 0], sizes = [8, 8, 32], strides = [1, 1, 1]} : vector<8x10x32xf32> to vector<8x8x32xf32>
    %47 = tpu.concatenate %6, %46, %6 in 0 : vector<1x8x32xf32>, vector<8x8x32xf32>, vector<1x8x32xf32> -> vector<10x8x32xf32>
    %48 = vector.extract_strided_slice %47 {offsets = [0, 0, 0], sizes = [8, 8, 32], strides = [1, 1, 1]} : vector<10x8x32xf32> to vector<8x8x32xf32>
    %49 = vector.extract_strided_slice %0 {offsets = [1, 0], sizes = [1, 32], strides = [1, 1]} : vector<27x32xf32> to vector<1x32xf32>
    %50 = vector.shape_cast %49 : vector<1x32xf32> to vector<32xf32>
    %51 = vector.shape_cast %50 : vector<32xf32> to vector<1x1x32xf32>
    %52 = vector.broadcast %51 : vector<1x1x32xf32> to vector<8x8x32xf32>
    %53 = arith.mulf %48, %52 : vector<8x8x32xf32>
    %54 = arith.addf %45, %53 : vector<8x8x32xf32>
    %55 = vector.extract_strided_slice %47 {offsets = [1, 0, 0], sizes = [8, 8, 32], strides = [1, 1, 1]} : vector<10x8x32xf32> to vector<8x8x32xf32>
    %56 = vector.extract_strided_slice %0 {offsets = [4, 0], sizes = [1, 32], strides = [1, 1]} : vector<27x32xf32> to vector<1x32xf32>
    %57 = vector.shape_cast %56 : vector<1x32xf32> to vector<32xf32>
    %58 = vector.shape_cast %57 : vector<32xf32> to vector<1x1x32xf32>
    %59 = vector.broadcast %58 : vector<1x1x32xf32> to vector<8x8x32xf32>
    %60 = arith.mulf %55, %59 : vector<8x8x32xf32>
    %61 = arith.addf %54, %60 : vector<8x8x32xf32>
    %62 = vector.extract_strided_slice %47 {offsets = [2, 0, 0], sizes = [8, 8, 32], strides = [1, 1, 1]} : vector<10x8x32xf32> to vector<8x8x32xf32>
    %63 = vector.extract_strided_slice %0 {offsets = [7, 0], sizes = [1, 32], strides = [1, 1]} : vector<27x32xf32> to vector<1x32xf32>
    %64 = vector.shape_cast %63 : vector<1x32xf32> to vector<32xf32>
    %65 = vector.shape_cast %64 : vector<32xf32> to vector<1x1x32xf32>
    %66 = vector.broadcast %65 : vector<1x1x32xf32> to vector<8x8x32xf32>
    %67 = arith.mulf %62, %66 : vector<8x8x32xf32>
    %68 = arith.addf %61, %67 : vector<8x8x32xf32>
    %69 = vector.extract_strided_slice %22 {offsets = [0, 2, 0], sizes = [8, 8, 32], strides = [1, 1, 1]} : vector<8x10x32xf32> to vector<8x8x32xf32>
    %70 = tpu.concatenate %6, %69, %6 in 0 : vector<1x8x32xf32>, vector<8x8x32xf32>, vector<1x8x32xf32> -> vector<10x8x32xf32>
    %71 = vector.extract_strided_slice %70 {offsets = [0, 0, 0], sizes = [8, 8, 32], strides = [1, 1, 1]} : vector<10x8x32xf32> to vector<8x8x32xf32>
    %72 = vector.extract_strided_slice %0 {offsets = [2, 0], sizes = [1, 32], strides = [1, 1]} : vector<27x32xf32> to vector<1x32xf32>
    %73 = vector.shape_cast %72 : vector<1x32xf32> to vector<32xf32>
    %74 = vector.shape_cast %73 : vector<32xf32> to vector<1x1x32xf32>
    %75 = vector.broadcast %74 : vector<1x1x32xf32> to vector<8x8x32xf32>
    %76 = arith.mulf %71, %75 : vector<8x8x32xf32>
    %77 = arith.addf %68, %76 : vector<8x8x32xf32>
    %78 = vector.extract_strided_slice %70 {offsets = [1, 0, 0], sizes = [8, 8, 32], strides = [1, 1, 1]} : vector<10x8x32xf32> to vector<8x8x32xf32>
    %79 = vector.extract_strided_slice %0 {offsets = [5, 0], sizes = [1, 32], strides = [1, 1]} : vector<27x32xf32> to vector<1x32xf32>
    %80 = vector.shape_cast %79 : vector<1x32xf32> to vector<32xf32>
    %81 = vector.shape_cast %80 : vector<32xf32> to vector<1x1x32xf32>
    %82 = vector.broadcast %81 : vector<1x1x32xf32> to vector<8x8x32xf32>
    %83 = arith.mulf %78, %82 : vector<8x8x32xf32>
    %84 = arith.addf %77, %83 : vector<8x8x32xf32>
    %85 = vector.extract_strided_slice %70 {offsets = [2, 0, 0], sizes = [8, 8, 32], strides = [1, 1, 1]} : vector<10x8x32xf32> to vector<8x8x32xf32>
    %86 = vector.extract_strided_slice %0 {offsets = [8, 0], sizes = [1, 32], strides = [1, 1]} : vector<27x32xf32> to vector<1x32xf32>
    %87 = vector.shape_cast %86 : vector<1x32xf32> to vector<32xf32>
    %88 = vector.shape_cast %87 : vector<32xf32> to vector<1x1x32xf32>
    %89 = vector.broadcast %88 : vector<1x1x32xf32> to vector<8x8x32xf32>
    %90 = arith.mulf %85, %89 : vector<8x8x32xf32>
    %91 = arith.addf %84, %90 : vector<8x8x32xf32>
    %c0_15 = arith.constant 0 : index
    %c0_16 = arith.constant 0 : index
    %c0_17 = arith.constant 0 : index
    %c0_18 = arith.constant 0 : index
    %c0_19 = arith.constant 0 : index
    %92 = vector.load %arg2[%c0_15, %c0_16, %c0_17, %c0_18, %c0_19] : memref<1x4x8x8x32xf32, #tpu.memory_space<vmem>>, vector<1x1x8x8x32xf32>
    %93 = vector.shape_cast %92 : vector<1x1x8x8x32xf32> to vector<8x8x32xf32>
    %94 = tpu.concatenate %5, %93, %5 in 1 : vector<8x1x32xf32>, vector<8x8x32xf32>, vector<8x1x32xf32> -> vector<8x10x32xf32>
    %95 = vector.extract_strided_slice %94 {offsets = [0, 0, 0], sizes = [8, 8, 32], strides = [1, 1, 1]} : vector<8x10x32xf32> to vector<8x8x32xf32>
    %96 = tpu.concatenate %6, %95, %6 in 0 : vector<1x8x32xf32>, vector<8x8x32xf32>, vector<1x8x32xf32> -> vector<10x8x32xf32>
    %97 = vector.extract_strided_slice %96 {offsets = [0, 0, 0], sizes = [8, 8, 32], strides = [1, 1, 1]} : vector<10x8x32xf32> to vector<8x8x32xf32>
    %98 = vector.extract_strided_slice %0 {offsets = [9, 0], sizes = [1, 32], strides = [1, 1]} : vector<27x32xf32> to vector<1x32xf32>
    %99 = vector.shape_cast %98 : vector<1x32xf32> to vector<32xf32>
    %100 = vector.shape_cast %99 : vector<32xf32> to vector<1x1x32xf32>
    %101 = vector.broadcast %100 : vector<1x1x32xf32> to vector<8x8x32xf32>
    %102 = arith.mulf %97, %101 : vector<8x8x32xf32>
    %103 = arith.addf %91, %102 : vector<8x8x32xf32>
    %104 = vector.extract_strided_slice %96 {offsets = [1, 0, 0], sizes = [8, 8, 32], strides = [1, 1, 1]} : vector<10x8x32xf32> to vector<8x8x32xf32>
    %105 = vector.extract_strided_slice %0 {offsets = [12, 0], sizes = [1, 32], strides = [1, 1]} : vector<27x32xf32> to vector<1x32xf32>
    %106 = vector.shape_cast %105 : vector<1x32xf32> to vector<32xf32>
    %107 = vector.shape_cast %106 : vector<32xf32> to vector<1x1x32xf32>
    %108 = vector.broadcast %107 : vector<1x1x32xf32> to vector<8x8x32xf32>
    %109 = arith.mulf %104, %108 : vector<8x8x32xf32>
    %110 = arith.addf %103, %109 : vector<8x8x32xf32>
    %111 = vector.extract_strided_slice %96 {offsets = [2, 0, 0], sizes = [8, 8, 32], strides = [1, 1, 1]} : vector<10x8x32xf32> to vector<8x8x32xf32>
    %112 = vector.extract_strided_slice %0 {offsets = [15, 0], sizes = [1, 32], strides = [1, 1]} : vector<27x32xf32> to vector<1x32xf32>
    %113 = vector.shape_cast %112 : vector<1x32xf32> to vector<32xf32>
    %114 = vector.shape_cast %113 : vector<32xf32> to vector<1x1x32xf32>
    %115 = vector.broadcast %114 : vector<1x1x32xf32> to vector<8x8x32xf32>
    %116 = arith.mulf %111, %115 : vector<8x8x32xf32>
    %117 = arith.addf %110, %116 : vector<8x8x32xf32>
    %118 = vector.extract_strided_slice %94 {offsets = [0, 1, 0], sizes = [8, 8, 32], strides = [1, 1, 1]} : vector<8x10x32xf32> to vector<8x8x32xf32>
    %119 = tpu.concatenate %6, %118, %6 in 0 : vector<1x8x32xf32>, vector<8x8x32xf32>, vector<1x8x32xf32> -> vector<10x8x32xf32>
    %120 = vector.extract_strided_slice %119 {offsets = [0, 0, 0], sizes = [8, 8, 32], strides = [1, 1, 1]} : vector<10x8x32xf32> to vector<8x8x32xf32>
    %121 = vector.extract_strided_slice %0 {offsets = [10, 0], sizes = [1, 32], strides = [1, 1]} : vector<27x32xf32> to vector<1x32xf32>
    %122 = vector.shape_cast %121 : vector<1x32xf32> to vector<32xf32>
    %123 = vector.shape_cast %122 : vector<32xf32> to vector<1x1x32xf32>
    %124 = vector.broadcast %123 : vector<1x1x32xf32> to vector<8x8x32xf32>
    %125 = arith.mulf %120, %124 : vector<8x8x32xf32>
    %126 = arith.addf %117, %125 : vector<8x8x32xf32>
    %127 = vector.extract_strided_slice %119 {offsets = [1, 0, 0], sizes = [8, 8, 32], strides = [1, 1, 1]} : vector<10x8x32xf32> to vector<8x8x32xf32>
    %128 = vector.extract_strided_slice %0 {offsets = [13, 0], sizes = [1, 32], strides = [1, 1]} : vector<27x32xf32> to vector<1x32xf32>
    %129 = vector.shape_cast %128 : vector<1x32xf32> to vector<32xf32>
    %130 = vector.shape_cast %129 : vector<32xf32> to vector<1x1x32xf32>
    %131 = vector.broadcast %130 : vector<1x1x32xf32> to vector<8x8x32xf32>
    %132 = arith.mulf %127, %131 : vector<8x8x32xf32>
    %133 = arith.addf %126, %132 : vector<8x8x32xf32>
    %134 = vector.extract_strided_slice %119 {offsets = [2, 0, 0], sizes = [8, 8, 32], strides = [1, 1, 1]} : vector<10x8x32xf32> to vector<8x8x32xf32>
    %135 = vector.extract_strided_slice %0 {offsets = [16, 0], sizes = [1, 32], strides = [1, 1]} : vector<27x32xf32> to vector<1x32xf32>
    %136 = vector.shape_cast %135 : vector<1x32xf32> to vector<32xf32>
    %137 = vector.shape_cast %136 : vector<32xf32> to vector<1x1x32xf32>
    %138 = vector.broadcast %137 : vector<1x1x32xf32> to vector<8x8x32xf32>
    %139 = arith.mulf %134, %138 : vector<8x8x32xf32>
    %140 = arith.addf %133, %139 : vector<8x8x32xf32>
    %141 = vector.extract_strided_slice %94 {offsets = [0, 2, 0], sizes = [8, 8, 32], strides = [1, 1, 1]} : vector<8x10x32xf32> to vector<8x8x32xf32>
    %142 = tpu.concatenate %6, %141, %6 in 0 : vector<1x8x32xf32>, vector<8x8x32xf32>, vector<1x8x32xf32> -> vector<10x8x32xf32>
    %143 = vector.extract_strided_slice %142 {offsets = [0, 0, 0], sizes = [8, 8, 32], strides = [1, 1, 1]} : vector<10x8x32xf32> to vector<8x8x32xf32>
    %144 = vector.extract_strided_slice %0 {offsets = [11, 0], sizes = [1, 32], strides = [1, 1]} : vector<27x32xf32> to vector<1x32xf32>
    %145 = vector.shape_cast %144 : vector<1x32xf32> to vector<32xf32>
    %146 = vector.shape_cast %145 : vector<32xf32> to vector<1x1x32xf32>
    %147 = vector.broadcast %146 : vector<1x1x32xf32> to vector<8x8x32xf32>
    %148 = arith.mulf %143, %147 : vector<8x8x32xf32>
    %149 = arith.addf %140, %148 : vector<8x8x32xf32>
    %150 = vector.extract_strided_slice %142 {offsets = [1, 0, 0], sizes = [8, 8, 32], strides = [1, 1, 1]} : vector<10x8x32xf32> to vector<8x8x32xf32>
    %151 = vector.extract_strided_slice %0 {offsets = [14, 0], sizes = [1, 32], strides = [1, 1]} : vector<27x32xf32> to vector<1x32xf32>
    %152 = vector.shape_cast %151 : vector<1x32xf32> to vector<32xf32>
    %153 = vector.shape_cast %152 : vector<32xf32> to vector<1x1x32xf32>
    %154 = vector.broadcast %153 : vector<1x1x32xf32> to vector<8x8x32xf32>
    %155 = arith.mulf %150, %154 : vector<8x8x32xf32>
    %156 = arith.addf %149, %155 : vector<8x8x32xf32>
    %157 = vector.extract_strided_slice %142 {offsets = [2, 0, 0], sizes = [8, 8, 32], strides = [1, 1, 1]} : vector<10x8x32xf32> to vector<8x8x32xf32>
    %158 = vector.extract_strided_slice %0 {offsets = [17, 0], sizes = [1, 32], strides = [1, 1]} : vector<27x32xf32> to vector<1x32xf32>
    %159 = vector.shape_cast %158 : vector<1x32xf32> to vector<32xf32>
    %160 = vector.shape_cast %159 : vector<32xf32> to vector<1x1x32xf32>
    %161 = vector.broadcast %160 : vector<1x1x32xf32> to vector<8x8x32xf32>
    %162 = arith.mulf %157, %161 : vector<8x8x32xf32>
    %163 = arith.addf %156, %162 : vector<8x8x32xf32>
    %c0_20 = arith.constant 0 : index
    %c1 = arith.constant 1 : index
    %c0_21 = arith.constant 0 : index
    %c0_22 = arith.constant 0 : index
    %c0_23 = arith.constant 0 : index
    %164 = vector.load %arg2[%c0_20, %c1, %c0_21, %c0_22, %c0_23] : memref<1x4x8x8x32xf32, #tpu.memory_space<vmem>>, vector<1x1x8x8x32xf32>
    %165 = vector.shape_cast %164 : vector<1x1x8x8x32xf32> to vector<8x8x32xf32>
    %166 = tpu.concatenate %5, %165, %5 in 1 : vector<8x1x32xf32>, vector<8x8x32xf32>, vector<8x1x32xf32> -> vector<8x10x32xf32>
    %167 = vector.extract_strided_slice %166 {offsets = [0, 0, 0], sizes = [8, 8, 32], strides = [1, 1, 1]} : vector<8x10x32xf32> to vector<8x8x32xf32>
    %168 = tpu.concatenate %6, %167, %6 in 0 : vector<1x8x32xf32>, vector<8x8x32xf32>, vector<1x8x32xf32> -> vector<10x8x32xf32>
    %169 = vector.extract_strided_slice %168 {offsets = [0, 0, 0], sizes = [8, 8, 32], strides = [1, 1, 1]} : vector<10x8x32xf32> to vector<8x8x32xf32>
    %170 = vector.extract_strided_slice %0 {offsets = [18, 0], sizes = [1, 32], strides = [1, 1]} : vector<27x32xf32> to vector<1x32xf32>
    %171 = vector.shape_cast %170 : vector<1x32xf32> to vector<32xf32>
    %172 = vector.shape_cast %171 : vector<32xf32> to vector<1x1x32xf32>
    %173 = vector.broadcast %172 : vector<1x1x32xf32> to vector<8x8x32xf32>
    %174 = arith.mulf %169, %173 : vector<8x8x32xf32>
    %175 = arith.addf %163, %174 : vector<8x8x32xf32>
    %176 = vector.extract_strided_slice %168 {offsets = [1, 0, 0], sizes = [8, 8, 32], strides = [1, 1, 1]} : vector<10x8x32xf32> to vector<8x8x32xf32>
    %177 = vector.extract_strided_slice %0 {offsets = [21, 0], sizes = [1, 32], strides = [1, 1]} : vector<27x32xf32> to vector<1x32xf32>
    %178 = vector.shape_cast %177 : vector<1x32xf32> to vector<32xf32>
    %179 = vector.shape_cast %178 : vector<32xf32> to vector<1x1x32xf32>
    %180 = vector.broadcast %179 : vector<1x1x32xf32> to vector<8x8x32xf32>
    %181 = arith.mulf %176, %180 : vector<8x8x32xf32>
    %182 = arith.addf %175, %181 : vector<8x8x32xf32>
    %183 = vector.extract_strided_slice %168 {offsets = [2, 0, 0], sizes = [8, 8, 32], strides = [1, 1, 1]} : vector<10x8x32xf32> to vector<8x8x32xf32>
    %184 = vector.extract_strided_slice %0 {offsets = [24, 0], sizes = [1, 32], strides = [1, 1]} : vector<27x32xf32> to vector<1x32xf32>
    %185 = vector.shape_cast %184 : vector<1x32xf32> to vector<32xf32>
    %186 = vector.shape_cast %185 : vector<32xf32> to vector<1x1x32xf32>
    %187 = vector.broadcast %186 : vector<1x1x32xf32> to vector<8x8x32xf32>
    %188 = arith.mulf %183, %187 : vector<8x8x32xf32>
    %189 = arith.addf %182, %188 : vector<8x8x32xf32>
    %190 = vector.extract_strided_slice %166 {offsets = [0, 1, 0], sizes = [8, 8, 32], strides = [1, 1, 1]} : vector<8x10x32xf32> to vector<8x8x32xf32>
    %191 = tpu.concatenate %6, %190, %6 in 0 : vector<1x8x32xf32>, vector<8x8x32xf32>, vector<1x8x32xf32> -> vector<10x8x32xf32>
    %192 = vector.extract_strided_slice %191 {offsets = [0, 0, 0], sizes = [8, 8, 32], strides = [1, 1, 1]} : vector<10x8x32xf32> to vector<8x8x32xf32>
    %193 = vector.extract_strided_slice %0 {offsets = [19, 0], sizes = [1, 32], strides = [1, 1]} : vector<27x32xf32> to vector<1x32xf32>
    %194 = vector.shape_cast %193 : vector<1x32xf32> to vector<32xf32>
    %195 = vector.shape_cast %194 : vector<32xf32> to vector<1x1x32xf32>
    %196 = vector.broadcast %195 : vector<1x1x32xf32> to vector<8x8x32xf32>
    %197 = arith.mulf %192, %196 : vector<8x8x32xf32>
    %198 = arith.addf %189, %197 : vector<8x8x32xf32>
    %199 = vector.extract_strided_slice %191 {offsets = [1, 0, 0], sizes = [8, 8, 32], strides = [1, 1, 1]} : vector<10x8x32xf32> to vector<8x8x32xf32>
    %200 = vector.extract_strided_slice %0 {offsets = [22, 0], sizes = [1, 32], strides = [1, 1]} : vector<27x32xf32> to vector<1x32xf32>
    %201 = vector.shape_cast %200 : vector<1x32xf32> to vector<32xf32>
    %202 = vector.shape_cast %201 : vector<32xf32> to vector<1x1x32xf32>
    %203 = vector.broadcast %202 : vector<1x1x32xf32> to vector<8x8x32xf32>
    %204 = arith.mulf %199, %203 : vector<8x8x32xf32>
    %205 = arith.addf %198, %204 : vector<8x8x32xf32>
    %206 = vector.extract_strided_slice %191 {offsets = [2, 0, 0], sizes = [8, 8, 32], strides = [1, 1, 1]} : vector<10x8x32xf32> to vector<8x8x32xf32>
    %207 = vector.extract_strided_slice %0 {offsets = [25, 0], sizes = [1, 32], strides = [1, 1]} : vector<27x32xf32> to vector<1x32xf32>
    %208 = vector.shape_cast %207 : vector<1x32xf32> to vector<32xf32>
    %209 = vector.shape_cast %208 : vector<32xf32> to vector<1x1x32xf32>
    %210 = vector.broadcast %209 : vector<1x1x32xf32> to vector<8x8x32xf32>
    %211 = arith.mulf %206, %210 : vector<8x8x32xf32>
    %212 = arith.addf %205, %211 : vector<8x8x32xf32>
    %213 = vector.extract_strided_slice %166 {offsets = [0, 2, 0], sizes = [8, 8, 32], strides = [1, 1, 1]} : vector<8x10x32xf32> to vector<8x8x32xf32>
    %214 = tpu.concatenate %6, %213, %6 in 0 : vector<1x8x32xf32>, vector<8x8x32xf32>, vector<1x8x32xf32> -> vector<10x8x32xf32>
    %215 = vector.extract_strided_slice %214 {offsets = [0, 0, 0], sizes = [8, 8, 32], strides = [1, 1, 1]} : vector<10x8x32xf32> to vector<8x8x32xf32>
    %216 = vector.extract_strided_slice %0 {offsets = [20, 0], sizes = [1, 32], strides = [1, 1]} : vector<27x32xf32> to vector<1x32xf32>
    %217 = vector.shape_cast %216 : vector<1x32xf32> to vector<32xf32>
    %218 = vector.shape_cast %217 : vector<32xf32> to vector<1x1x32xf32>
    %219 = vector.broadcast %218 : vector<1x1x32xf32> to vector<8x8x32xf32>
    %220 = arith.mulf %215, %219 : vector<8x8x32xf32>
    %221 = arith.addf %212, %220 : vector<8x8x32xf32>
    %222 = vector.extract_strided_slice %214 {offsets = [1, 0, 0], sizes = [8, 8, 32], strides = [1, 1, 1]} : vector<10x8x32xf32> to vector<8x8x32xf32>
    %223 = vector.extract_strided_slice %0 {offsets = [23, 0], sizes = [1, 32], strides = [1, 1]} : vector<27x32xf32> to vector<1x32xf32>
    %224 = vector.shape_cast %223 : vector<1x32xf32> to vector<32xf32>
    %225 = vector.shape_cast %224 : vector<32xf32> to vector<1x1x32xf32>
    %226 = vector.broadcast %225 : vector<1x1x32xf32> to vector<8x8x32xf32>
    %227 = arith.mulf %222, %226 : vector<8x8x32xf32>
    %228 = arith.addf %221, %227 : vector<8x8x32xf32>
    %229 = vector.extract_strided_slice %214 {offsets = [2, 0, 0], sizes = [8, 8, 32], strides = [1, 1, 1]} : vector<10x8x32xf32> to vector<8x8x32xf32>
    %230 = vector.extract_strided_slice %0 {offsets = [26, 0], sizes = [1, 32], strides = [1, 1]} : vector<27x32xf32> to vector<1x32xf32>
    %231 = vector.shape_cast %230 : vector<1x32xf32> to vector<32xf32>
    %232 = vector.shape_cast %231 : vector<32xf32> to vector<1x1x32xf32>
    %233 = vector.broadcast %232 : vector<1x1x32xf32> to vector<8x8x32xf32>
    %234 = arith.mulf %229, %233 : vector<8x8x32xf32>
    %235 = arith.addf %228, %234 : vector<8x8x32xf32>
    %c0_24 = arith.constant 0 : index
    %c0_25 = arith.constant 0 : index
    %c0_26 = arith.constant 0 : index
    %c0_27 = arith.constant 0 : index
    %c0_28 = arith.constant 0 : index
    %236 = vector.load %arg7[%c0_24, %c0_25, %c0_26, %c0_27, %c0_28] : memref<1x4x8x8x32xf32, #tpu.memory_space<vmem>>, vector<1x1x8x8x32xf32>
    %237 = vector.shape_cast %236 : vector<1x1x8x8x32xf32> to vector<8x8x32xf32>
    %238 = vector.shape_cast %235 : vector<8x8x32xf32> to vector<1x1x8x8x32xf32>
    tpu.vector_store %arg7[%c0_24, %c0_25, %c0_26, %c0_27, %c0_28], %238 {strides = array<i32>} : memref<1x4x8x8x32xf32, #tpu.memory_space<vmem>>, vector<1x1x8x8x32xf32>,
    %c0_29 = arith.constant 0 : index
    %c0_30 = arith.constant 0 : index
    %c0_31 = arith.constant 0 : index
    %c0_32 = arith.constant 0 : index
    %c0_33 = arith.constant 0 : index
    %239 = vector.load %arg2[%c0_29, %c0_30, %c0_31, %c0_32, %c0_33] : memref<1x4x8x8x32xf32, #tpu.memory_space<vmem>>, vector<1x1x8x8x32xf32>
    %240 = vector.shape_cast %239 : vector<1x1x8x8x32xf32> to vector<8x8x32xf32>
    %241 = tpu.concatenate %5, %240, %5 in 1 : vector<8x1x32xf32>, vector<8x8x32xf32>, vector<8x1x32xf32> -> vector<8x10x32xf32>
    %242 = vector.extract_strided_slice %241 {offsets = [0, 0, 0], sizes = [8, 8, 32], strides = [1, 1, 1]} : vector<8x10x32xf32> to vector<8x8x32xf32>
    %243 = tpu.concatenate %6, %242, %6 in 0 : vector<1x8x32xf32>, vector<8x8x32xf32>, vector<1x8x32xf32> -> vector<10x8x32xf32>
    %244 = vector.extract_strided_slice %243 {offsets = [0, 0, 0], sizes = [8, 8, 32], strides = [1, 1, 1]} : vector<10x8x32xf32> to vector<8x8x32xf32>
    %245 = vector.extract_strided_slice %0 {offsets = [0, 0], sizes = [1, 32], strides = [1, 1]} : vector<27x32xf32> to vector<1x32xf32>
    %246 = vector.shape_cast %245 : vector<1x32xf32> to vector<32xf32>
    %247 = vector.shape_cast %246 : vector<32xf32> to vector<1x1x32xf32>
    %248 = vector.broadcast %247 : vector<1x1x32xf32> to vector<8x8x32xf32>
    %249 = arith.mulf %244, %248 : vector<8x8x32xf32>
    %250 = arith.addf %4, %249 : vector<8x8x32xf32>
    %251 = vector.extract_strided_slice %243 {offsets = [1, 0, 0], sizes = [8, 8, 32], strides = [1, 1, 1]} : vector<10x8x32xf32> to vector<8x8x32xf32>
    %252 = vector.extract_strided_slice %0 {offsets = [3, 0], sizes = [1, 32], strides = [1, 1]} : vector<27x32xf32> to vector<1x32xf32>
    %253 = vector.shape_cast %252 : vector<1x32xf32> to vector<32xf32>
    %254 = vector.shape_cast %253 : vector<32xf32> to vector<1x1x32xf32>
    %255 = vector.broadcast %254 : vector<1x1x32xf32> to vector<8x8x32xf32>
    %256 = arith.mulf %251, %255 : vector<8x8x32xf32>
    %257 = arith.addf %250, %256 : vector<8x8x32xf32>
    %258 = vector.extract_strided_slice %243 {offsets = [2, 0, 0], sizes = [8, 8, 32], strides = [1, 1, 1]} : vector<10x8x32xf32> to vector<8x8x32xf32>
    %259 = vector.extract_strided_slice %0 {offsets = [6, 0], sizes = [1, 32], strides = [1, 1]} : vector<27x32xf32> to vector<1x32xf32>
    %260 = vector.shape_cast %259 : vector<1x32xf32> to vector<32xf32>
    %261 = vector.shape_cast %260 : vector<32xf32> to vector<1x1x32xf32>
    %262 = vector.broadcast %261 : vector<1x1x32xf32> to vector<8x8x32xf32>
    %263 = arith.mulf %258, %262 : vector<8x8x32xf32>
    %264 = arith.addf %257, %263 : vector<8x8x32xf32>
    %265 = vector.extract_strided_slice %241 {offsets = [0, 1, 0], sizes = [8, 8, 32], strides = [1, 1, 1]} : vector<8x10x32xf32> to vector<8x8x32xf32>
    %266 = tpu.concatenate %6, %265, %6 in 0 : vector<1x8x32xf32>, vector<8x8x32xf32>, vector<1x8x32xf32> -> vector<10x8x32xf32>
    %267 = vector.extract_strided_slice %266 {offsets = [0, 0, 0], sizes = [8, 8, 32], strides = [1, 1, 1]} : vector<10x8x32xf32> to vector<8x8x32xf32>
    %268 = vector.extract_strided_slice %0 {offsets = [1, 0], sizes = [1, 32], strides = [1, 1]} : vector<27x32xf32> to vector<1x32xf32>
    %269 = vector.shape_cast %268 : vector<1x32xf32> to vector<32xf32>
    %270 = vector.shape_cast %269 : vector<32xf32> to vector<1x1x32xf32>
    %271 = vector.broadcast %270 : vector<1x1x32xf32> to vector<8x8x32xf32>
    %272 = arith.mulf %267, %271 : vector<8x8x32xf32>
    %273 = arith.addf %264, %272 : vector<8x8x32xf32>
    %274 = vector.extract_strided_slice %266 {offsets = [1, 0, 0], sizes = [8, 8, 32], strides = [1, 1, 1]} : vector<10x8x32xf32> to vector<8x8x32xf32>
    %275 = vector.extract_strided_slice %0 {offsets = [4, 0], sizes = [1, 32], strides = [1, 1]} : vector<27x32xf32> to vector<1x32xf32>
    %276 = vector.shape_cast %275 : vector<1x32xf32> to vector<32xf32>
    %277 = vector.shape_cast %276 : vector<32xf32> to vector<1x1x32xf32>
    %278 = vector.broadcast %277 : vector<1x1x32xf32> to vector<8x8x32xf32>
    %279 = arith.mulf %274, %278 : vector<8x8x32xf32>
    %280 = arith.addf %273, %279 : vector<8x8x32xf32>
    %281 = vector.extract_strided_slice %266 {offsets = [2, 0, 0], sizes = [8, 8, 32], strides = [1, 1, 1]} : vector<10x8x32xf32> to vector<8x8x32xf32>
    %282 = vector.extract_strided_slice %0 {offsets = [7, 0], sizes = [1, 32], strides = [1, 1]} : vector<27x32xf32> to vector<1x32xf32>
    %283 = vector.shape_cast %282 : vector<1x32xf32> to vector<32xf32>
    %284 = vector.shape_cast %283 : vector<32xf32> to vector<1x1x32xf32>
    %285 = vector.broadcast %284 : vector<1x1x32xf32> to vector<8x8x32xf32>
    %286 = arith.mulf %281, %285 : vector<8x8x32xf32>
    %287 = arith.addf %280, %286 : vector<8x8x32xf32>
    %288 = vector.extract_strided_slice %241 {offsets = [0, 2, 0], sizes = [8, 8, 32], strides = [1, 1, 1]} : vector<8x10x32xf32> to vector<8x8x32xf32>
    %289 = tpu.concatenate %6, %288, %6 in 0 : vector<1x8x32xf32>, vector<8x8x32xf32>, vector<1x8x32xf32> -> vector<10x8x32xf32>
    %290 = vector.extract_strided_slice %289 {offsets = [0, 0, 0], sizes = [8, 8, 32], strides = [1, 1, 1]} : vector<10x8x32xf32> to vector<8x8x32xf32>
    %291 = vector.extract_strided_slice %0 {offsets = [2, 0], sizes = [1, 32], strides = [1, 1]} : vector<27x32xf32> to vector<1x32xf32>
    %292 = vector.shape_cast %291 : vector<1x32xf32> to vector<32xf32>
    %293 = vector.shape_cast %292 : vector<32xf32> to vector<1x1x32xf32>
    %294 = vector.broadcast %293 : vector<1x1x32xf32> to vector<8x8x32xf32>
    %295 = arith.mulf %290, %294 : vector<8x8x32xf32>
    %296 = arith.addf %287, %295 : vector<8x8x32xf32>
    %297 = vector.extract_strided_slice %289 {offsets = [1, 0, 0], sizes = [8, 8, 32], strides = [1, 1, 1]} : vector<10x8x32xf32> to vector<8x8x32xf32>
    %298 = vector.extract_strided_slice %0 {offsets = [5, 0], sizes = [1, 32], strides = [1, 1]} : vector<27x32xf32> to vector<1x32xf32>
    %299 = vector.shape_cast %298 : vector<1x32xf32> to vector<32xf32>
    %300 = vector.shape_cast %299 : vector<32xf32> to vector<1x1x32xf32>
    %301 = vector.broadcast %300 : vector<1x1x32xf32> to vector<8x8x32xf32>
    %302 = arith.mulf %297, %301 : vector<8x8x32xf32>
    %303 = arith.addf %296, %302 : vector<8x8x32xf32>
    %304 = vector.extract_strided_slice %289 {offsets = [2, 0, 0], sizes = [8, 8, 32], strides = [1, 1, 1]} : vector<10x8x32xf32> to vector<8x8x32xf32>
    %305 = vector.extract_strided_slice %0 {offsets = [8, 0], sizes = [1, 32], strides = [1, 1]} : vector<27x32xf32> to vector<1x32xf32>
    %306 = vector.shape_cast %305 : vector<1x32xf32> to vector<32xf32>
    %307 = vector.shape_cast %306 : vector<32xf32> to vector<1x1x32xf32>
    %308 = vector.broadcast %307 : vector<1x1x32xf32> to vector<8x8x32xf32>
    %309 = arith.mulf %304, %308 : vector<8x8x32xf32>
    %310 = arith.addf %303, %309 : vector<8x8x32xf32>
    %c0_34 = arith.constant 0 : index
    %c1_35 = arith.constant 1 : index
    %c0_36 = arith.constant 0 : index
    %c0_37 = arith.constant 0 : index
    %c0_38 = arith.constant 0 : index
    %311 = vector.load %arg2[%c0_34, %c1_35, %c0_36, %c0_37, %c0_38] : memref<1x4x8x8x32xf32, #tpu.memory_space<vmem>>, vector<1x1x8x8x32xf32>
    %312 = vector.shape_cast %311 : vector<1x1x8x8x32xf32> to vector<8x8x32xf32>
    %313 = tpu.concatenate %5, %312, %5 in 1 : vector<8x1x32xf32>, vector<8x8x32xf32>, vector<8x1x32xf32> -> vector<8x10x32xf32>
    %314 = vector.extract_strided_slice %313 {offsets = [0, 0, 0], sizes = [8, 8, 32], strides = [1, 1, 1]} : vector<8x10x32xf32> to vector<8x8x32xf32>
    %315 = tpu.concatenate %6, %314, %6 in 0 : vector<1x8x32xf32>, vector<8x8x32xf32>, vector<1x8x32xf32> -> vector<10x8x32xf32>
    %316 = vector.extract_strided_slice %315 {offsets = [0, 0, 0], sizes = [8, 8, 32], strides = [1, 1, 1]} : vector<10x8x32xf32> to vector<8x8x32xf32>
    %317 = vector.extract_strided_slice %0 {offsets = [9, 0], sizes = [1, 32], strides = [1, 1]} : vector<27x32xf32> to vector<1x32xf32>
    %318 = vector.shape_cast %317 : vector<1x32xf32> to vector<32xf32>
    %319 = vector.shape_cast %318 : vector<32xf32> to vector<1x1x32xf32>
    %320 = vector.broadcast %319 : vector<1x1x32xf32> to vector<8x8x32xf32>
    %321 = arith.mulf %316, %320 : vector<8x8x32xf32>
    %322 = arith.addf %310, %321 : vector<8x8x32xf32>
    %323 = vector.extract_strided_slice %315 {offsets = [1, 0, 0], sizes = [8, 8, 32], strides = [1, 1, 1]} : vector<10x8x32xf32> to vector<8x8x32xf32>
    %324 = vector.extract_strided_slice %0 {offsets = [12, 0], sizes = [1, 32], strides = [1, 1]} : vector<27x32xf32> to vector<1x32xf32>
    %325 = vector.shape_cast %324 : vector<1x32xf32> to vector<32xf32>
    %326 = vector.shape_cast %325 : vector<32xf32> to vector<1x1x32xf32>
    %327 = vector.broadcast %326 : vector<1x1x32xf32> to vector<8x8x32xf32>
    %328 = arith.mulf %323, %327 : vector<8x8x32xf32>
    %329 = arith.addf %322, %328 : vector<8x8x32xf32>
    %330 = vector.extract_strided_slice %315 {offsets = [2, 0, 0], sizes = [8, 8, 32], strides = [1, 1, 1]} : vector<10x8x32xf32> to vector<8x8x32xf32>
    %331 = vector.extract_strided_slice %0 {offsets = [15, 0], sizes = [1, 32], strides = [1, 1]} : vector<27x32xf32> to vector<1x32xf32>
    %332 = vector.shape_cast %331 : vector<1x32xf32> to vector<32xf32>
    %333 = vector.shape_cast %332 : vector<32xf32> to vector<1x1x32xf32>
    %334 = vector.broadcast %333 : vector<1x1x32xf32> to vector<8x8x32xf32>
    %335 = arith.mulf %330, %334 : vector<8x8x32xf32>
    %336 = arith.addf %329, %335 : vector<8x8x32xf32>
    %337 = vector.extract_strided_slice %313 {offsets = [0, 1, 0], sizes = [8, 8, 32], strides = [1, 1, 1]} : vector<8x10x32xf32> to vector<8x8x32xf32>
    %338 = tpu.concatenate %6, %337, %6 in 0 : vector<1x8x32xf32>, vector<8x8x32xf32>, vector<1x8x32xf32> -> vector<10x8x32xf32>
    %339 = vector.extract_strided_slice %338 {offsets = [0, 0, 0], sizes = [8, 8, 32], strides = [1, 1, 1]} : vector<10x8x32xf32> to vector<8x8x32xf32>
    %340 = vector.extract_strided_slice %0 {offsets = [10, 0], sizes = [1, 32], strides = [1, 1]} : vector<27x32xf32> to vector<1x32xf32>
    %341 = vector.shape_cast %340 : vector<1x32xf32> to vector<32xf32>
    %342 = vector.shape_cast %341 : vector<32xf32> to vector<1x1x32xf32>
    %343 = vector.broadcast %342 : vector<1x1x32xf32> to vector<8x8x32xf32>
    %344 = arith.mulf %339, %343 : vector<8x8x32xf32>
    %345 = arith.addf %336, %344 : vector<8x8x32xf32>
    %346 = vector.extract_strided_slice %338 {offsets = [1, 0, 0], sizes = [8, 8, 32], strides = [1, 1, 1]} : vector<10x8x32xf32> to vector<8x8x32xf32>
    %347 = vector.extract_strided_slice %0 {offsets = [13, 0], sizes = [1, 32], strides = [1, 1]} : vector<27x32xf32> to vector<1x32xf32>
    %348 = vector.shape_cast %347 : vector<1x32xf32> to vector<32xf32>
    %349 = vector.shape_cast %348 : vector<32xf32> to vector<1x1x32xf32>
    %350 = vector.broadcast %349 : vector<1x1x32xf32> to vector<8x8x32xf32>
    %351 = arith.mulf %346, %350 : vector<8x8x32xf32>
    %352 = arith.addf %345, %351 : vector<8x8x32xf32>
    %353 = vector.extract_strided_slice %338 {offsets = [2, 0, 0], sizes = [8, 8, 32], strides = [1, 1, 1]} : vector<10x8x32xf32> to vector<8x8x32xf32>
    %354 = vector.extract_strided_slice %0 {offsets = [16, 0], sizes = [1, 32], strides = [1, 1]} : vector<27x32xf32> to vector<1x32xf32>
    %355 = vector.shape_cast %354 : vector<1x32xf32> to vector<32xf32>
    %356 = vector.shape_cast %355 : vector<32xf32> to vector<1x1x32xf32>
    %357 = vector.broadcast %356 : vector<1x1x32xf32> to vector<8x8x32xf32>
    %358 = arith.mulf %353, %357 : vector<8x8x32xf32>
    %359 = arith.addf %352, %358 : vector<8x8x32xf32>
    %360 = vector.extract_strided_slice %313 {offsets = [0, 2, 0], sizes = [8, 8, 32], strides = [1, 1, 1]} : vector<8x10x32xf32> to vector<8x8x32xf32>
    %361 = tpu.concatenate %6, %360, %6 in 0 : vector<1x8x32xf32>, vector<8x8x32xf32>, vector<1x8x32xf32> -> vector<10x8x32xf32>
    %362 = vector.extract_strided_slice %361 {offsets = [0, 0, 0], sizes = [8, 8, 32], strides = [1, 1, 1]} : vector<10x8x32xf32> to vector<8x8x32xf32>
    %363 = vector.extract_strided_slice %0 {offsets = [11, 0], sizes = [1, 32], strides = [1, 1]} : vector<27x32xf32> to vector<1x32xf32>
    %364 = vector.shape_cast %363 : vector<1x32xf32> to vector<32xf32>
    %365 = vector.shape_cast %364 : vector<32xf32> to vector<1x1x32xf32>
    %366 = vector.broadcast %365 : vector<1x1x32xf32> to vector<8x8x32xf32>
    %367 = arith.mulf %362, %366 : vector<8x8x32xf32>
    %368 = arith.addf %359, %367 : vector<8x8x32xf32>
    %369 = vector.extract_strided_slice %361 {offsets = [1, 0, 0], sizes = [8, 8, 32], strides = [1, 1, 1]} : vector<10x8x32xf32> to vector<8x8x32xf32>
    %370 = vector.extract_strided_slice %0 {offsets = [14, 0], sizes = [1, 32], strides = [1, 1]} : vector<27x32xf32> to vector<1x32xf32>
    %371 = vector.shape_cast %370 : vector<1x32xf32> to vector<32xf32>
    %372 = vector.shape_cast %371 : vector<32xf32> to vector<1x1x32xf32>
    %373 = vector.broadcast %372 : vector<1x1x32xf32> to vector<8x8x32xf32>
    %374 = arith.mulf %369, %373 : vector<8x8x32xf32>
    %375 = arith.addf %368, %374 : vector<8x8x32xf32>
    %376 = vector.extract_strided_slice %361 {offsets = [2, 0, 0], sizes = [8, 8, 32], strides = [1, 1, 1]} : vector<10x8x32xf32> to vector<8x8x32xf32>
    %377 = vector.extract_strided_slice %0 {offsets = [17, 0], sizes = [1, 32], strides = [1, 1]} : vector<27x32xf32> to vector<1x32xf32>
    %378 = vector.shape_cast %377 : vector<1x32xf32> to vector<32xf32>
    %379 = vector.shape_cast %378 : vector<32xf32> to vector<1x1x32xf32>
    %380 = vector.broadcast %379 : vector<1x1x32xf32> to vector<8x8x32xf32>
    %381 = arith.mulf %376, %380 : vector<8x8x32xf32>
    %382 = arith.addf %375, %381 : vector<8x8x32xf32>
    %c0_39 = arith.constant 0 : index
    %c2 = arith.constant 2 : index
    %c0_40 = arith.constant 0 : index
    %c0_41 = arith.constant 0 : index
    %c0_42 = arith.constant 0 : index
    %383 = vector.load %arg2[%c0_39, %c2, %c0_40, %c0_41, %c0_42] : memref<1x4x8x8x32xf32, #tpu.memory_space<vmem>>, vector<1x1x8x8x32xf32>
    %384 = vector.shape_cast %383 : vector<1x1x8x8x32xf32> to vector<8x8x32xf32>
    %385 = tpu.concatenate %5, %384, %5 in 1 : vector<8x1x32xf32>, vector<8x8x32xf32>, vector<8x1x32xf32> -> vector<8x10x32xf32>
    %386 = vector.extract_strided_slice %385 {offsets = [0, 0, 0], sizes = [8, 8, 32], strides = [1, 1, 1]} : vector<8x10x32xf32> to vector<8x8x32xf32>
    %387 = tpu.concatenate %6, %386, %6 in 0 : vector<1x8x32xf32>, vector<8x8x32xf32>, vector<1x8x32xf32> -> vector<10x8x32xf32>
    %388 = vector.extract_strided_slice %387 {offsets = [0, 0, 0], sizes = [8, 8, 32], strides = [1, 1, 1]} : vector<10x8x32xf32> to vector<8x8x32xf32>
    %389 = vector.extract_strided_slice %0 {offsets = [18, 0], sizes = [1, 32], strides = [1, 1]} : vector<27x32xf32> to vector<1x32xf32>
    %390 = vector.shape_cast %389 : vector<1x32xf32> to vector<32xf32>
    %391 = vector.shape_cast %390 : vector<32xf32> to vector<1x1x32xf32>
    %392 = vector.broadcast %391 : vector<1x1x32xf32> to vector<8x8x32xf32>
    %393 = arith.mulf %388, %392 : vector<8x8x32xf32>
    %394 = arith.addf %382, %393 : vector<8x8x32xf32>
    %395 = vector.extract_strided_slice %387 {offsets = [1, 0, 0], sizes = [8, 8, 32], strides = [1, 1, 1]} : vector<10x8x32xf32> to vector<8x8x32xf32>
    %396 = vector.extract_strided_slice %0 {offsets = [21, 0], sizes = [1, 32], strides = [1, 1]} : vector<27x32xf32> to vector<1x32xf32>
    %397 = vector.shape_cast %396 : vector<1x32xf32> to vector<32xf32>
    %398 = vector.shape_cast %397 : vector<32xf32> to vector<1x1x32xf32>
    %399 = vector.broadcast %398 : vector<1x1x32xf32> to vector<8x8x32xf32>
    %400 = arith.mulf %395, %399 : vector<8x8x32xf32>
    %401 = arith.addf %394, %400 : vector<8x8x32xf32>
    %402 = vector.extract_strided_slice %387 {offsets = [2, 0, 0], sizes = [8, 8, 32], strides = [1, 1, 1]} : vector<10x8x32xf32> to vector<8x8x32xf32>
    %403 = vector.extract_strided_slice %0 {offsets = [24, 0], sizes = [1, 32], strides = [1, 1]} : vector<27x32xf32> to vector<1x32xf32>
    %404 = vector.shape_cast %403 : vector<1x32xf32> to vector<32xf32>
    %405 = vector.shape_cast %404 : vector<32xf32> to vector<1x1x32xf32>
    %406 = vector.broadcast %405 : vector<1x1x32xf32> to vector<8x8x32xf32>
    %407 = arith.mulf %402, %406 : vector<8x8x32xf32>
    %408 = arith.addf %401, %407 : vector<8x8x32xf32>
    %409 = vector.extract_strided_slice %385 {offsets = [0, 1, 0], sizes = [8, 8, 32], strides = [1, 1, 1]} : vector<8x10x32xf32> to vector<8x8x32xf32>
    %410 = tpu.concatenate %6, %409, %6 in 0 : vector<1x8x32xf32>, vector<8x8x32xf32>, vector<1x8x32xf32> -> vector<10x8x32xf32>
    %411 = vector.extract_strided_slice %410 {offsets = [0, 0, 0], sizes = [8, 8, 32], strides = [1, 1, 1]} : vector<10x8x32xf32> to vector<8x8x32xf32>
    %412 = vector.extract_strided_slice %0 {offsets = [19, 0], sizes = [1, 32], strides = [1, 1]} : vector<27x32xf32> to vector<1x32xf32>
    %413 = vector.shape_cast %412 : vector<1x32xf32> to vector<32xf32>
    %414 = vector.shape_cast %413 : vector<32xf32> to vector<1x1x32xf32>
    %415 = vector.broadcast %414 : vector<1x1x32xf32> to vector<8x8x32xf32>
    %416 = arith.mulf %411, %415 : vector<8x8x32xf32>
    %417 = arith.addf %408, %416 : vector<8x8x32xf32>
    %418 = vector.extract_strided_slice %410 {offsets = [1, 0, 0], sizes = [8, 8, 32], strides = [1, 1, 1]} : vector<10x8x32xf32> to vector<8x8x32xf32>
    %419 = vector.extract_strided_slice %0 {offsets = [22, 0], sizes = [1, 32], strides = [1, 1]} : vector<27x32xf32> to vector<1x32xf32>
    %420 = vector.shape_cast %419 : vector<1x32xf32> to vector<32xf32>
    %421 = vector.shape_cast %420 : vector<32xf32> to vector<1x1x32xf32>
    %422 = vector.broadcast %421 : vector<1x1x32xf32> to vector<8x8x32xf32>
    %423 = arith.mulf %418, %422 : vector<8x8x32xf32>
    %424 = arith.addf %417, %423 : vector<8x8x32xf32>
    %425 = vector.extract_strided_slice %410 {offsets = [2, 0, 0], sizes = [8, 8, 32], strides = [1, 1, 1]} : vector<10x8x32xf32> to vector<8x8x32xf32>
    %426 = vector.extract_strided_slice %0 {offsets = [25, 0], sizes = [1, 32], strides = [1, 1]} : vector<27x32xf32> to vector<1x32xf32>
    %427 = vector.shape_cast %426 : vector<1x32xf32> to vector<32xf32>
    %428 = vector.shape_cast %427 : vector<32xf32> to vector<1x1x32xf32>
    %429 = vector.broadcast %428 : vector<1x1x32xf32> to vector<8x8x32xf32>
    %430 = arith.mulf %425, %429 : vector<8x8x32xf32>
    %431 = arith.addf %424, %430 : vector<8x8x32xf32>
    %432 = vector.extract_strided_slice %385 {offsets = [0, 2, 0], sizes = [8, 8, 32], strides = [1, 1, 1]} : vector<8x10x32xf32> to vector<8x8x32xf32>
    %433 = tpu.concatenate %6, %432, %6 in 0 : vector<1x8x32xf32>, vector<8x8x32xf32>, vector<1x8x32xf32> -> vector<10x8x32xf32>
    %434 = vector.extract_strided_slice %433 {offsets = [0, 0, 0], sizes = [8, 8, 32], strides = [1, 1, 1]} : vector<10x8x32xf32> to vector<8x8x32xf32>
    %435 = vector.extract_strided_slice %0 {offsets = [20, 0], sizes = [1, 32], strides = [1, 1]} : vector<27x32xf32> to vector<1x32xf32>
    %436 = vector.shape_cast %435 : vector<1x32xf32> to vector<32xf32>
    %437 = vector.shape_cast %436 : vector<32xf32> to vector<1x1x32xf32>
    %438 = vector.broadcast %437 : vector<1x1x32xf32> to vector<8x8x32xf32>
    %439 = arith.mulf %434, %438 : vector<8x8x32xf32>
    %440 = arith.addf %431, %439 : vector<8x8x32xf32>
    %441 = vector.extract_strided_slice %433 {offsets = [1, 0, 0], sizes = [8, 8, 32], strides = [1, 1, 1]} : vector<10x8x32xf32> to vector<8x8x32xf32>
    %442 = vector.extract_strided_slice %0 {offsets = [23, 0], sizes = [1, 32], strides = [1, 1]} : vector<27x32xf32> to vector<1x32xf32>
    %443 = vector.shape_cast %442 : vector<1x32xf32> to vector<32xf32>
    %444 = vector.shape_cast %443 : vector<32xf32> to vector<1x1x32xf32>
    %445 = vector.broadcast %444 : vector<1x1x32xf32> to vector<8x8x32xf32>
    %446 = arith.mulf %441, %445 : vector<8x8x32xf32>
    %447 = arith.addf %440, %446 : vector<8x8x32xf32>
    %448 = vector.extract_strided_slice %433 {offsets = [2, 0, 0], sizes = [8, 8, 32], strides = [1, 1, 1]} : vector<10x8x32xf32> to vector<8x8x32xf32>
    %449 = vector.extract_strided_slice %0 {offsets = [26, 0], sizes = [1, 32], strides = [1, 1]} : vector<27x32xf32> to vector<1x32xf32>
    %450 = vector.shape_cast %449 : vector<1x32xf32> to vector<32xf32>
    %451 = vector.shape_cast %450 : vector<32xf32> to vector<1x1x32xf32>
    %452 = vector.broadcast %451 : vector<1x1x32xf32> to vector<8x8x32xf32>
    %453 = arith.mulf %448, %452 : vector<8x8x32xf32>
    %454 = arith.addf %447, %453 : vector<8x8x32xf32>
    %c0_43 = arith.constant 0 : index
    %c1_44 = arith.constant 1 : index
    %c0_45 = arith.constant 0 : index
    %c0_46 = arith.constant 0 : index
    %c0_47 = arith.constant 0 : index
    %455 = vector.load %arg7[%c0_43, %c1_44, %c0_45, %c0_46, %c0_47] : memref<1x4x8x8x32xf32, #tpu.memory_space<vmem>>, vector<1x1x8x8x32xf32>
    %456 = vector.shape_cast %455 : vector<1x1x8x8x32xf32> to vector<8x8x32xf32>
    %457 = vector.shape_cast %454 : vector<8x8x32xf32> to vector<1x1x8x8x32xf32>
    tpu.vector_store %arg7[%c0_43, %c1_44, %c0_45, %c0_46, %c0_47], %457 {strides = array<i32>} : memref<1x4x8x8x32xf32, #tpu.memory_space<vmem>>, vector<1x1x8x8x32xf32>,
    %c0_48 = arith.constant 0 : index
    %c1_49 = arith.constant 1 : index
    %c0_50 = arith.constant 0 : index
    %c0_51 = arith.constant 0 : index
    %c0_52 = arith.constant 0 : index
    %458 = vector.load %arg2[%c0_48, %c1_49, %c0_50, %c0_51, %c0_52] : memref<1x4x8x8x32xf32, #tpu.memory_space<vmem>>, vector<1x1x8x8x32xf32>
    %459 = vector.shape_cast %458 : vector<1x1x8x8x32xf32> to vector<8x8x32xf32>
    %460 = tpu.concatenate %5, %459, %5 in 1 : vector<8x1x32xf32>, vector<8x8x32xf32>, vector<8x1x32xf32> -> vector<8x10x32xf32>
    %461 = vector.extract_strided_slice %460 {offsets = [0, 0, 0], sizes = [8, 8, 32], strides = [1, 1, 1]} : vector<8x10x32xf32> to vector<8x8x32xf32>
    %462 = tpu.concatenate %6, %461, %6 in 0 : vector<1x8x32xf32>, vector<8x8x32xf32>, vector<1x8x32xf32> -> vector<10x8x32xf32>
    %463 = vector.extract_strided_slice %462 {offsets = [0, 0, 0], sizes = [8, 8, 32], strides = [1, 1, 1]} : vector<10x8x32xf32> to vector<8x8x32xf32>
    %464 = vector.extract_strided_slice %0 {offsets = [0, 0], sizes = [1, 32], strides = [1, 1]} : vector<27x32xf32> to vector<1x32xf32>
    %465 = vector.shape_cast %464 : vector<1x32xf32> to vector<32xf32>
    %466 = vector.shape_cast %465 : vector<32xf32> to vector<1x1x32xf32>
    %467 = vector.broadcast %466 : vector<1x1x32xf32> to vector<8x8x32xf32>
    %468 = arith.mulf %463, %467 : vector<8x8x32xf32>
    %469 = arith.addf %4, %468 : vector<8x8x32xf32>
    %470 = vector.extract_strided_slice %462 {offsets = [1, 0, 0], sizes = [8, 8, 32], strides = [1, 1, 1]} : vector<10x8x32xf32> to vector<8x8x32xf32>
    %471 = vector.extract_strided_slice %0 {offsets = [3, 0], sizes = [1, 32], strides = [1, 1]} : vector<27x32xf32> to vector<1x32xf32>
    %472 = vector.shape_cast %471 : vector<1x32xf32> to vector<32xf32>
    %473 = vector.shape_cast %472 : vector<32xf32> to vector<1x1x32xf32>
    %474 = vector.broadcast %473 : vector<1x1x32xf32> to vector<8x8x32xf32>
    %475 = arith.mulf %470, %474 : vector<8x8x32xf32>
    %476 = arith.addf %469, %475 : vector<8x8x32xf32>
    %477 = vector.extract_strided_slice %462 {offsets = [2, 0, 0], sizes = [8, 8, 32], strides = [1, 1, 1]} : vector<10x8x32xf32> to vector<8x8x32xf32>
    %478 = vector.extract_strided_slice %0 {offsets = [6, 0], sizes = [1, 32], strides = [1, 1]} : vector<27x32xf32> to vector<1x32xf32>
    %479 = vector.shape_cast %478 : vector<1x32xf32> to vector<32xf32>
    %480 = vector.shape_cast %479 : vector<32xf32> to vector<1x1x32xf32>
    %481 = vector.broadcast %480 : vector<1x1x32xf32> to vector<8x8x32xf32>
    %482 = arith.mulf %477, %481 : vector<8x8x32xf32>
    %483 = arith.addf %476, %482 : vector<8x8x32xf32>
    %484 = vector.extract_strided_slice %460 {offsets = [0, 1, 0], sizes = [8, 8, 32], strides = [1, 1, 1]} : vector<8x10x32xf32> to vector<8x8x32xf32>
    %485 = tpu.concatenate %6, %484, %6 in 0 : vector<1x8x32xf32>, vector<8x8x32xf32>, vector<1x8x32xf32> -> vector<10x8x32xf32>
    %486 = vector.extract_strided_slice %485 {offsets = [0, 0, 0], sizes = [8, 8, 32], strides = [1, 1, 1]} : vector<10x8x32xf32> to vector<8x8x32xf32>
    %487 = vector.extract_strided_slice %0 {offsets = [1, 0], sizes = [1, 32], strides = [1, 1]} : vector<27x32xf32> to vector<1x32xf32>
    %488 = vector.shape_cast %487 : vector<1x32xf32> to vector<32xf32>
    %489 = vector.shape_cast %488 : vector<32xf32> to vector<1x1x32xf32>
    %490 = vector.broadcast %489 : vector<1x1x32xf32> to vector<8x8x32xf32>
    %491 = arith.mulf %486, %490 : vector<8x8x32xf32>
    %492 = arith.addf %483, %491 : vector<8x8x32xf32>
    %493 = vector.extract_strided_slice %485 {offsets = [1, 0, 0], sizes = [8, 8, 32], strides = [1, 1, 1]} : vector<10x8x32xf32> to vector<8x8x32xf32>
    %494 = vector.extract_strided_slice %0 {offsets = [4, 0], sizes = [1, 32], strides = [1, 1]} : vector<27x32xf32> to vector<1x32xf32>
    %495 = vector.shape_cast %494 : vector<1x32xf32> to vector<32xf32>
    %496 = vector.shape_cast %495 : vector<32xf32> to vector<1x1x32xf32>
    %497 = vector.broadcast %496 : vector<1x1x32xf32> to vector<8x8x32xf32>
    %498 = arith.mulf %493, %497 : vector<8x8x32xf32>
    %499 = arith.addf %492, %498 : vector<8x8x32xf32>
    %500 = vector.extract_strided_slice %485 {offsets = [2, 0, 0], sizes = [8, 8, 32], strides = [1, 1, 1]} : vector<10x8x32xf32> to vector<8x8x32xf32>
    %501 = vector.extract_strided_slice %0 {offsets = [7, 0], sizes = [1, 32], strides = [1, 1]} : vector<27x32xf32> to vector<1x32xf32>
    %502 = vector.shape_cast %501 : vector<1x32xf32> to vector<32xf32>
    %503 = vector.shape_cast %502 : vector<32xf32> to vector<1x1x32xf32>
    %504 = vector.broadcast %503 : vector<1x1x32xf32> to vector<8x8x32xf32>
    %505 = arith.mulf %500, %504 : vector<8x8x32xf32>
    %506 = arith.addf %499, %505 : vector<8x8x32xf32>
    %507 = vector.extract_strided_slice %460 {offsets = [0, 2, 0], sizes = [8, 8, 32], strides = [1, 1, 1]} : vector<8x10x32xf32> to vector<8x8x32xf32>
    %508 = tpu.concatenate %6, %507, %6 in 0 : vector<1x8x32xf32>, vector<8x8x32xf32>, vector<1x8x32xf32> -> vector<10x8x32xf32>
    %509 = vector.extract_strided_slice %508 {offsets = [0, 0, 0], sizes = [8, 8, 32], strides = [1, 1, 1]} : vector<10x8x32xf32> to vector<8x8x32xf32>
    %510 = vector.extract_strided_slice %0 {offsets = [2, 0], sizes = [1, 32], strides = [1, 1]} : vector<27x32xf32> to vector<1x32xf32>
    %511 = vector.shape_cast %510 : vector<1x32xf32> to vector<32xf32>
    %512 = vector.shape_cast %511 : vector<32xf32> to vector<1x1x32xf32>
    %513 = vector.broadcast %512 : vector<1x1x32xf32> to vector<8x8x32xf32>
    %514 = arith.mulf %509, %513 : vector<8x8x32xf32>
    %515 = arith.addf %506, %514 : vector<8x8x32xf32>
    %516 = vector.extract_strided_slice %508 {offsets = [1, 0, 0], sizes = [8, 8, 32], strides = [1, 1, 1]} : vector<10x8x32xf32> to vector<8x8x32xf32>
    %517 = vector.extract_strided_slice %0 {offsets = [5, 0], sizes = [1, 32], strides = [1, 1]} : vector<27x32xf32> to vector<1x32xf32>
    %518 = vector.shape_cast %517 : vector<1x32xf32> to vector<32xf32>
    %519 = vector.shape_cast %518 : vector<32xf32> to vector<1x1x32xf32>
    %520 = vector.broadcast %519 : vector<1x1x32xf32> to vector<8x8x32xf32>
    %521 = arith.mulf %516, %520 : vector<8x8x32xf32>
    %522 = arith.addf %515, %521 : vector<8x8x32xf32>
    %523 = vector.extract_strided_slice %508 {offsets = [2, 0, 0], sizes = [8, 8, 32], strides = [1, 1, 1]} : vector<10x8x32xf32> to vector<8x8x32xf32>
    %524 = vector.extract_strided_slice %0 {offsets = [8, 0], sizes = [1, 32], strides = [1, 1]} : vector<27x32xf32> to vector<1x32xf32>
    %525 = vector.shape_cast %524 : vector<1x32xf32> to vector<32xf32>
    %526 = vector.shape_cast %525 : vector<32xf32> to vector<1x1x32xf32>
    %527 = vector.broadcast %526 : vector<1x1x32xf32> to vector<8x8x32xf32>
    %528 = arith.mulf %523, %527 : vector<8x8x32xf32>
    %529 = arith.addf %522, %528 : vector<8x8x32xf32>
    %c0_53 = arith.constant 0 : index
    %c2_54 = arith.constant 2 : index
    %c0_55 = arith.constant 0 : index
    %c0_56 = arith.constant 0 : index
    %c0_57 = arith.constant 0 : index
    %530 = vector.load %arg2[%c0_53, %c2_54, %c0_55, %c0_56, %c0_57] : memref<1x4x8x8x32xf32, #tpu.memory_space<vmem>>, vector<1x1x8x8x32xf32>
    %531 = vector.shape_cast %530 : vector<1x1x8x8x32xf32> to vector<8x8x32xf32>
    %532 = tpu.concatenate %5, %531, %5 in 1 : vector<8x1x32xf32>, vector<8x8x32xf32>, vector<8x1x32xf32> -> vector<8x10x32xf32>
    %533 = vector.extract_strided_slice %532 {offsets = [0, 0, 0], sizes = [8, 8, 32], strides = [1, 1, 1]} : vector<8x10x32xf32> to vector<8x8x32xf32>
    %534 = tpu.concatenate %6, %533, %6 in 0 : vector<1x8x32xf32>, vector<8x8x32xf32>, vector<1x8x32xf32> -> vector<10x8x32xf32>
    %535 = vector.extract_strided_slice %534 {offsets = [0, 0, 0], sizes = [8, 8, 32], strides = [1, 1, 1]} : vector<10x8x32xf32> to vector<8x8x32xf32>
    %536 = vector.extract_strided_slice %0 {offsets = [9, 0], sizes = [1, 32], strides = [1, 1]} : vector<27x32xf32> to vector<1x32xf32>
    %537 = vector.shape_cast %536 : vector<1x32xf32> to vector<32xf32>
    %538 = vector.shape_cast %537 : vector<32xf32> to vector<1x1x32xf32>
    %539 = vector.broadcast %538 : vector<1x1x32xf32> to vector<8x8x32xf32>
    %540 = arith.mulf %535, %539 : vector<8x8x32xf32>
    %541 = arith.addf %529, %540 : vector<8x8x32xf32>
    %542 = vector.extract_strided_slice %534 {offsets = [1, 0, 0], sizes = [8, 8, 32], strides = [1, 1, 1]} : vector<10x8x32xf32> to vector<8x8x32xf32>
    %543 = vector.extract_strided_slice %0 {offsets = [12, 0], sizes = [1, 32], strides = [1, 1]} : vector<27x32xf32> to vector<1x32xf32>
    %544 = vector.shape_cast %543 : vector<1x32xf32> to vector<32xf32>
    %545 = vector.shape_cast %544 : vector<32xf32> to vector<1x1x32xf32>
    %546 = vector.broadcast %545 : vector<1x1x32xf32> to vector<8x8x32xf32>
    %547 = arith.mulf %542, %546 : vector<8x8x32xf32>
    %548 = arith.addf %541, %547 : vector<8x8x32xf32>
    %549 = vector.extract_strided_slice %534 {offsets = [2, 0, 0], sizes = [8, 8, 32], strides = [1, 1, 1]} : vector<10x8x32xf32> to vector<8x8x32xf32>
    %550 = vector.extract_strided_slice %0 {offsets = [15, 0], sizes = [1, 32], strides = [1, 1]} : vector<27x32xf32> to vector<1x32xf32>
    %551 = vector.shape_cast %550 : vector<1x32xf32> to vector<32xf32>
    %552 = vector.shape_cast %551 : vector<32xf32> to vector<1x1x32xf32>
    %553 = vector.broadcast %552 : vector<1x1x32xf32> to vector<8x8x32xf32>
    %554 = arith.mulf %549, %553 : vector<8x8x32xf32>
    %555 = arith.addf %548, %554 : vector<8x8x32xf32>
    %556 = vector.extract_strided_slice %532 {offsets = [0, 1, 0], sizes = [8, 8, 32], strides = [1, 1, 1]} : vector<8x10x32xf32> to vector<8x8x32xf32>
    %557 = tpu.concatenate %6, %556, %6 in 0 : vector<1x8x32xf32>, vector<8x8x32xf32>, vector<1x8x32xf32> -> vector<10x8x32xf32>
    %558 = vector.extract_strided_slice %557 {offsets = [0, 0, 0], sizes = [8, 8, 32], strides = [1, 1, 1]} : vector<10x8x32xf32> to vector<8x8x32xf32>
    %559 = vector.extract_strided_slice %0 {offsets = [10, 0], sizes = [1, 32], strides = [1, 1]} : vector<27x32xf32> to vector<1x32xf32>
    %560 = vector.shape_cast %559 : vector<1x32xf32> to vector<32xf32>
    %561 = vector.shape_cast %560 : vector<32xf32> to vector<1x1x32xf32>
    %562 = vector.broadcast %561 : vector<1x1x32xf32> to vector<8x8x32xf32>
    %563 = arith.mulf %558, %562 : vector<8x8x32xf32>
    %564 = arith.addf %555, %563 : vector<8x8x32xf32>
    %565 = vector.extract_strided_slice %557 {offsets = [1, 0, 0], sizes = [8, 8, 32], strides = [1, 1, 1]} : vector<10x8x32xf32> to vector<8x8x32xf32>
    %566 = vector.extract_strided_slice %0 {offsets = [13, 0], sizes = [1, 32], strides = [1, 1]} : vector<27x32xf32> to vector<1x32xf32>
    %567 = vector.shape_cast %566 : vector<1x32xf32> to vector<32xf32>
    %568 = vector.shape_cast %567 : vector<32xf32> to vector<1x1x32xf32>
    %569 = vector.broadcast %568 : vector<1x1x32xf32> to vector<8x8x32xf32>
    %570 = arith.mulf %565, %569 : vector<8x8x32xf32>
    %571 = arith.addf %564, %570 : vector<8x8x32xf32>
    %572 = vector.extract_strided_slice %557 {offsets = [2, 0, 0], sizes = [8, 8, 32], strides = [1, 1, 1]} : vector<10x8x32xf32> to vector<8x8x32xf32>
    %573 = vector.extract_strided_slice %0 {offsets = [16, 0], sizes = [1, 32], strides = [1, 1]} : vector<27x32xf32> to vector<1x32xf32>
    %574 = vector.shape_cast %573 : vector<1x32xf32> to vector<32xf32>
    %575 = vector.shape_cast %574 : vector<32xf32> to vector<1x1x32xf32>
    %576 = vector.broadcast %575 : vector<1x1x32xf32> to vector<8x8x32xf32>
    %577 = arith.mulf %572, %576 : vector<8x8x32xf32>
    %578 = arith.addf %571, %577 : vector<8x8x32xf32>
    %579 = vector.extract_strided_slice %532 {offsets = [0, 2, 0], sizes = [8, 8, 32], strides = [1, 1, 1]} : vector<8x10x32xf32> to vector<8x8x32xf32>
    %580 = tpu.concatenate %6, %579, %6 in 0 : vector<1x8x32xf32>, vector<8x8x32xf32>, vector<1x8x32xf32> -> vector<10x8x32xf32>
    %581 = vector.extract_strided_slice %580 {offsets = [0, 0, 0], sizes = [8, 8, 32], strides = [1, 1, 1]} : vector<10x8x32xf32> to vector<8x8x32xf32>
    %582 = vector.extract_strided_slice %0 {offsets = [11, 0], sizes = [1, 32], strides = [1, 1]} : vector<27x32xf32> to vector<1x32xf32>
    %583 = vector.shape_cast %582 : vector<1x32xf32> to vector<32xf32>
    %584 = vector.shape_cast %583 : vector<32xf32> to vector<1x1x32xf32>
    %585 = vector.broadcast %584 : vector<1x1x32xf32> to vector<8x8x32xf32>
    %586 = arith.mulf %581, %585 : vector<8x8x32xf32>
    %587 = arith.addf %578, %586 : vector<8x8x32xf32>
    %588 = vector.extract_strided_slice %580 {offsets = [1, 0, 0], sizes = [8, 8, 32], strides = [1, 1, 1]} : vector<10x8x32xf32> to vector<8x8x32xf32>
    %589 = vector.extract_strided_slice %0 {offsets = [14, 0], sizes = [1, 32], strides = [1, 1]} : vector<27x32xf32> to vector<1x32xf32>
    %590 = vector.shape_cast %589 : vector<1x32xf32> to vector<32xf32>
    %591 = vector.shape_cast %590 : vector<32xf32> to vector<1x1x32xf32>
    %592 = vector.broadcast %591 : vector<1x1x32xf32> to vector<8x8x32xf32>
    %593 = arith.mulf %588, %592 : vector<8x8x32xf32>
    %594 = arith.addf %587, %593 : vector<8x8x32xf32>
    %595 = vector.extract_strided_slice %580 {offsets = [2, 0, 0], sizes = [8, 8, 32], strides = [1, 1, 1]} : vector<10x8x32xf32> to vector<8x8x32xf32>
    %596 = vector.extract_strided_slice %0 {offsets = [17, 0], sizes = [1, 32], strides = [1, 1]} : vector<27x32xf32> to vector<1x32xf32>
    %597 = vector.shape_cast %596 : vector<1x32xf32> to vector<32xf32>
    %598 = vector.shape_cast %597 : vector<32xf32> to vector<1x1x32xf32>
    %599 = vector.broadcast %598 : vector<1x1x32xf32> to vector<8x8x32xf32>
    %600 = arith.mulf %595, %599 : vector<8x8x32xf32>
    %601 = arith.addf %594, %600 : vector<8x8x32xf32>
    %c0_58 = arith.constant 0 : index
    %c3 = arith.constant 3 : index
    %c0_59 = arith.constant 0 : index
    %c0_60 = arith.constant 0 : index
    %c0_61 = arith.constant 0 : index
    %602 = vector.load %arg2[%c0_58, %c3, %c0_59, %c0_60, %c0_61] : memref<1x4x8x8x32xf32, #tpu.memory_space<vmem>>, vector<1x1x8x8x32xf32>
    %603 = vector.shape_cast %602 : vector<1x1x8x8x32xf32> to vector<8x8x32xf32>
    %604 = tpu.concatenate %5, %603, %5 in 1 : vector<8x1x32xf32>, vector<8x8x32xf32>, vector<8x1x32xf32> -> vector<8x10x32xf32>
    %605 = vector.extract_strided_slice %604 {offsets = [0, 0, 0], sizes = [8, 8, 32], strides = [1, 1, 1]} : vector<8x10x32xf32> to vector<8x8x32xf32>
    %606 = tpu.concatenate %6, %605, %6 in 0 : vector<1x8x32xf32>, vector<8x8x32xf32>, vector<1x8x32xf32> -> vector<10x8x32xf32>
    %607 = vector.extract_strided_slice %606 {offsets = [0, 0, 0], sizes = [8, 8, 32], strides = [1, 1, 1]} : vector<10x8x32xf32> to vector<8x8x32xf32>
    %608 = vector.extract_strided_slice %0 {offsets = [18, 0], sizes = [1, 32], strides = [1, 1]} : vector<27x32xf32> to vector<1x32xf32>
    %609 = vector.shape_cast %608 : vector<1x32xf32> to vector<32xf32>
    %610 = vector.shape_cast %609 : vector<32xf32> to vector<1x1x32xf32>
    %611 = vector.broadcast %610 : vector<1x1x32xf32> to vector<8x8x32xf32>
    %612 = arith.mulf %607, %611 : vector<8x8x32xf32>
    %613 = arith.addf %601, %612 : vector<8x8x32xf32>
    %614 = vector.extract_strided_slice %606 {offsets = [1, 0, 0], sizes = [8, 8, 32], strides = [1, 1, 1]} : vector<10x8x32xf32> to vector<8x8x32xf32>
    %615 = vector.extract_strided_slice %0 {offsets = [21, 0], sizes = [1, 32], strides = [1, 1]} : vector<27x32xf32> to vector<1x32xf32>
    %616 = vector.shape_cast %615 : vector<1x32xf32> to vector<32xf32>
    %617 = vector.shape_cast %616 : vector<32xf32> to vector<1x1x32xf32>
    %618 = vector.broadcast %617 : vector<1x1x32xf32> to vector<8x8x32xf32>
    %619 = arith.mulf %614, %618 : vector<8x8x32xf32>
    %620 = arith.addf %613, %619 : vector<8x8x32xf32>
    %621 = vector.extract_strided_slice %606 {offsets = [2, 0, 0], sizes = [8, 8, 32], strides = [1, 1, 1]} : vector<10x8x32xf32> to vector<8x8x32xf32>
    %622 = vector.extract_strided_slice %0 {offsets = [24, 0], sizes = [1, 32], strides = [1, 1]} : vector<27x32xf32> to vector<1x32xf32>
    %623 = vector.shape_cast %622 : vector<1x32xf32> to vector<32xf32>
    %624 = vector.shape_cast %623 : vector<32xf32> to vector<1x1x32xf32>
    %625 = vector.broadcast %624 : vector<1x1x32xf32> to vector<8x8x32xf32>
    %626 = arith.mulf %621, %625 : vector<8x8x32xf32>
    %627 = arith.addf %620, %626 : vector<8x8x32xf32>
    %628 = vector.extract_strided_slice %604 {offsets = [0, 1, 0], sizes = [8, 8, 32], strides = [1, 1, 1]} : vector<8x10x32xf32> to vector<8x8x32xf32>
    %629 = tpu.concatenate %6, %628, %6 in 0 : vector<1x8x32xf32>, vector<8x8x32xf32>, vector<1x8x32xf32> -> vector<10x8x32xf32>
    %630 = vector.extract_strided_slice %629 {offsets = [0, 0, 0], sizes = [8, 8, 32], strides = [1, 1, 1]} : vector<10x8x32xf32> to vector<8x8x32xf32>
    %631 = vector.extract_strided_slice %0 {offsets = [19, 0], sizes = [1, 32], strides = [1, 1]} : vector<27x32xf32> to vector<1x32xf32>
    %632 = vector.shape_cast %631 : vector<1x32xf32> to vector<32xf32>
    %633 = vector.shape_cast %632 : vector<32xf32> to vector<1x1x32xf32>
    %634 = vector.broadcast %633 : vector<1x1x32xf32> to vector<8x8x32xf32>
    %635 = arith.mulf %630, %634 : vector<8x8x32xf32>
    %636 = arith.addf %627, %635 : vector<8x8x32xf32>
    %637 = vector.extract_strided_slice %629 {offsets = [1, 0, 0], sizes = [8, 8, 32], strides = [1, 1, 1]} : vector<10x8x32xf32> to vector<8x8x32xf32>
    %638 = vector.extract_strided_slice %0 {offsets = [22, 0], sizes = [1, 32], strides = [1, 1]} : vector<27x32xf32> to vector<1x32xf32>
    %639 = vector.shape_cast %638 : vector<1x32xf32> to vector<32xf32>
    %640 = vector.shape_cast %639 : vector<32xf32> to vector<1x1x32xf32>
    %641 = vector.broadcast %640 : vector<1x1x32xf32> to vector<8x8x32xf32>
    %642 = arith.mulf %637, %641 : vector<8x8x32xf32>
    %643 = arith.addf %636, %642 : vector<8x8x32xf32>
    %644 = vector.extract_strided_slice %629 {offsets = [2, 0, 0], sizes = [8, 8, 32], strides = [1, 1, 1]} : vector<10x8x32xf32> to vector<8x8x32xf32>
    %645 = vector.extract_strided_slice %0 {offsets = [25, 0], sizes = [1, 32], strides = [1, 1]} : vector<27x32xf32> to vector<1x32xf32>
    %646 = vector.shape_cast %645 : vector<1x32xf32> to vector<32xf32>
    %647 = vector.shape_cast %646 : vector<32xf32> to vector<1x1x32xf32>
    %648 = vector.broadcast %647 : vector<1x1x32xf32> to vector<8x8x32xf32>
    %649 = arith.mulf %644, %648 : vector<8x8x32xf32>
    %650 = arith.addf %643, %649 : vector<8x8x32xf32>
    %651 = vector.extract_strided_slice %604 {offsets = [0, 2, 0], sizes = [8, 8, 32], strides = [1, 1, 1]} : vector<8x10x32xf32> to vector<8x8x32xf32>
    %652 = tpu.concatenate %6, %651, %6 in 0 : vector<1x8x32xf32>, vector<8x8x32xf32>, vector<1x8x32xf32> -> vector<10x8x32xf32>
    %653 = vector.extract_strided_slice %652 {offsets = [0, 0, 0], sizes = [8, 8, 32], strides = [1, 1, 1]} : vector<10x8x32xf32> to vector<8x8x32xf32>
    %654 = vector.extract_strided_slice %0 {offsets = [20, 0], sizes = [1, 32], strides = [1, 1]} : vector<27x32xf32> to vector<1x32xf32>
    %655 = vector.shape_cast %654 : vector<1x32xf32> to vector<32xf32>
    %656 = vector.shape_cast %655 : vector<32xf32> to vector<1x1x32xf32>
    %657 = vector.broadcast %656 : vector<1x1x32xf32> to vector<8x8x32xf32>
    %658 = arith.mulf %653, %657 : vector<8x8x32xf32>
    %659 = arith.addf %650, %658 : vector<8x8x32xf32>
    %660 = vector.extract_strided_slice %652 {offsets = [1, 0, 0], sizes = [8, 8, 32], strides = [1, 1, 1]} : vector<10x8x32xf32> to vector<8x8x32xf32>
    %661 = vector.extract_strided_slice %0 {offsets = [23, 0], sizes = [1, 32], strides = [1, 1]} : vector<27x32xf32> to vector<1x32xf32>
    %662 = vector.shape_cast %661 : vector<1x32xf32> to vector<32xf32>
    %663 = vector.shape_cast %662 : vector<32xf32> to vector<1x1x32xf32>
    %664 = vector.broadcast %663 : vector<1x1x32xf32> to vector<8x8x32xf32>
    %665 = arith.mulf %660, %664 : vector<8x8x32xf32>
    %666 = arith.addf %659, %665 : vector<8x8x32xf32>
    %667 = vector.extract_strided_slice %652 {offsets = [2, 0, 0], sizes = [8, 8, 32], strides = [1, 1, 1]} : vector<10x8x32xf32> to vector<8x8x32xf32>
    %668 = vector.extract_strided_slice %0 {offsets = [26, 0], sizes = [1, 32], strides = [1, 1]} : vector<27x32xf32> to vector<1x32xf32>
    %669 = vector.shape_cast %668 : vector<1x32xf32> to vector<32xf32>
    %670 = vector.shape_cast %669 : vector<32xf32> to vector<1x1x32xf32>
    %671 = vector.broadcast %670 : vector<1x1x32xf32> to vector<8x8x32xf32>
    %672 = arith.mulf %667, %671 : vector<8x8x32xf32>
    %673 = arith.addf %666, %672 : vector<8x8x32xf32>
    %c0_62 = arith.constant 0 : index
    %c2_63 = arith.constant 2 : index
    %c0_64 = arith.constant 0 : index
    %c0_65 = arith.constant 0 : index
    %c0_66 = arith.constant 0 : index
    %674 = vector.load %arg7[%c0_62, %c2_63, %c0_64, %c0_65, %c0_66] : memref<1x4x8x8x32xf32, #tpu.memory_space<vmem>>, vector<1x1x8x8x32xf32>
    %675 = vector.shape_cast %674 : vector<1x1x8x8x32xf32> to vector<8x8x32xf32>
    %676 = vector.shape_cast %673 : vector<8x8x32xf32> to vector<1x1x8x8x32xf32>
    tpu.vector_store %arg7[%c0_62, %c2_63, %c0_64, %c0_65, %c0_66], %676 {strides = array<i32>} : memref<1x4x8x8x32xf32, #tpu.memory_space<vmem>>, vector<1x1x8x8x32xf32>,
    %c0_67 = arith.constant 0 : index
    %c2_68 = arith.constant 2 : index
    %c0_69 = arith.constant 0 : index
    %c0_70 = arith.constant 0 : index
    %c0_71 = arith.constant 0 : index
    %677 = vector.load %arg2[%c0_67, %c2_68, %c0_69, %c0_70, %c0_71] : memref<1x4x8x8x32xf32, #tpu.memory_space<vmem>>, vector<1x1x8x8x32xf32>
    %678 = vector.shape_cast %677 : vector<1x1x8x8x32xf32> to vector<8x8x32xf32>
    %679 = tpu.concatenate %5, %678, %5 in 1 : vector<8x1x32xf32>, vector<8x8x32xf32>, vector<8x1x32xf32> -> vector<8x10x32xf32>
    %680 = vector.extract_strided_slice %679 {offsets = [0, 0, 0], sizes = [8, 8, 32], strides = [1, 1, 1]} : vector<8x10x32xf32> to vector<8x8x32xf32>
    %681 = tpu.concatenate %6, %680, %6 in 0 : vector<1x8x32xf32>, vector<8x8x32xf32>, vector<1x8x32xf32> -> vector<10x8x32xf32>
    %682 = vector.extract_strided_slice %681 {offsets = [0, 0, 0], sizes = [8, 8, 32], strides = [1, 1, 1]} : vector<10x8x32xf32> to vector<8x8x32xf32>
    %683 = vector.extract_strided_slice %0 {offsets = [0, 0], sizes = [1, 32], strides = [1, 1]} : vector<27x32xf32> to vector<1x32xf32>
    %684 = vector.shape_cast %683 : vector<1x32xf32> to vector<32xf32>
    %685 = vector.shape_cast %684 : vector<32xf32> to vector<1x1x32xf32>
    %686 = vector.broadcast %685 : vector<1x1x32xf32> to vector<8x8x32xf32>
    %687 = arith.mulf %682, %686 : vector<8x8x32xf32>
    %688 = arith.addf %4, %687 : vector<8x8x32xf32>
    %689 = vector.extract_strided_slice %681 {offsets = [1, 0, 0], sizes = [8, 8, 32], strides = [1, 1, 1]} : vector<10x8x32xf32> to vector<8x8x32xf32>
    %690 = vector.extract_strided_slice %0 {offsets = [3, 0], sizes = [1, 32], strides = [1, 1]} : vector<27x32xf32> to vector<1x32xf32>
    %691 = vector.shape_cast %690 : vector<1x32xf32> to vector<32xf32>
    %692 = vector.shape_cast %691 : vector<32xf32> to vector<1x1x32xf32>
    %693 = vector.broadcast %692 : vector<1x1x32xf32> to vector<8x8x32xf32>
    %694 = arith.mulf %689, %693 : vector<8x8x32xf32>
    %695 = arith.addf %688, %694 : vector<8x8x32xf32>
    %696 = vector.extract_strided_slice %681 {offsets = [2, 0, 0], sizes = [8, 8, 32], strides = [1, 1, 1]} : vector<10x8x32xf32> to vector<8x8x32xf32>
    %697 = vector.extract_strided_slice %0 {offsets = [6, 0], sizes = [1, 32], strides = [1, 1]} : vector<27x32xf32> to vector<1x32xf32>
    %698 = vector.shape_cast %697 : vector<1x32xf32> to vector<32xf32>
    %699 = vector.shape_cast %698 : vector<32xf32> to vector<1x1x32xf32>
    %700 = vector.broadcast %699 : vector<1x1x32xf32> to vector<8x8x32xf32>
    %701 = arith.mulf %696, %700 : vector<8x8x32xf32>
    %702 = arith.addf %695, %701 : vector<8x8x32xf32>
    %703 = vector.extract_strided_slice %679 {offsets = [0, 1, 0], sizes = [8, 8, 32], strides = [1, 1, 1]} : vector<8x10x32xf32> to vector<8x8x32xf32>
    %704 = tpu.concatenate %6, %703, %6 in 0 : vector<1x8x32xf32>, vector<8x8x32xf32>, vector<1x8x32xf32> -> vector<10x8x32xf32>
    %705 = vector.extract_strided_slice %704 {offsets = [0, 0, 0], sizes = [8, 8, 32], strides = [1, 1, 1]} : vector<10x8x32xf32> to vector<8x8x32xf32>
    %706 = vector.extract_strided_slice %0 {offsets = [1, 0], sizes = [1, 32], strides = [1, 1]} : vector<27x32xf32> to vector<1x32xf32>
    %707 = vector.shape_cast %706 : vector<1x32xf32> to vector<32xf32>
    %708 = vector.shape_cast %707 : vector<32xf32> to vector<1x1x32xf32>
    %709 = vector.broadcast %708 : vector<1x1x32xf32> to vector<8x8x32xf32>
    %710 = arith.mulf %705, %709 : vector<8x8x32xf32>
    %711 = arith.addf %702, %710 : vector<8x8x32xf32>
    %712 = vector.extract_strided_slice %704 {offsets = [1, 0, 0], sizes = [8, 8, 32], strides = [1, 1, 1]} : vector<10x8x32xf32> to vector<8x8x32xf32>
    %713 = vector.extract_strided_slice %0 {offsets = [4, 0], sizes = [1, 32], strides = [1, 1]} : vector<27x32xf32> to vector<1x32xf32>
    %714 = vector.shape_cast %713 : vector<1x32xf32> to vector<32xf32>
    %715 = vector.shape_cast %714 : vector<32xf32> to vector<1x1x32xf32>
    %716 = vector.broadcast %715 : vector<1x1x32xf32> to vector<8x8x32xf32>
    %717 = arith.mulf %712, %716 : vector<8x8x32xf32>
    %718 = arith.addf %711, %717 : vector<8x8x32xf32>
    %719 = vector.extract_strided_slice %704 {offsets = [2, 0, 0], sizes = [8, 8, 32], strides = [1, 1, 1]} : vector<10x8x32xf32> to vector<8x8x32xf32>
    %720 = vector.extract_strided_slice %0 {offsets = [7, 0], sizes = [1, 32], strides = [1, 1]} : vector<27x32xf32> to vector<1x32xf32>
    %721 = vector.shape_cast %720 : vector<1x32xf32> to vector<32xf32>
    %722 = vector.shape_cast %721 : vector<32xf32> to vector<1x1x32xf32>
    %723 = vector.broadcast %722 : vector<1x1x32xf32> to vector<8x8x32xf32>
    %724 = arith.mulf %719, %723 : vector<8x8x32xf32>
    %725 = arith.addf %718, %724 : vector<8x8x32xf32>
    %726 = vector.extract_strided_slice %679 {offsets = [0, 2, 0], sizes = [8, 8, 32], strides = [1, 1, 1]} : vector<8x10x32xf32> to vector<8x8x32xf32>
    %727 = tpu.concatenate %6, %726, %6 in 0 : vector<1x8x32xf32>, vector<8x8x32xf32>, vector<1x8x32xf32> -> vector<10x8x32xf32>
    %728 = vector.extract_strided_slice %727 {offsets = [0, 0, 0], sizes = [8, 8, 32], strides = [1, 1, 1]} : vector<10x8x32xf32> to vector<8x8x32xf32>
    %729 = vector.extract_strided_slice %0 {offsets = [2, 0], sizes = [1, 32], strides = [1, 1]} : vector<27x32xf32> to vector<1x32xf32>
    %730 = vector.shape_cast %729 : vector<1x32xf32> to vector<32xf32>
    %731 = vector.shape_cast %730 : vector<32xf32> to vector<1x1x32xf32>
    %732 = vector.broadcast %731 : vector<1x1x32xf32> to vector<8x8x32xf32>
    %733 = arith.mulf %728, %732 : vector<8x8x32xf32>
    %734 = arith.addf %725, %733 : vector<8x8x32xf32>
    %735 = vector.extract_strided_slice %727 {offsets = [1, 0, 0], sizes = [8, 8, 32], strides = [1, 1, 1]} : vector<10x8x32xf32> to vector<8x8x32xf32>
    %736 = vector.extract_strided_slice %0 {offsets = [5, 0], sizes = [1, 32], strides = [1, 1]} : vector<27x32xf32> to vector<1x32xf32>
    %737 = vector.shape_cast %736 : vector<1x32xf32> to vector<32xf32>
    %738 = vector.shape_cast %737 : vector<32xf32> to vector<1x1x32xf32>
    %739 = vector.broadcast %738 : vector<1x1x32xf32> to vector<8x8x32xf32>
    %740 = arith.mulf %735, %739 : vector<8x8x32xf32>
    %741 = arith.addf %734, %740 : vector<8x8x32xf32>
    %742 = vector.extract_strided_slice %727 {offsets = [2, 0, 0], sizes = [8, 8, 32], strides = [1, 1, 1]} : vector<10x8x32xf32> to vector<8x8x32xf32>
    %743 = vector.extract_strided_slice %0 {offsets = [8, 0], sizes = [1, 32], strides = [1, 1]} : vector<27x32xf32> to vector<1x32xf32>
    %744 = vector.shape_cast %743 : vector<1x32xf32> to vector<32xf32>
    %745 = vector.shape_cast %744 : vector<32xf32> to vector<1x1x32xf32>
    %746 = vector.broadcast %745 : vector<1x1x32xf32> to vector<8x8x32xf32>
    %747 = arith.mulf %742, %746 : vector<8x8x32xf32>
    %748 = arith.addf %741, %747 : vector<8x8x32xf32>
    %c0_72 = arith.constant 0 : index
    %c3_73 = arith.constant 3 : index
    %c0_74 = arith.constant 0 : index
    %c0_75 = arith.constant 0 : index
    %c0_76 = arith.constant 0 : index
    %749 = vector.load %arg2[%c0_72, %c3_73, %c0_74, %c0_75, %c0_76] : memref<1x4x8x8x32xf32, #tpu.memory_space<vmem>>, vector<1x1x8x8x32xf32>
    %750 = vector.shape_cast %749 : vector<1x1x8x8x32xf32> to vector<8x8x32xf32>
    %751 = tpu.concatenate %5, %750, %5 in 1 : vector<8x1x32xf32>, vector<8x8x32xf32>, vector<8x1x32xf32> -> vector<8x10x32xf32>
    %752 = vector.extract_strided_slice %751 {offsets = [0, 0, 0], sizes = [8, 8, 32], strides = [1, 1, 1]} : vector<8x10x32xf32> to vector<8x8x32xf32>
    %753 = tpu.concatenate %6, %752, %6 in 0 : vector<1x8x32xf32>, vector<8x8x32xf32>, vector<1x8x32xf32> -> vector<10x8x32xf32>
    %754 = vector.extract_strided_slice %753 {offsets = [0, 0, 0], sizes = [8, 8, 32], strides = [1, 1, 1]} : vector<10x8x32xf32> to vector<8x8x32xf32>
    %755 = vector.extract_strided_slice %0 {offsets = [9, 0], sizes = [1, 32], strides = [1, 1]} : vector<27x32xf32> to vector<1x32xf32>
    %756 = vector.shape_cast %755 : vector<1x32xf32> to vector<32xf32>
    %757 = vector.shape_cast %756 : vector<32xf32> to vector<1x1x32xf32>
    %758 = vector.broadcast %757 : vector<1x1x32xf32> to vector<8x8x32xf32>
    %759 = arith.mulf %754, %758 : vector<8x8x32xf32>
    %760 = arith.addf %748, %759 : vector<8x8x32xf32>
    %761 = vector.extract_strided_slice %753 {offsets = [1, 0, 0], sizes = [8, 8, 32], strides = [1, 1, 1]} : vector<10x8x32xf32> to vector<8x8x32xf32>
    %762 = vector.extract_strided_slice %0 {offsets = [12, 0], sizes = [1, 32], strides = [1, 1]} : vector<27x32xf32> to vector<1x32xf32>
    %763 = vector.shape_cast %762 : vector<1x32xf32> to vector<32xf32>
    %764 = vector.shape_cast %763 : vector<32xf32> to vector<1x1x32xf32>
    %765 = vector.broadcast %764 : vector<1x1x32xf32> to vector<8x8x32xf32>
    %766 = arith.mulf %761, %765 : vector<8x8x32xf32>
    %767 = arith.addf %760, %766 : vector<8x8x32xf32>
    %768 = vector.extract_strided_slice %753 {offsets = [2, 0, 0], sizes = [8, 8, 32], strides = [1, 1, 1]} : vector<10x8x32xf32> to vector<8x8x32xf32>
    %769 = vector.extract_strided_slice %0 {offsets = [15, 0], sizes = [1, 32], strides = [1, 1]} : vector<27x32xf32> to vector<1x32xf32>
    %770 = vector.shape_cast %769 : vector<1x32xf32> to vector<32xf32>
    %771 = vector.shape_cast %770 : vector<32xf32> to vector<1x1x32xf32>
    %772 = vector.broadcast %771 : vector<1x1x32xf32> to vector<8x8x32xf32>
    %773 = arith.mulf %768, %772 : vector<8x8x32xf32>
    %774 = arith.addf %767, %773 : vector<8x8x32xf32>
    %775 = vector.extract_strided_slice %751 {offsets = [0, 1, 0], sizes = [8, 8, 32], strides = [1, 1, 1]} : vector<8x10x32xf32> to vector<8x8x32xf32>
    %776 = tpu.concatenate %6, %775, %6 in 0 : vector<1x8x32xf32>, vector<8x8x32xf32>, vector<1x8x32xf32> -> vector<10x8x32xf32>
    %777 = vector.extract_strided_slice %776 {offsets = [0, 0, 0], sizes = [8, 8, 32], strides = [1, 1, 1]} : vector<10x8x32xf32> to vector<8x8x32xf32>
    %778 = vector.extract_strided_slice %0 {offsets = [10, 0], sizes = [1, 32], strides = [1, 1]} : vector<27x32xf32> to vector<1x32xf32>
    %779 = vector.shape_cast %778 : vector<1x32xf32> to vector<32xf32>
    %780 = vector.shape_cast %779 : vector<32xf32> to vector<1x1x32xf32>
    %781 = vector.broadcast %780 : vector<1x1x32xf32> to vector<8x8x32xf32>
    %782 = arith.mulf %777, %781 : vector<8x8x32xf32>
    %783 = arith.addf %774, %782 : vector<8x8x32xf32>
    %784 = vector.extract_strided_slice %776 {offsets = [1, 0, 0], sizes = [8, 8, 32], strides = [1, 1, 1]} : vector<10x8x32xf32> to vector<8x8x32xf32>
    %785 = vector.extract_strided_slice %0 {offsets = [13, 0], sizes = [1, 32], strides = [1, 1]} : vector<27x32xf32> to vector<1x32xf32>
    %786 = vector.shape_cast %785 : vector<1x32xf32> to vector<32xf32>
    %787 = vector.shape_cast %786 : vector<32xf32> to vector<1x1x32xf32>
    %788 = vector.broadcast %787 : vector<1x1x32xf32> to vector<8x8x32xf32>
    %789 = arith.mulf %784, %788 : vector<8x8x32xf32>
    %790 = arith.addf %783, %789 : vector<8x8x32xf32>
    %791 = vector.extract_strided_slice %776 {offsets = [2, 0, 0], sizes = [8, 8, 32], strides = [1, 1, 1]} : vector<10x8x32xf32> to vector<8x8x32xf32>
    %792 = vector.extract_strided_slice %0 {offsets = [16, 0], sizes = [1, 32], strides = [1, 1]} : vector<27x32xf32> to vector<1x32xf32>
    %793 = vector.shape_cast %792 : vector<1x32xf32> to vector<32xf32>
    %794 = vector.shape_cast %793 : vector<32xf32> to vector<1x1x32xf32>
    %795 = vector.broadcast %794 : vector<1x1x32xf32> to vector<8x8x32xf32>
    %796 = arith.mulf %791, %795 : vector<8x8x32xf32>
    %797 = arith.addf %790, %796 : vector<8x8x32xf32>
    %798 = vector.extract_strided_slice %751 {offsets = [0, 2, 0], sizes = [8, 8, 32], strides = [1, 1, 1]} : vector<8x10x32xf32> to vector<8x8x32xf32>
    %799 = tpu.concatenate %6, %798, %6 in 0 : vector<1x8x32xf32>, vector<8x8x32xf32>, vector<1x8x32xf32> -> vector<10x8x32xf32>
    %800 = vector.extract_strided_slice %799 {offsets = [0, 0, 0], sizes = [8, 8, 32], strides = [1, 1, 1]} : vector<10x8x32xf32> to vector<8x8x32xf32>
    %801 = vector.extract_strided_slice %0 {offsets = [11, 0], sizes = [1, 32], strides = [1, 1]} : vector<27x32xf32> to vector<1x32xf32>
    %802 = vector.shape_cast %801 : vector<1x32xf32> to vector<32xf32>
    %803 = vector.shape_cast %802 : vector<32xf32> to vector<1x1x32xf32>
    %804 = vector.broadcast %803 : vector<1x1x32xf32> to vector<8x8x32xf32>
    %805 = arith.mulf %800, %804 : vector<8x8x32xf32>
    %806 = arith.addf %797, %805 : vector<8x8x32xf32>
    %807 = vector.extract_strided_slice %799 {offsets = [1, 0, 0], sizes = [8, 8, 32], strides = [1, 1, 1]} : vector<10x8x32xf32> to vector<8x8x32xf32>
    %808 = vector.extract_strided_slice %0 {offsets = [14, 0], sizes = [1, 32], strides = [1, 1]} : vector<27x32xf32> to vector<1x32xf32>
    %809 = vector.shape_cast %808 : vector<1x32xf32> to vector<32xf32>
    %810 = vector.shape_cast %809 : vector<32xf32> to vector<1x1x32xf32>
    %811 = vector.broadcast %810 : vector<1x1x32xf32> to vector<8x8x32xf32>
    %812 = arith.mulf %807, %811 : vector<8x8x32xf32>
    %813 = arith.addf %806, %812 : vector<8x8x32xf32>
    %814 = vector.extract_strided_slice %799 {offsets = [2, 0, 0], sizes = [8, 8, 32], strides = [1, 1, 1]} : vector<10x8x32xf32> to vector<8x8x32xf32>
    %815 = vector.extract_strided_slice %0 {offsets = [17, 0], sizes = [1, 32], strides = [1, 1]} : vector<27x32xf32> to vector<1x32xf32>
    %816 = vector.shape_cast %815 : vector<1x32xf32> to vector<32xf32>
    %817 = vector.shape_cast %816 : vector<32xf32> to vector<1x1x32xf32>
    %818 = vector.broadcast %817 : vector<1x1x32xf32> to vector<8x8x32xf32>
    %819 = arith.mulf %814, %818 : vector<8x8x32xf32>
    %820 = arith.addf %813, %819 : vector<8x8x32xf32>
    %821 = tpu.concatenate %5, %21, %5 in 1 : vector<8x1x32xf32>, vector<8x8x32xf32>, vector<8x1x32xf32> -> vector<8x10x32xf32>
    %822 = vector.extract_strided_slice %821 {offsets = [0, 0, 0], sizes = [8, 8, 32], strides = [1, 1, 1]} : vector<8x10x32xf32> to vector<8x8x32xf32>
    %823 = tpu.concatenate %6, %822, %6 in 0 : vector<1x8x32xf32>, vector<8x8x32xf32>, vector<1x8x32xf32> -> vector<10x8x32xf32>
    %824 = vector.extract_strided_slice %823 {offsets = [0, 0, 0], sizes = [8, 8, 32], strides = [1, 1, 1]} : vector<10x8x32xf32> to vector<8x8x32xf32>
    %825 = vector.extract_strided_slice %0 {offsets = [18, 0], sizes = [1, 32], strides = [1, 1]} : vector<27x32xf32> to vector<1x32xf32>
    %826 = vector.shape_cast %825 : vector<1x32xf32> to vector<32xf32>
    %827 = vector.shape_cast %826 : vector<32xf32> to vector<1x1x32xf32>
    %828 = vector.broadcast %827 : vector<1x1x32xf32> to vector<8x8x32xf32>
    %829 = arith.mulf %824, %828 : vector<8x8x32xf32>
    %830 = arith.addf %820, %829 : vector<8x8x32xf32>
    %831 = vector.extract_strided_slice %823 {offsets = [1, 0, 0], sizes = [8, 8, 32], strides = [1, 1, 1]} : vector<10x8x32xf32> to vector<8x8x32xf32>
    %832 = vector.extract_strided_slice %0 {offsets = [21, 0], sizes = [1, 32], strides = [1, 1]} : vector<27x32xf32> to vector<1x32xf32>
    %833 = vector.shape_cast %832 : vector<1x32xf32> to vector<32xf32>
    %834 = vector.shape_cast %833 : vector<32xf32> to vector<1x1x32xf32>
    %835 = vector.broadcast %834 : vector<1x1x32xf32> to vector<8x8x32xf32>
    %836 = arith.mulf %831, %835 : vector<8x8x32xf32>
    %837 = arith.addf %830, %836 : vector<8x8x32xf32>
    %838 = vector.extract_strided_slice %823 {offsets = [2, 0, 0], sizes = [8, 8, 32], strides = [1, 1, 1]} : vector<10x8x32xf32> to vector<8x8x32xf32>
    %839 = vector.extract_strided_slice %0 {offsets = [24, 0], sizes = [1, 32], strides = [1, 1]} : vector<27x32xf32> to vector<1x32xf32>
    %840 = vector.shape_cast %839 : vector<1x32xf32> to vector<32xf32>
    %841 = vector.shape_cast %840 : vector<32xf32> to vector<1x1x32xf32>
    %842 = vector.broadcast %841 : vector<1x1x32xf32> to vector<8x8x32xf32>
    %843 = arith.mulf %838, %842 : vector<8x8x32xf32>
    %844 = arith.addf %837, %843 : vector<8x8x32xf32>
    %845 = vector.extract_strided_slice %821 {offsets = [0, 1, 0], sizes = [8, 8, 32], strides = [1, 1, 1]} : vector<8x10x32xf32> to vector<8x8x32xf32>
    %846 = tpu.concatenate %6, %845, %6 in 0 : vector<1x8x32xf32>, vector<8x8x32xf32>, vector<1x8x32xf32> -> vector<10x8x32xf32>
    %847 = vector.extract_strided_slice %846 {offsets = [0, 0, 0], sizes = [8, 8, 32], strides = [1, 1, 1]} : vector<10x8x32xf32> to vector<8x8x32xf32>
    %848 = vector.extract_strided_slice %0 {offsets = [19, 0], sizes = [1, 32], strides = [1, 1]} : vector<27x32xf32> to vector<1x32xf32>
    %849 = vector.shape_cast %848 : vector<1x32xf32> to vector<32xf32>
    %850 = vector.shape_cast %849 : vector<32xf32> to vector<1x1x32xf32>
    %851 = vector.broadcast %850 : vector<1x1x32xf32> to vector<8x8x32xf32>
    %852 = arith.mulf %847, %851 : vector<8x8x32xf32>
    %853 = arith.addf %844, %852 : vector<8x8x32xf32>
    %854 = vector.extract_strided_slice %846 {offsets = [1, 0, 0], sizes = [8, 8, 32], strides = [1, 1, 1]} : vector<10x8x32xf32> to vector<8x8x32xf32>
    %855 = vector.extract_strided_slice %0 {offsets = [22, 0], sizes = [1, 32], strides = [1, 1]} : vector<27x32xf32> to vector<1x32xf32>
    %856 = vector.shape_cast %855 : vector<1x32xf32> to vector<32xf32>
    %857 = vector.shape_cast %856 : vector<32xf32> to vector<1x1x32xf32>
    %858 = vector.broadcast %857 : vector<1x1x32xf32> to vector<8x8x32xf32>
    %859 = arith.mulf %854, %858 : vector<8x8x32xf32>
    %860 = arith.addf %853, %859 : vector<8x8x32xf32>
    %861 = vector.extract_strided_slice %846 {offsets = [2, 0, 0], sizes = [8, 8, 32], strides = [1, 1, 1]} : vector<10x8x32xf32> to vector<8x8x32xf32>
    %862 = vector.extract_strided_slice %0 {offsets = [25, 0], sizes = [1, 32], strides = [1, 1]} : vector<27x32xf32> to vector<1x32xf32>
    %863 = vector.shape_cast %862 : vector<1x32xf32> to vector<32xf32>
    %864 = vector.shape_cast %863 : vector<32xf32> to vector<1x1x32xf32>
    %865 = vector.broadcast %864 : vector<1x1x32xf32> to vector<8x8x32xf32>
    %866 = arith.mulf %861, %865 : vector<8x8x32xf32>
    %867 = arith.addf %860, %866 : vector<8x8x32xf32>
    %868 = vector.extract_strided_slice %821 {offsets = [0, 2, 0], sizes = [8, 8, 32], strides = [1, 1, 1]} : vector<8x10x32xf32> to vector<8x8x32xf32>
    %869 = tpu.concatenate %6, %868, %6 in 0 : vector<1x8x32xf32>, vector<8x8x32xf32>, vector<1x8x32xf32> -> vector<10x8x32xf32>
    %870 = vector.extract_strided_slice %869 {offsets = [0, 0, 0], sizes = [8, 8, 32], strides = [1, 1, 1]} : vector<10x8x32xf32> to vector<8x8x32xf32>
    %871 = vector.extract_strided_slice %0 {offsets = [20, 0], sizes = [1, 32], strides = [1, 1]} : vector<27x32xf32> to vector<1x32xf32>
    %872 = vector.shape_cast %871 : vector<1x32xf32> to vector<32xf32>
    %873 = vector.shape_cast %872 : vector<32xf32> to vector<1x1x32xf32>
    %874 = vector.broadcast %873 : vector<1x1x32xf32> to vector<8x8x32xf32>
    %875 = arith.mulf %870, %874 : vector<8x8x32xf32>
    %876 = arith.addf %867, %875 : vector<8x8x32xf32>
    %877 = vector.extract_strided_slice %869 {offsets = [1, 0, 0], sizes = [8, 8, 32], strides = [1, 1, 1]} : vector<10x8x32xf32> to vector<8x8x32xf32>
    %878 = vector.extract_strided_slice %0 {offsets = [23, 0], sizes = [1, 32], strides = [1, 1]} : vector<27x32xf32> to vector<1x32xf32>
    %879 = vector.shape_cast %878 : vector<1x32xf32> to vector<32xf32>
    %880 = vector.shape_cast %879 : vector<32xf32> to vector<1x1x32xf32>
    %881 = vector.broadcast %880 : vector<1x1x32xf32> to vector<8x8x32xf32>
    %882 = arith.mulf %877, %881 : vector<8x8x32xf32>
    %883 = arith.addf %876, %882 : vector<8x8x32xf32>
    %884 = vector.extract_strided_slice %869 {offsets = [2, 0, 0], sizes = [8, 8, 32], strides = [1, 1, 1]} : vector<10x8x32xf32> to vector<8x8x32xf32>
    %885 = vector.extract_strided_slice %0 {offsets = [26, 0], sizes = [1, 32], strides = [1, 1]} : vector<27x32xf32> to vector<1x32xf32>
    %886 = vector.shape_cast %885 : vector<1x32xf32> to vector<32xf32>
    %887 = vector.shape_cast %886 : vector<32xf32> to vector<1x1x32xf32>
    %888 = vector.broadcast %887 : vector<1x1x32xf32> to vector<8x8x32xf32>
    %889 = arith.mulf %884, %888 : vector<8x8x32xf32>
    %890 = arith.addf %883, %889 : vector<8x8x32xf32>
    %c0_77 = arith.constant 0 : index
    %c3_78 = arith.constant 3 : index
    %c0_79 = arith.constant 0 : index
    %c0_80 = arith.constant 0 : index
    %c0_81 = arith.constant 0 : index
    %891 = vector.load %arg7[%c0_77, %c3_78, %c0_79, %c0_80, %c0_81] : memref<1x4x8x8x32xf32, #tpu.memory_space<vmem>>, vector<1x1x8x8x32xf32>
    %892 = vector.shape_cast %891 : vector<1x1x8x8x32xf32> to vector<8x8x32xf32>
    %893 = vector.shape_cast %890 : vector<8x8x32xf32> to vector<1x1x8x8x32xf32>
    tpu.vector_store %arg7[%c0_77, %c3_78, %c0_79, %c0_80, %c0_81], %893 {strides = array<i32>} : memref<1x4x8x8x32xf32, #tpu.memory_space<vmem>>, vector<1x1x8x8x32xf32>,
    return
  }
  func.func @transform_0(%arg0: i32, %arg1: i32) -> (i32, i32, i32, i32, i32) {
    %c0_i32 = arith.constant 0 : i32
    %c0_i32_0 = arith.constant 0 : i32
    %c0_i32_1 = arith.constant 0 : i32
    %c0_i32_2 = arith.constant 0 : i32
    return %arg0, %arg1, %c0_i32, %c0_i32_0, %c0_i32_1 : i32, i32, i32, i32, i32
  }
  func.func @transform_1(%arg0: i32, %arg1: i32) -> (i32, i32, i32, i32, i32) {
    %c4_i32 = arith.constant 4 : i32
    %0 = arith.muli %arg1, %c4_i32 : i32
    %c1_i32 = arith.constant 1 : i32
    %1 = arith.subi %0, %c1_i32 : i32
    %c0_i32 = arith.constant 0 : i32
    %2 = arith.maxsi %1, %c0_i32 : i32
    %c0_i32_0 = arith.constant 0 : i32
    %c0_i32_1 = arith.constant 0 : i32
    %c0_i32_2 = arith.constant 0 : i32
    %c0_i32_3 = arith.constant 0 : i32
    return %arg0, %2, %c0_i32_0, %c0_i32_1, %c0_i32_2 : i32, i32, i32, i32, i32
  }
  func.func @transform_2(%arg0: i32, %arg1: i32) -> (i32, i32, i32, i32, i32) {
    %c1_i32 = arith.constant 1 : i32
    %0 = arith.addi %arg1, %c1_i32 : i32
    %c4_i32 = arith.constant 4 : i32
    %1 = arith.muli %0, %c4_i32 : i32
    %c3_i32 = arith.constant 3 : i32
    %2 = arith.minsi %1, %c3_i32 : i32
    %c0_i32 = arith.constant 0 : i32
    %c0_i32_0 = arith.constant 0 : i32
    %c0_i32_1 = arith.constant 0 : i32
    %c0_i32_2 = arith.constant 0 : i32
    return %arg0, %2, %c0_i32, %c0_i32_0, %c0_i32_1 : i32, i32, i32, i32, i32
  }
  func.func @transform_3(%arg0: i32, %arg1: i32) -> (i32, i32) {
    %c0_i32 = arith.constant 0 : i32
    %c0_i32_0 = arith.constant 0 : i32
    %c0_i32_1 = arith.constant 0 : i32
    return %c0_i32, %c0_i32_0 : i32, i32
  }
  func.func @transform_4(%arg0: i32, %arg1: i32) -> (i32, i32) {
    %c0_i32 = arith.constant 0 : i32
    %c0_i32_0 = arith.constant 0 : i32
    %c0_i32_1 = arith.constant 0 : i32
    return %c0_i32, %c0_i32_0 : i32, i32
  }
  func.func @transform_5(%arg0: i32, %arg1: i32) -> (i32, i32, i32, i32, i32) {
    %c0_i32 = arith.constant 0 : i32
    %c0_i32_0 = arith.constant 0 : i32
    %c0_i32_1 = arith.constant 0 : i32
    %c0_i32_2 = arith.constant 0 : i32
    return %arg0, %arg1, %c0_i32, %c0_i32_0, %c0_i32_1 : i32, i32, i32, i32, i32
  }
}

</mosaic_0001>

<llo_original>
// kernel: tpu_custom_call.1
$region0: #{tpu_custom_call.1}
  #allocation0 [shape = 'u32[]', space=smem, size = 0x4, offset = 0x4, fixed_abs, tag = 'smem constant byte address 0x4 - core index']
  #allocation1 [shape = 'u32[144,128]{1,0:T(1,128)}', space=vmem, size = 0x12000, scoped, tag = 'internal scratch']
  %s0 = inlined_call_operand.hbm [shape: f32[2,4,8,8,32], index: 0, kind: input, shape index: {}]
  %s1 = inlined_call_operand.hbm [shape: f32[2,4,8,8,32], index: 1, kind: input, shape index: {}]
  %s2 = inlined_call_operand.hbm [shape: f32[2,4,8,8,32], index: 2, kind: input, shape index: {}]
  %s3 = inlined_call_operand.hbm [shape: f32[27,32], index: 3, kind: input, shape index: {}]
  %s4 = inlined_call_operand.vmem [shape: f32[1,32], index: 4, kind: input, shape index: {}]
  %s5 = inlined_call_operand.hbm [shape: f32[2,4,8,8,32], index: 5, kind: output, shape index: {}]
  %s6 = sld [smem:[#allocation0]]
  $region69: #{tpu_custom_call.1} parent=0
    _
  %s8 = ssub.s32 1, %s6
  %s9 = scalar_select 0, %s8, %s6
  $region1: #{tpu_custom_call.1} parent=0
    #allocation2 [shape = 'u8[262144]{0}', space=vmem, size = 0x40000, scoped, tag = 'input window, operand 0']
    #allocation3 [shape = 's32[2]{0}', space=sflag, size = 0x8, scoped, tag = 'scoped memory for tpu_custom_call.1']
    #allocation4 [shape = 's32[2]{0}', space=sflag, size = 0x8, scoped, tag = 'scoped memory for tpu_custom_call.1']
    #allocation5 [shape = 'u8[65536]{0}', space=vmem, size = 0x10000, scoped, tag = 'input window, operand 1']
    #allocation6 [shape = 's32[2]{0}', space=sflag, size = 0x8, scoped, tag = 'scoped memory for tpu_custom_call.1']
    #allocation7 [shape = 'u8[65536]{0}', space=vmem, size = 0x10000, scoped, tag = 'input window, operand 2']
    #allocation8 [shape = 'u8[16384]{0}', space=vmem, size = 0x4000, scoped, tag = 'input window, operand 3, single buffered']
    #allocation9 [shape = 's32[1]{0}', space=sflag, size = 0x4, scoped, tag = 'scoped memory for tpu_custom_call.1']
    #allocation10 [shape = 'u8[262144]{0}', space=vmem, size = 0x40000, scoped, tag = 'output window, operand 0']
    %10 = vsyncpa [#allocation3], 0
    %s11 = scalar_lea.sflag [#allocation3], 1
    %12 = vsyncpa %s11, 0
    %13 = vsyncpa [#allocation6], 0
    %s14 = scalar_lea.sflag [#allocation6], 1
    %15 = vsyncpa %s14, 0
    %16 = vsyncpa [#allocation9], 0
    %17 = vsyncpa [#allocation4], 0
    %s18 = scalar_lea.sflag [#allocation4], 1
    %19 = vsyncpa %s18, 0
    loop: start=0, step=1, limit=4
    $region2: #{tpu_custom_call.1} parent=1 // loop_pre_header
      _
    $region3: #{tpu_custom_call.1} parent=1 // loop_header
      %s21 = sphi 0, %s25
      %p22 = scmp.ge.s32.totalorder %s21, 4
      %s28 = sphi 0, %s40
      %s29 = sphi 0, %s36
      %s30 = sphi 0, %s28
      %s31 = sphi 0, %s29
      %s32 = sphi 0, %s30
      %s33 = sphi 0, %s31
      %s45 = sphi 0, %s47
      %s48 = sphi 0, %s45
      %s49 = sphi 0, %s48
      %s65 = sphi 0, %s49
      %s81 = sphi 0, %s83
      %s84 = sphi 0, %s81
      %s85 = sphi 0, %s84
      %s101 = sphi 0, %s85
      %s117 = sphi 0, %s119
      %s120 = sphi 0, %s117
      %s121 = sphi 0, %s120
      %s137 = sphi 0, %s121
      %s141 = sphi 0, %s141
      %s143 = sphi 0, %s141
      %s144 = sphi 0, %s143
      %s158 = sphi 0, %s144
      %s162 = sphi 0, %s162
      %s164 = sphi 0, %s162
      %s165 = sphi 0, %s164
      %s179 = sphi 0, %s165
      %s187 = sphi 0, %s189
      %s190 = sphi 0, %s187
      %s191 = sphi 0, %s190
      %s207 = sphi 0, %s191
    $region4: #{tpu_custom_call.1} parent=1 // loop_header_branch
      %24 = sbr.rel (%p22) target = $region8
    $region5: #{tpu_custom_call.1} parent=1 // loop_body
      %s26 = ssub.s32 %s21, 1
      %s27 = ssub.s32 %s21, 2
      %s34 = sadd.s32 1, %s29
      %p35 = scmp.ge.s32.totalorder %s34, 1
      %s36 = scalar_select %p35, 0, %s34
      %s37 = sadd.s32 1, %s28
      %s38 = scalar_select %p35, %s37, %s28
      %p39 = scmp.ge.s32.totalorder %s38, 2
      %s40 = scalar_select %p39, 0, %s38
      %s41 = ssub.s32 %s28, %s40
      %s42 = ssub.s32 %s29, %s36
      %s43 = sor.u32 %s41, %s42
      %p44 = scmp.eq.s32.totalorder %s43, 0
      %s46 = sadd.s32 %s45, 1
      %s47 = scalar_select %p44, %s45, %s46
      %p50 = pneg %p44
      %p51 = scmp.eq.s32.totalorder %s21, 1
      %p52 = por %p50, %p51
      %p53 = scmp.ne.s32.totalorder %s45, %s48
      %p54 = scmp.eq.s32.totalorder %s21, 0
      %p55 = por %p53, %p54
      %p56 = scmp.ne.s32.totalorder %s45, %s48
      %p57 = scmp.eq.s32.totalorder %s26, 1
      %p58 = por %p56, %p57
      %p59 = scmp.ne.s32.totalorder %s48, %s49
      %p60 = scmp.eq.s32.totalorder %s26, 0
      %p61 = por %p59, %p60
      %p62 = scmp.ne.s32.totalorder %s48, %s49
      %p63 = scmp.eq.s32.totalorder %s27, 1
      %p64 = por %p62, %p63
      %p66 = scmp.ne.s32.totalorder %s49, %s65
      %p67 = scmp.eq.s32.totalorder %s27, 0
      %p68 = por %p66, %p67
      %s69 = smul.u32 %s29, 4
      %s70 = ssub.s32 %s69, 1
      %p71 = scmp.gt.s32.totalorder %s70, 0
      %s72 = scalar_select %p71, %s70, 0
      %s73 = smul.u32 %s36, 4
      %s74 = ssub.s32 %s73, 1
      %p75 = scmp.gt.s32.totalorder %s74, 0
      %s76 = scalar_select %p75, %s74, 0
      %s77 = ssub.s32 %s28, %s40
      %s78 = ssub.s32 %s72, %s76
      %s79 = sor.u32 %s77, %s78
      %p80 = scmp.eq.s32.totalorder %s79, 0
      %s82 = sadd.s32 %s81, 1
      %s83 = scalar_select %p80, %s81, %s82
      %p86 = pneg %p80
      %p87 = scmp.eq.s32.totalorder %s21, 1
      %p88 = por %p86, %p87
      %p89 = scmp.ne.s32.totalorder %s81, %s84
      %p90 = scmp.eq.s32.totalorder %s21, 0
      %p91 = por %p89, %p90
      %p92 = scmp.ne.s32.totalorder %s81, %s84
      %p93 = scmp.eq.s32.totalorder %s26, 1
      %p94 = por %p92, %p93
      %p95 = scmp.ne.s32.totalorder %s84, %s85
      %p96 = scmp.eq.s32.totalorder %s26, 0
      %p97 = por %p95, %p96
      %p98 = scmp.ne.s32.totalorder %s84, %s85
      %p99 = scmp.eq.s32.totalorder %s27, 1
      %p100 = por %p98, %p99
      %p102 = scmp.ne.s32.totalorder %s85, %s101
      %p103 = scmp.eq.s32.totalorder %s27, 0
      %p104 = por %p102, %p103
      %s105 = sadd.s32 %s29, 1
      %s106 = smul.u32 %s105, 4
      %p107 = scmp.lt.s32.totalorder %s106, 3
      %s108 = scalar_select %p107, %s106, 3
      %s109 = sadd.s32 %s36, 1
      %s110 = smul.u32 %s109, 4
      %p111 = scmp.lt.s32.totalorder %s110, 3
      %s112 = scalar_select %p111, %s110, 3
      %s113 = ssub.s32 %s28, %s40
      %s114 = ssub.s32 %s108, %s112
      %s115 = sor.u32 %s113, %s114
      %p116 = scmp.eq.s32.totalorder %s115, 0
      %s118 = sadd.s32 %s117, 1
      %s119 = scalar_select %p116, %s117, %s118
      %p122 = pneg %p116
      %p123 = scmp.eq.s32.totalorder %s21, 1
      %p124 = por %p122, %p123
      %p125 = scmp.ne.s32.totalorder %s117, %s120
      %p126 = scmp.eq.s32.totalorder %s21, 0
      %p127 = por %p125, %p126
      %p128 = scmp.ne.s32.totalorder %s117, %s120
      %p129 = scmp.eq.s32.totalorder %s26, 1
      %p130 = por %p128, %p129
      %p131 = scmp.ne.s32.totalorder %s120, %s121
      %p132 = scmp.eq.s32.totalorder %s26, 0
      %p133 = por %p131, %p132
      %p134 = scmp.ne.s32.totalorder %s120, %s121
      %p135 = scmp.eq.s32.totalorder %s27, 1
      %p136 = por %p134, %p135
      %p138 = scmp.ne.s32.totalorder %s121, %s137
      %p139 = scmp.eq.s32.totalorder %s27, 0
      %p140 = por %p138, %p139
      %s142 = sadd.s32 %s141, 1
      %p145 = scmp.eq.s32.totalorder %s21, 1
      %p146 = scmp.ne.s32.totalorder %s141, %s143
      %p147 = scmp.eq.s32.totalorder %s21, 0
      %p148 = por %p146, %p147
      %p149 = scmp.ne.s32.totalorder %s141, %s143
      %p150 = scmp.eq.s32.totalorder %s26, 1
      %p151 = por %p149, %p150
      %p152 = scmp.ne.s32.totalorder %s143, %s144
      %p153 = scmp.eq.s32.totalorder %s26, 0
      %p154 = por %p152, %p153
      %p155 = scmp.ne.s32.totalorder %s143, %s144
      %p156 = scmp.eq.s32.totalorder %s27, 1
      %p157 = por %p155, %p156
      %p159 = scmp.ne.s32.totalorder %s144, %s158
      %p160 = scmp.eq.s32.totalorder %s27, 0
      %p161 = por %p159, %p160
      %s163 = sadd.s32 %s162, 1
      %p166 = scmp.eq.s32.totalorder %s21, 1
      %p167 = scmp.ne.s32.totalorder %s162, %s164
      %p168 = scmp.eq.s32.totalorder %s21, 0
      %p169 = por %p167, %p168
      %p170 = scmp.ne.s32.totalorder %s162, %s164
      %p171 = scmp.eq.s32.totalorder %s26, 1
      %p172 = por %p170, %p171
      %p173 = scmp.ne.s32.totalorder %s164, %s165
      %p174 = scmp.eq.s32.totalorder %s26, 0
      %p175 = por %p173, %p174
      %p176 = scmp.ne.s32.totalorder %s164, %s165
      %p177 = scmp.eq.s32.totalorder %s27, 1
      %p178 = por %p176, %p177
      %p180 = scmp.ne.s32.totalorder %s165, %s179
      %p181 = scmp.eq.s32.totalorder %s27, 0
      %p182 = por %p180, %p181
      %s183 = ssub.s32 %s28, %s40
      %s184 = ssub.s32 %s29, %s36
      %s185 = sor.u32 %s183, %s184
      %p186 = scmp.eq.s32.totalorder %s185, 0
      %s188 = sadd.s32 %s187, 1
      %s189 = scalar_select %p186, %s187, %s188
      %p192 = pneg %p186
      %p193 = scmp.eq.s32.totalorder %s21, 1
      %p194 = por %p192, %p193
      %p195 = scmp.ne.s32.totalorder %s187, %s190
      %p196 = scmp.eq.s32.totalorder %s21, 0
      %p197 = por %p195, %p196
      %p198 = scmp.ne.s32.totalorder %s187, %s190
      %p199 = scmp.eq.s32.totalorder %s26, 1
      %p200 = por %p198, %p199
      %p201 = scmp.ne.s32.totalorder %s190, %s191
      %p202 = scmp.eq.s32.totalorder %s26, 0
      %p203 = por %p201, %p202
      %p204 = scmp.ne.s32.totalorder %s190, %s191
      %p205 = scmp.eq.s32.totalorder %s27, 1
      %p206 = por %p204, %p205
      %p208 = scmp.ne.s32.totalorder %s191, %s207
      %p209 = scmp.eq.s32.totalorder %s27, 0
      %p210 = por %p208, %p209
      %p211 = scmp.le.s32.totalorder 1, %s21
      %p212 = scmp.lt.s32.totalorder %s21, 3
      %p213 = pnand %p211, %p212
      %p214 = pneg %p213
      // Predicated region
      $region9: #{tpu_custom_call.1} parent=5 // pred_check
        _
      $region10: #{tpu_custom_call.1} parent=5 // pred_check_branch
        %216 = sbr.rel (%p213) target = $region12
      $region11: #{tpu_custom_call.1} parent=5 // pred_region
        %s217 = ssub.s32 %s21, 1
        // Predicated region
        $region13: #{tpu_custom_call.1} parent=11 // pred_check
          %p218 = pneg %p154
        $region14: #{tpu_custom_call.1} parent=11 // pred_check_branch
          %220 = sbr.rel (%p218) target = $region16
        $region15: #{tpu_custom_call.1} parent=11 // pred_region
          %s222 = ssub.s32 512, 512
          %223 = vsyncadd [#allocation9], %s222
          %s224 = sshll.u32 [#allocation8], 4
          %s225 = int_to_ptr.vmem [resolvable:$true] %s224
          %230 = dma.hbm_to_vmem [thread:$0]  %s3, 512, %s225, [#allocation9], 128, 128, 8
        $region16: #{tpu_custom_call.1} parent=11 // pred_fallthru
          _
        // Predicated region
        $region17: #{tpu_custom_call.1} parent=11 // pred_check
          %p231 = pneg %p175
        $region18: #{tpu_custom_call.1} parent=11 // pred_check_branch
          %233 = sbr.rel (%p231) target = $region20
        $region19: #{tpu_custom_call.1} parent=11 // pred_region
          _
        $region20: #{tpu_custom_call.1} parent=11 // pred_fallthru
          _
      $region12: #{tpu_custom_call.1} parent=5 // pred_fallthru
        _
      %p234 = scmp.lt.s32.totalorder %s21, 2
      // Predicated region
      $region21: #{tpu_custom_call.1} parent=5 // pred_check
        %p235 = pneg %p234
      $region22: #{tpu_custom_call.1} parent=5 // pred_check_branch
        %237 = sbr.rel (%p235) target = $region24
      $region23: #{tpu_custom_call.1} parent=5 // pred_region
        // Predicated region
        $region25: #{tpu_custom_call.1} parent=23 // pred_check
          %p238 = pneg %p55
        $region26: #{tpu_custom_call.1} parent=23 // pred_check_branch
          %240 = sbr.rel (%p238) target = $region28
        $region27: #{tpu_custom_call.1} parent=23 // pred_region
          %s241 = sand.u32 %s45, 1
          %s242 = scalar_lea.sflag [#allocation3], %s241
          %s243 = sand.u32 %s45, 1
          %s244 = smul.addr %s243, 256
          %s245 = scalar_lea.vmem [#allocation2], %s244
          %s246 = smul.u32 4, %s29
          %s248 = ssub.s32 4096, 4096
          %249 = vsyncadd %s242, %s248
          %s250 = smul.addr %s246, 8
          %s251 = smul.addr %s28, 32
          %s252 = sadd.s32 %s250, %s251
          %s253 = smul.addr %s252, 128
          %s254 = scalar_lea.hbm %s0, %s253
          %s255 = sshll.u32 %s245, 4
          %s256 = int_to_ptr.vmem [resolvable:$true] %s255
          %261 = dma.hbm_to_vmem [thread:$0]  %s254, 4096, %s256, %s242, 128, 128, 8
        $region28: #{tpu_custom_call.1} parent=23 // pred_fallthru
          _
        // Predicated region
        $region29: #{tpu_custom_call.1} parent=23 // pred_check
          %p262 = pneg %p91
        $region30: #{tpu_custom_call.1} parent=23 // pred_check_branch
          %264 = sbr.rel (%p262) target = $region32
        $region31: #{tpu_custom_call.1} parent=23 // pred_region
          %s265 = sand.u32 %s21, 1
          %s266 = scalar_lea.sflag [#allocation6], %s265
          %s267 = sand.u32 %s81, 1
          %s268 = smul.addr %s267, 64
          %s269 = scalar_lea.vmem [#allocation5], %s268
          %s270 = smul.u32 %s29, 4
          %s271 = ssub.s32 %s270, 1
          %p272 = scmp.gt.s32.totalorder %s271, 0
          %s273 = scalar_select %p272, %s271, 0
          %s275 = ssub.s32 1024, 1024
          %276 = vsyncadd %s266, %s275
          %s277 = smul.addr %s273, 8
          %s278 = smul.addr %s28, 32
          %s279 = sadd.s32 %s277, %s278
          %s280 = smul.addr %s279, 128
          %s281 = scalar_lea.hbm %s1, %s280
          %s282 = sshll.u32 %s269, 4
          %s283 = int_to_ptr.vmem [resolvable:$true] %s282
          %288 = dma.hbm_to_vmem [thread:$0]  %s281, 1024, %s283, %s266, 128, 128, 8
        $region32: #{tpu_custom_call.1} parent=23 // pred_fallthru
          _
        // Predicated region
        $region33: #{tpu_custom_call.1} parent=23 // pred_check
          %p289 = pneg %p127
        $region34: #{tpu_custom_call.1} parent=23 // pred_check_branch
          %291 = sbr.rel (%p289) target = $region36
        $region35: #{tpu_custom_call.1} parent=23 // pred_region
          %s292 = sand.u32 %s21, 1
          %s293 = scalar_lea.sflag [#allocation6], %s292
          %s294 = sand.u32 %s117, 1
          %s295 = smul.addr %s294, 64
          %s296 = scalar_lea.vmem [#allocation7], %s295
          %s297 = sadd.s32 %s29, 1
          %s298 = smul.u32 %s297, 4
          %p299 = scmp.lt.s32.totalorder %s298, 3
          %s300 = scalar_select %p299, %s298, 3
          %s302 = ssub.s32 1024, 1024
          %303 = vsyncadd %s293, %s302
          %s304 = smul.addr %s300, 8
          %s305 = smul.addr %s28, 32
          %s306 = sadd.s32 %s304, %s305
          %s307 = smul.addr %s306, 128
          %s308 = scalar_lea.hbm %s2, %s307
          %s309 = sshll.u32 %s296, 4
          %s310 = int_to_ptr.vmem [resolvable:$true] %s309
          %315 = dma.hbm_to_vmem [thread:$0]  %s308, 1024, %s310, %s293, 128, 128, 8
        $region36: #{tpu_custom_call.1} parent=23 // pred_fallthru
          _
      $region24: #{tpu_custom_call.1} parent=5 // pred_fallthru
        _
      %p316 = scmp.le.s32.totalorder 1, %s21
      %p317 = scmp.lt.s32.totalorder %s21, 3
      %p318 = pnand %p316, %p317
      %p319 = pneg %p318
      // Predicated region
      $region37: #{tpu_custom_call.1} parent=5 // pred_check
        _
      $region38: #{tpu_custom_call.1} parent=5 // pred_check_branch
        %321 = sbr.rel (%p318) target = $region40
      $region39: #{tpu_custom_call.1} parent=5 // pred_region
        %s322 = ssub.s32 %s21, 1
        %s323 = sand.u32 %s48, 1
        %s324 = scalar_lea.sflag [#allocation3], %s323
        %s325 = sand.u32 %s48, 1
        %s326 = smul.addr %s325, 256
        %s327 = scalar_lea.vmem [#allocation2], %s326
        // Predicated region
        $region41: #{tpu_custom_call.1} parent=39 // pred_check
          %p328 = pneg %p61
        $region42: #{tpu_custom_call.1} parent=39 // pred_check_branch
          %330 = sbr.rel (%p328) target = $region44
        $region43: #{tpu_custom_call.1} parent=39 // pred_region
          %331 = dma.done %s324, 4096
        $region44: #{tpu_custom_call.1} parent=39 // pred_fallthru
          _
        %s332 = sand.u32 %s26, 1
        %s333 = scalar_lea.sflag [#allocation6], %s332
        %s334 = sand.u32 %s84, 1
        %s335 = smul.addr %s334, 64
        %s336 = scalar_lea.vmem [#allocation5], %s335
        // Predicated region
        $region45: #{tpu_custom_call.1} parent=39 // pred_check
          %p337 = pneg %p97
        $region46: #{tpu_custom_call.1} parent=39 // pred_check_branch
          %339 = sbr.rel (%p337) target = $region48
        $region47: #{tpu_custom_call.1} parent=39 // pred_region
          %340 = dma.done %s333, 1024
        $region48: #{tpu_custom_call.1} parent=39 // pred_fallthru
          _
        %s341 = sand.u32 %s26, 1
        %s342 = scalar_lea.sflag [#allocation6], %s341
        %s343 = sand.u32 %s120, 1
        %s344 = smul.addr %s343, 64
        %s345 = scalar_lea.vmem [#allocation7], %s344
        // Predicated region
        $region49: #{tpu_custom_call.1} parent=39 // pred_check
          %p346 = pneg %p133
        $region50: #{tpu_custom_call.1} parent=39 // pred_check_branch
          %348 = sbr.rel (%p346) target = $region52
        $region51: #{tpu_custom_call.1} parent=39 // pred_region
          %349 = dma.done %s342, 1024
        $region52: #{tpu_custom_call.1} parent=39 // pred_fallthru
          _
        // Predicated region
        $region53: #{tpu_custom_call.1} parent=39 // pred_check
          %p350 = pneg %p154
        $region54: #{tpu_custom_call.1} parent=39 // pred_check_branch
          %352 = sbr.rel (%p350) target = $region56
        $region55: #{tpu_custom_call.1} parent=39 // pred_region
          %353 = dma.done [#allocation9], 512
        $region56: #{tpu_custom_call.1} parent=39 // pred_fallthru
          _
        %s354 = sand.u32 %s48, 1
        %s355 = scalar_lea.sflag [#allocation3], %s354
        %s356 = sand.u32 %s48, 1
        %s357 = smul.addr %s356, 256
        %s358 = scalar_lea.vmem [#allocation2], %s357
        %p359 = pneg %p61
        %p360 = pneg %p58
        %s361 = sand.u32 %s26, 1
        %s362 = scalar_lea.sflag [#allocation6], %s361
        %s363 = sand.u32 %s84, 1
        %s364 = smul.addr %s363, 64
        %s365 = scalar_lea.vmem [#allocation5], %s364
        %p366 = pneg %p97
        %p367 = pneg %p94
        %s368 = sand.u32 %s26, 1
        %s369 = scalar_lea.sflag [#allocation6], %s368
        %s370 = sand.u32 %s120, 1
        %s371 = smul.addr %s370, 64
        %s372 = scalar_lea.vmem [#allocation7], %s371
        %p373 = pneg %p133
        %p374 = pneg %p130
        %p375 = pneg %p154
        %p376 = pneg %p151
        %p377 = pneg %p175
        %p378 = pneg %p172
        %p379 = pneg %p203
        %p380 = pneg %p200
        %s381 = sand.u32 %s190, 1
        %s382 = scalar_lea.sflag [#allocation4], %s381
        %s383 = sand.u32 %s190, 1
        %s384 = smul.addr %s383, 256
        %s385 = scalar_lea.vmem [#allocation10], %s384
        %s386 = smul.u32 4, %s31
        %s387 = smul.u32 %s31, 4
        %s388 = ssub.s32 %s387, 1
        %p389 = scmp.gt.s32.totalorder %s388, 0
        %s390 = scalar_select %p389, %s388, 0
        %s391 = sadd.s32 %s31, 1
        %s392 = smul.u32 %s391, 4
        %p393 = scmp.lt.s32.totalorder %s392, 3
        %s394 = scalar_select %p393, %s392, 3
        %s395 = smul.u32 4, %s31
        %v396 = vld [vmem:[#allocation8] sm:$0xff]
        %v397 = vld [vmem:[#allocation8 + $0x8] sm:$0xff]
        %v398 = vld [vmem:[#allocation8 + $0x10] sm:$0xff]
        %v399 = vld [vmem:[#allocation8 + $0x18] sm:$0x7]
        %v400 = vld [vmem:[%s4] sm:$0x1]
        %v402 = vlaneseq
        %v403 = vshrl.u32 %v402, 7
        %v404 = vsub.s32 0, %v403
        %v405 = vrot.slane %v400, %v404
        %v407 = vld [vmem:[%s336] sm:$0xff]
        %v408 = vld [vmem:[%s336 + $0x8] sm:$0xff]
        %v409 = vld [vmem:[%s336 + $0x10] sm:$0xff]
        %v410 = vld [vmem:[%s336 + $0x18] sm:$0xff]
        %v411 = vld [vmem:[%s336 + $0x20] sm:$0xff]
        %v412 = vld [vmem:[%s336 + $0x28] sm:$0xff]
        %v413 = vld [vmem:[%s336 + $0x30] sm:$0xff]
        %v414 = vld [vmem:[%s336 + $0x38] sm:$0xff]
        %p415 = scmp.gt.s32.totalorder %s31, 0
        %s416 = scalar_select %p415, 1, 0
        %s417 = scvt.s32.f32 %s416
        %v418 = vstv %s417
        %v419 = vmul.f32 %v407, %v418
        %v420 = vmul.f32 %v408, %v418
        %v421 = vmul.f32 %v409, %v418
        %v422 = vmul.f32 %v410, %v418
        %v423 = vmul.f32 %v411, %v418
        %v424 = vmul.f32 %v412, %v418
        %v425 = vmul.f32 %v413, %v418
        %v426 = vmul.f32 %v414, %v418
        %v427 = vld [vmem:[%s345] sm:$0xff]
        %v428 = vld [vmem:[%s345 + $0x8] sm:$0xff]
        %v429 = vld [vmem:[%s345 + $0x10] sm:$0xff]
        %v430 = vld [vmem:[%s345 + $0x18] sm:$0xff]
        %v431 = vld [vmem:[%s345 + $0x20] sm:$0xff]
        %v432 = vld [vmem:[%s345 + $0x28] sm:$0xff]
        %v433 = vld [vmem:[%s345 + $0x30] sm:$0xff]
        %v434 = vld [vmem:[%s345 + $0x38] sm:$0xff]
        %s435 = sadd.s32 %s31, 1
        %p436 = scmp.lt.s32.totalorder %s435, 1
        %s437 = scalar_select %p436, 1, 0
        %s438 = scvt.s32.f32 %s437
        %v439 = vstv %s438
        %v440 = vmul.f32 %v427, %v439
        %v441 = vmul.f32 %v428, %v439
        %v442 = vmul.f32 %v429, %v439
        %v443 = vmul.f32 %v430, %v439
        %v444 = vmul.f32 %v431, %v439
        %v445 = vmul.f32 %v432, %v439
        %v446 = vmul.f32 %v433, %v439
        %v447 = vmul.f32 %v434, %v439
        %v456 = vrot.slane %v419, 7
        %v457 = vrot.slane %v420, 7
        %v458 = vrot.slane %v421, 7
        %v459 = vrot.slane %v422, 7
        %v460 = vrot.slane %v423, 7
        %v461 = vrot.slane %v424, 7
        %v462 = vrot.slane %v425, 7
        %v463 = vrot.slane %v426, 7
        %vm472 = vcmask 1040384
        %v473 = vsel %vm472, 0.0, %v456
        %v474 = vsel %vm472, 0.0, %v457
        %v475 = vsel %vm472, 0.0, %v458
        %v476 = vsel %vm472, 0.0, %v459
        %v477 = vsel %vm472, 0.0, %v460
        %v478 = vsel %vm472, 0.0, %v461
        %v479 = vsel %vm472, 0.0, %v462
        %v480 = vsel %vm472, 0.0, %v463
        %v481 = vsel %vm472, %v456, 0.0
        %v482 = vsel %vm472, %v457, 0.0
        %v483 = vsel %vm472, %v458, 0.0
        %v484 = vsel %vm472, %v459, 0.0
        %v485 = vsel %vm472, %v460, 0.0
        %v486 = vsel %vm472, %v461, 0.0
        %v487 = vsel %vm472, %v462, 0.0
        %v488 = vsel %vm472, %v463, 0.0
        %v489 = vlaneseq
        %v490 = vshrl.u32 %v489, 7
        %v491 = vsub.s32 0, %v490
        %v492 = vrot.slane %v396, %v491
        %v493 = vmul.f32 %v492, 0.0
        %v494 = vmul.f32 %v473, %v492
        %v495 = vmul.f32 %v474, %v492
        %v496 = vmul.f32 %v475, %v492
        %v497 = vmul.f32 %v476, %v492
        %v498 = vmul.f32 %v477, %v492
        %v499 = vmul.f32 %v478, %v492
        %v500 = vmul.f32 %v479, %v492
        %v501 = vadd.f32 %v405, %v493
        %v502 = vadd.f32 %v405, %v494
        %v503 = vadd.f32 %v405, %v495
        %v504 = vadd.f32 %v405, %v496
        %v505 = vadd.f32 %v405, %v497
        %v506 = vadd.f32 %v405, %v498
        %v507 = vadd.f32 %v405, %v499
        %v508 = vadd.f32 %v405, %v500
        %v509 = vlaneseq
        %v510 = vshrl.u32 %v509, 7
        %v511 = vsub.s32 3, %v510
        %v512 = vrot.slane %v396, %v511
        %v513 = vmul.f32 %v473, %v512
        %v514 = vmul.f32 %v474, %v512
        %v515 = vmul.f32 %v475, %v512
        %v516 = vmul.f32 %v476, %v512
        %v517 = vmul.f32 %v477, %v512
        %v518 = vmul.f32 %v478, %v512
        %v519 = vmul.f32 %v479, %v512
        %v520 = vmul.f32 %v480, %v512
        %v521 = vadd.f32 %v501, %v513
        %v522 = vadd.f32 %v502, %v514
        %v523 = vadd.f32 %v503, %v515
        %v524 = vadd.f32 %v504, %v516
        %v525 = vadd.f32 %v505, %v517
        %v526 = vadd.f32 %v506, %v518
        %v527 = vadd.f32 %v507, %v519
        %v528 = vadd.f32 %v508, %v520
        %v529 = vlaneseq
        %v530 = vshrl.u32 %v529, 7
        %v531 = vsub.s32 6, %v530
        %v532 = vrot.slane %v396, %v531
        %v533 = vmul.f32 %v474, %v532
        %v534 = vmul.f32 %v475, %v532
        %v535 = vmul.f32 %v476, %v532
        %v536 = vmul.f32 %v477, %v532
        %v537 = vmul.f32 %v478, %v532
        %v538 = vmul.f32 %v479, %v532
        %v539 = vmul.f32 %v480, %v532
        %v540 = vmul.f32 %v532, 0.0
        %v541 = vadd.f32 %v521, %v533
        %v542 = vadd.f32 %v522, %v534
        %v543 = vadd.f32 %v523, %v535
        %v544 = vadd.f32 %v524, %v536
        %v545 = vadd.f32 %v525, %v537
        %v546 = vadd.f32 %v526, %v538
        %v547 = vadd.f32 %v527, %v539
        %v548 = vadd.f32 %v528, %v540
        %vm565 = vcmask 1046528
        %v566 = vrot.slane %v473, 1
        %v567 = vrot.slane %v481, 1
        %v568 = vsel %vm565, %v566, %v567
        %v569 = vrot.slane %v474, 1
        %v570 = vrot.slane %v482, 1
        %v571 = vsel %vm565, %v569, %v570
        %v572 = vrot.slane %v475, 1
        %v573 = vrot.slane %v483, 1
        %v574 = vsel %vm565, %v572, %v573
        %v575 = vrot.slane %v476, 1
        %v576 = vrot.slane %v484, 1
        %v577 = vsel %vm565, %v575, %v576
        %v578 = vrot.slane %v477, 1
        %v579 = vrot.slane %v485, 1
        %v580 = vsel %vm565, %v578, %v579
        %v581 = vrot.slane %v478, 1
        %v582 = vrot.slane %v486, 1
        %v583 = vsel %vm565, %v581, %v582
        %v584 = vrot.slane %v479, 1
        %v585 = vrot.slane %v487, 1
        %v586 = vsel %vm565, %v584, %v585
        %v587 = vrot.slane %v480, 1
        %v588 = vrot.slane %v488, 1
        %v589 = vsel %vm565, %v587, %v588
        %v598 = vlaneseq
        %v599 = vshrl.u32 %v598, 7
        %v600 = vsub.s32 1, %v599
        %v601 = vrot.slane %v396, %v600
        %v602 = vmul.f32 %v601, 0.0
        %v603 = vmul.f32 %v568, %v601
        %v604 = vmul.f32 %v571, %v601
        %v605 = vmul.f32 %v574, %v601
        %v606 = vmul.f32 %v577, %v601
        %v607 = vmul.f32 %v580, %v601
        %v608 = vmul.f32 %v583, %v601
        %v609 = vmul.f32 %v586, %v601
        %v610 = vadd.f32 %v541, %v602
        %v611 = vadd.f32 %v542, %v603
        %v612 = vadd.f32 %v543, %v604
        %v613 = vadd.f32 %v544, %v605
        %v614 = vadd.f32 %v545, %v606
        %v615 = vadd.f32 %v546, %v607
        %v616 = vadd.f32 %v547, %v608
        %v617 = vadd.f32 %v548, %v609
        %v618 = vlaneseq
        %v619 = vshrl.u32 %v618, 7
        %v620 = vsub.s32 4, %v619
        %v621 = vrot.slane %v396, %v620
        %v622 = vmul.f32 %v568, %v621
        %v623 = vmul.f32 %v571, %v621
        %v624 = vmul.f32 %v574, %v621
        %v625 = vmul.f32 %v577, %v621
        %v626 = vmul.f32 %v580, %v621
        %v627 = vmul.f32 %v583, %v621
        %v628 = vmul.f32 %v586, %v621
        %v629 = vmul.f32 %v589, %v621
        %v630 = vadd.f32 %v610, %v622
        %v631 = vadd.f32 %v611, %v623
        %v632 = vadd.f32 %v612, %v624
        %v633 = vadd.f32 %v613, %v625
        %v634 = vadd.f32 %v614, %v626
        %v635 = vadd.f32 %v615, %v627
        %v636 = vadd.f32 %v616, %v628
        %v637 = vadd.f32 %v617, %v629
        %v638 = vlaneseq
        %v639 = vshrl.u32 %v638, 7
        %v640 = vsub.s32 7, %v639
        %v641 = vrot.slane %v396, %v640
        %v642 = vmul.f32 %v571, %v641
        %v643 = vmul.f32 %v574, %v641
        %v644 = vmul.f32 %v577, %v641
        %v645 = vmul.f32 %v580, %v641
        %v646 = vmul.f32 %v583, %v641
        %v647 = vmul.f32 %v586, %v641
        %v648 = vmul.f32 %v589, %v641
        %v649 = vmul.f32 %v641, 0.0
        %v650 = vadd.f32 %v630, %v642
        %v651 = vadd.f32 %v631, %v643
        %v652 = vadd.f32 %v632, %v644
        %v653 = vadd.f32 %v633, %v645
        %v654 = vadd.f32 %v634, %v646
        %v655 = vadd.f32 %v635, %v647
        %v656 = vadd.f32 %v636, %v648
        %v657 = vadd.f32 %v637, %v649
        %vm658 = vcmask 1045504
        %v659 = vrot.slane %v473, 2
        %v660 = vrot.slane %v481, 2
        %v661 = vsel %vm658, %v659, %v660
        %v662 = vrot.slane %v474, 2
        %v663 = vrot.slane %v482, 2
        %v664 = vsel %vm658, %v662, %v663
        %v665 = vrot.slane %v475, 2
        %v666 = vrot.slane %v483, 2
        %v667 = vsel %vm658, %v665, %v666
        %v668 = vrot.slane %v476, 2
        %v669 = vrot.slane %v484, 2
        %v670 = vsel %vm658, %v668, %v669
        %v671 = vrot.slane %v477, 2
        %v672 = vrot.slane %v485, 2
        %v673 = vsel %vm658, %v671, %v672
        %v674 = vrot.slane %v478, 2
        %v675 = vrot.slane %v486, 2
        %v676 = vsel %vm658, %v674, %v675
        %v677 = vrot.slane %v479, 2
        %v678 = vrot.slane %v487, 2
        %v679 = vsel %vm658, %v677, %v678
        %v680 = vrot.slane %v480, 2
        %v681 = vrot.slane %v488, 2
        %v682 = vsel %vm658, %v680, %v681
        %v691 = vlaneseq
        %v692 = vshrl.u32 %v691, 7
        %v693 = vsub.s32 2, %v692
        %v694 = vrot.slane %v396, %v693
        %v695 = vmul.f32 %v694, 0.0
        %v696 = vmul.f32 %v661, %v694
        %v697 = vmul.f32 %v664, %v694
        %v698 = vmul.f32 %v667, %v694
        %v699 = vmul.f32 %v670, %v694
        %v700 = vmul.f32 %v673, %v694
        %v701 = vmul.f32 %v676, %v694
        %v702 = vmul.f32 %v679, %v694
        %v703 = vadd.f32 %v650, %v695
        %v704 = vadd.f32 %v651, %v696
        %v705 = vadd.f32 %v652, %v697
        %v706 = vadd.f32 %v653, %v698
        %v707 = vadd.f32 %v654, %v699
        %v708 = vadd.f32 %v655, %v700
        %v709 = vadd.f32 %v656, %v701
        %v710 = vadd.f32 %v657, %v702
        %v711 = vlaneseq
        %v712 = vshrl.u32 %v711, 7
        %v713 = vsub.s32 5, %v712
        %v714 = vrot.slane %v396, %v713
        %v715 = vmul.f32 %v661, %v714
        %v716 = vmul.f32 %v664, %v714
        %v717 = vmul.f32 %v667, %v714
        %v718 = vmul.f32 %v670, %v714
        %v719 = vmul.f32 %v673, %v714
        %v720 = vmul.f32 %v676, %v714
        %v721 = vmul.f32 %v679, %v714
        %v722 = vmul.f32 %v682, %v714
        %v723 = vadd.f32 %v703, %v715
        %v724 = vadd.f32 %v704, %v716
        %v725 = vadd.f32 %v705, %v717
        %v726 = vadd.f32 %v706, %v718
        %v727 = vadd.f32 %v707, %v719
        %v728 = vadd.f32 %v708, %v720
        %v729 = vadd.f32 %v709, %v721
        %v730 = vadd.f32 %v710, %v722
        %v731 = vlaneseq
        %v732 = vshrl.u32 %v731, 7
        %v733 = vsub.s32 0, %v732
        %v734 = vrot.slane %v397, %v733
        %v735 = vmul.f32 %v664, %v734
        %v736 = vmul.f32 %v667, %v734
        %v737 = vmul.f32 %v670, %v734
        %v738 = vmul.f32 %v673, %v734
        %v739 = vmul.f32 %v676, %v734
        %v740 = vmul.f32 %v679, %v734
        %v741 = vmul.f32 %v682, %v734
        %v742 = vmul.f32 %v734, 0.0
        %v743 = vadd.f32 %v723, %v735
        %v744 = vadd.f32 %v724, %v736
        %v745 = vadd.f32 %v725, %v737
        %v746 = vadd.f32 %v726, %v738
        %v747 = vadd.f32 %v727, %v739
        %v748 = vadd.f32 %v728, %v740
        %v749 = vadd.f32 %v729, %v741
        %v750 = vadd.f32 %v730, %v742
        %v751 = vld [vmem:[%s327] sm:$0xff]
        %v752 = vld [vmem:[%s327 + $0x8] sm:$0xff]
        %v753 = vld [vmem:[%s327 + $0x10] sm:$0xff]
        %v754 = vld [vmem:[%s327 + $0x18] sm:$0xff]
        %v755 = vld [vmem:[%s327 + $0x20] sm:$0xff]
        %v756 = vld [vmem:[%s327 + $0x28] sm:$0xff]
        %v757 = vld [vmem:[%s327 + $0x30] sm:$0xff]
        %v758 = vld [vmem:[%s327 + $0x38] sm:$0xff]
        %v767 = vrot.slane %v751, 7
        %v768 = vrot.slane %v752, 7
        %v769 = vrot.slane %v753, 7
        %v770 = vrot.slane %v754, 7
        %v771 = vrot.slane %v755, 7
        %v772 = vrot.slane %v756, 7
        %v773 = vrot.slane %v757, 7
        %v774 = vrot.slane %v758, 7
        %v783 = vsel %vm472, 0.0, %v767
        %v784 = vsel %vm472, 0.0, %v768
        %v785 = vsel %vm472, 0.0, %v769
        %v786 = vsel %vm472, 0.0, %v770
        %v787 = vsel %vm472, 0.0, %v771
        %v788 = vsel %vm472, 0.0, %v772
        %v789 = vsel %vm472, 0.0, %v773
        %v790 = vsel %vm472, 0.0, %v774
        %v791 = vsel %vm472, %v767, 0.0
        %v792 = vsel %vm472, %v768, 0.0
        %v793 = vsel %vm472, %v769, 0.0
        %v794 = vsel %vm472, %v770, 0.0
        %v795 = vsel %vm472, %v771, 0.0
        %v796 = vsel %vm472, %v772, 0.0
        %v797 = vsel %vm472, %v773, 0.0
        %v798 = vsel %vm472, %v774, 0.0
        %v799 = vlaneseq
        %v800 = vshrl.u32 %v799, 7
        %v801 = vsub.s32 1, %v800
        %v802 = vrot.slane %v397, %v801
        %v803 = vmul.f32 %v802, 0.0
        %v804 = vmul.f32 %v783, %v802
        %v805 = vmul.f32 %v784, %v802
        %v806 = vmul.f32 %v785, %v802
        %v807 = vmul.f32 %v786, %v802
        %v808 = vmul.f32 %v787, %v802
        %v809 = vmul.f32 %v788, %v802
        %v810 = vmul.f32 %v789, %v802
        %v811 = vadd.f32 %v743, %v803
        %v812 = vadd.f32 %v744, %v804
        %v813 = vadd.f32 %v745, %v805
        %v814 = vadd.f32 %v746, %v806
        %v815 = vadd.f32 %v747, %v807
        %v816 = vadd.f32 %v748, %v808
        %v817 = vadd.f32 %v749, %v809
        %v818 = vadd.f32 %v750, %v810
        %v819 = vlaneseq
        %v820 = vshrl.u32 %v819, 7
        %v821 = vsub.s32 4, %v820
        %v822 = vrot.slane %v397, %v821
        %v823 = vmul.f32 %v783, %v822
        %v824 = vmul.f32 %v784, %v822
        %v825 = vmul.f32 %v785, %v822
        %v826 = vmul.f32 %v786, %v822
        %v827 = vmul.f32 %v787, %v822
        %v828 = vmul.f32 %v788, %v822
        %v829 = vmul.f32 %v789, %v822
        %v830 = vmul.f32 %v790, %v822
        %v831 = vadd.f32 %v811, %v823
        %v832 = vadd.f32 %v812, %v824
        %v833 = vadd.f32 %v813, %v825
        %v834 = vadd.f32 %v814, %v826
        %v835 = vadd.f32 %v815, %v827
        %v836 = vadd.f32 %v816, %v828
        %v837 = vadd.f32 %v817, %v829
        %v838 = vadd.f32 %v818, %v830
        %v839 = vlaneseq
        %v840 = vshrl.u32 %v839, 7
        %v841 = vsub.s32 7, %v840
        %v842 = vrot.slane %v397, %v841
        %v843 = vmul.f32 %v784, %v842
        %v844 = vmul.f32 %v785, %v842
        %v845 = vmul.f32 %v786, %v842
        %v846 = vmul.f32 %v787, %v842
        %v847 = vmul.f32 %v788, %v842
        %v848 = vmul.f32 %v789, %v842
        %v849 = vmul.f32 %v790, %v842
        %v850 = vmul.f32 %v842, 0.0
        %v851 = vadd.f32 %v831, %v843
        %v852 = vadd.f32 %v832, %v844
        %v853 = vadd.f32 %v833, %v845
        %v854 = vadd.f32 %v834, %v846
        %v855 = vadd.f32 %v835, %v847
        %v856 = vadd.f32 %v836, %v848
        %v857 = vadd.f32 %v837, %v849
        %v858 = vadd.f32 %v838, %v850
        %v875 = vrot.slane %v783, 1
        %v876 = vrot.slane %v791, 1
        %v877 = vsel %vm565, %v875, %v876
        %v878 = vrot.slane %v784, 1
        %v879 = vrot.slane %v792, 1
        %v880 = vsel %vm565, %v878, %v879
        %v881 = vrot.slane %v785, 1
        %v882 = vrot.slane %v793, 1
        %v883 = vsel %vm565, %v881, %v882
        %v884 = vrot.slane %v786, 1
        %v885 = vrot.slane %v794, 1
        %v886 = vsel %vm565, %v884, %v885
        %v887 = vrot.slane %v787, 1
        %v888 = vrot.slane %v795, 1
        %v889 = vsel %vm565, %v887, %v888
        %v890 = vrot.slane %v788, 1
        %v891 = vrot.slane %v796, 1
        %v892 = vsel %vm565, %v890, %v891
        %v893 = vrot.slane %v789, 1
        %v894 = vrot.slane %v797, 1
        %v895 = vsel %vm565, %v893, %v894
        %v896 = vrot.slane %v790, 1
        %v897 = vrot.slane %v798, 1
        %v898 = vsel %vm565, %v896, %v897
        %v907 = vlaneseq
        %v908 = vshrl.u32 %v907, 7
        %v909 = vsub.s32 2, %v908
        %v910 = vrot.slane %v397, %v909
        %v911 = vmul.f32 %v910, 0.0
        %v912 = vmul.f32 %v877, %v910
        %v913 = vmul.f32 %v880, %v910
        %v914 = vmul.f32 %v883, %v910
        %v915 = vmul.f32 %v886, %v910
        %v916 = vmul.f32 %v889, %v910
        %v917 = vmul.f32 %v892, %v910
        %v918 = vmul.f32 %v895, %v910
        %v919 = vadd.f32 %v851, %v911
        %v920 = vadd.f32 %v852, %v912
        %v921 = vadd.f32 %v853, %v913
        %v922 = vadd.f32 %v854, %v914
        %v923 = vadd.f32 %v855, %v915
        %v924 = vadd.f32 %v856, %v916
        %v925 = vadd.f32 %v857, %v917
        %v926 = vadd.f32 %v858, %v918
        %v927 = vlaneseq
        %v928 = vshrl.u32 %v927, 7
        %v929 = vsub.s32 5, %v928
        %v930 = vrot.slane %v397, %v929
        %v931 = vmul.f32 %v877, %v930
        %v932 = vmul.f32 %v880, %v930
        %v933 = vmul.f32 %v883, %v930
        %v934 = vmul.f32 %v886, %v930
        %v935 = vmul.f32 %v889, %v930
        %v936 = vmul.f32 %v892, %v930
        %v937 = vmul.f32 %v895, %v930
        %v938 = vmul.f32 %v898, %v930
        %v939 = vadd.f32 %v919, %v931
        %v940 = vadd.f32 %v920, %v932
        %v941 = vadd.f32 %v921, %v933
        %v942 = vadd.f32 %v922, %v934
        %v943 = vadd.f32 %v923, %v935
        %v944 = vadd.f32 %v924, %v936
        %v945 = vadd.f32 %v925, %v937
        %v946 = vadd.f32 %v926, %v938
        %v947 = vlaneseq
        %v948 = vshrl.u32 %v947, 7
        %v949 = vsub.s32 0, %v948
        %v950 = vrot.slane %v398, %v949
        %v951 = vmul.f32 %v880, %v950
        %v952 = vmul.f32 %v883, %v950
        %v953 = vmul.f32 %v886, %v950
        %v954 = vmul.f32 %v889, %v950
        %v955 = vmul.f32 %v892, %v950
        %v956 = vmul.f32 %v895, %v950
        %v957 = vmul.f32 %v898, %v950
        %v958 = vmul.f32 %v950, 0.0
        %v959 = vadd.f32 %v939, %v951
        %v960 = vadd.f32 %v940, %v952
        %v961 = vadd.f32 %v941, %v953
        %v962 = vadd.f32 %v942, %v954
        %v963 = vadd.f32 %v943, %v955
        %v964 = vadd.f32 %v944, %v956
        %v965 = vadd.f32 %v945, %v957
        %v966 = vadd.f32 %v946, %v958
        %v967 = vrot.slane %v783, 2
        %v968 = vrot.slane %v791, 2
        %v969 = vsel %vm658, %v967, %v968
        %v970 = vrot.slane %v784, 2
        %v971 = vrot.slane %v792, 2
        %v972 = vsel %vm658, %v970, %v971
        %v973 = vrot.slane %v785, 2
        %v974 = vrot.slane %v793, 2
        %v975 = vsel %vm658, %v973, %v974
        %v976 = vrot.slane %v786, 2
        %v977 = vrot.slane %v794, 2
        %v978 = vsel %vm658, %v976, %v977
        %v979 = vrot.slane %v787, 2
        %v980 = vrot.slane %v795, 2
        %v981 = vsel %vm658, %v979, %v980
        %v982 = vrot.slane %v788, 2
        %v983 = vrot.slane %v796, 2
        %v984 = vsel %vm658, %v982, %v983
        %v985 = vrot.slane %v789, 2
        %v986 = vrot.slane %v797, 2
        %v987 = vsel %vm658, %v985, %v986
        %v988 = vrot.slane %v790, 2
        %v989 = vrot.slane %v798, 2
        %v990 = vsel %vm658, %v988, %v989
        %v999 = vlaneseq
        %v1000 = vshrl.u32 %v999, 7
        %v1001 = vsub.s32 3, %v1000
        %v1002 = vrot.slane %v397, %v1001
        %v1003 = vmul.f32 %v1002, 0.0
        %v1004 = vmul.f32 %v969, %v1002
        %v1005 = vmul.f32 %v972, %v1002
        %v1006 = vmul.f32 %v975, %v1002
        %v1007 = vmul.f32 %v978, %v1002
        %v1008 = vmul.f32 %v981, %v1002
        %v1009 = vmul.f32 %v984, %v1002
        %v1010 = vmul.f32 %v987, %v1002
        %v1011 = vadd.f32 %v959, %v1003
        %v1012 = vadd.f32 %v960, %v1004
        %v1013 = vadd.f32 %v961, %v1005
        %v1014 = vadd.f32 %v962, %v1006
        %v1015 = vadd.f32 %v963, %v1007
        %v1016 = vadd.f32 %v964, %v1008
        %v1017 = vadd.f32 %v965, %v1009
        %v1018 = vadd.f32 %v966, %v1010
        %v1019 = vlaneseq
        %v1020 = vshrl.u32 %v1019, 7
        %v1021 = vsub.s32 6, %v1020
        %v1022 = vrot.slane %v397, %v1021
        %v1023 = vmul.f32 %v969, %v1022
        %v1024 = vmul.f32 %v972, %v1022
        %v1025 = vmul.f32 %v975, %v1022
        %v1026 = vmul.f32 %v978, %v1022
        %v1027 = vmul.f32 %v981, %v1022
        %v1028 = vmul.f32 %v984, %v1022
        %v1029 = vmul.f32 %v987, %v1022
        %v1030 = vmul.f32 %v990, %v1022
        %v1031 = vadd.f32 %v1011, %v1023
        %v1032 = vadd.f32 %v1012, %v1024
        %v1033 = vadd.f32 %v1013, %v1025
        %v1034 = vadd.f32 %v1014, %v1026
        %v1035 = vadd.f32 %v1015, %v1027
        %v1036 = vadd.f32 %v1016, %v1028
        %v1037 = vadd.f32 %v1017, %v1029
        %v1038 = vadd.f32 %v1018, %v1030
        %v1039 = vlaneseq
        %v1040 = vshrl.u32 %v1039, 7
        %v1041 = vsub.s32 1, %v1040
        %v1042 = vrot.slane %v398, %v1041
        %v1043 = vmul.f32 %v972, %v1042
        %v1044 = vmul.f32 %v975, %v1042
        %v1045 = vmul.f32 %v978, %v1042
        %v1046 = vmul.f32 %v981, %v1042
        %v1047 = vmul.f32 %v984, %v1042
        %v1048 = vmul.f32 %v987, %v1042
        %v1049 = vmul.f32 %v990, %v1042
        %v1050 = vmul.f32 %v1042, 0.0
        %v1051 = vadd.f32 %v1031, %v1043
        %v1052 = vadd.f32 %v1032, %v1044
        %v1053 = vadd.f32 %v1033, %v1045
        %v1054 = vadd.f32 %v1034, %v1046
        %v1055 = vadd.f32 %v1035, %v1047
        %v1056 = vadd.f32 %v1036, %v1048
        %v1057 = vadd.f32 %v1037, %v1049
        %v1058 = vadd.f32 %v1038, %v1050
        %s1059 = scalar_lea.vmem %s327, 64 [#allocation2]
        %v1060 = vld [vmem:[%s1059] sm:$0xff]
        %v1061 = vld [vmem:[%s1059 + $0x8] sm:$0xff]
        %v1062 = vld [vmem:[%s1059 + $0x10] sm:$0xff]
        %v1063 = vld [vmem:[%s1059 + $0x18] sm:$0xff]
        %v1064 = vld [vmem:[%s1059 + $0x20] sm:$0xff]
        %v1065 = vld [vmem:[%s1059 + $0x28] sm:$0xff]
        %v1066 = vld [vmem:[%s1059 + $0x30] sm:$0xff]
        %v1067 = vld [vmem:[%s1059 + $0x38] sm:$0xff]
        %v1076 = vrot.slane %v1060, 7
        %v1077 = vrot.slane %v1061, 7
        %v1078 = vrot.slane %v1062, 7
        %v1079 = vrot.slane %v1063, 7
        %v1080 = vrot.slane %v1064, 7
        %v1081 = vrot.slane %v1065, 7
        %v1082 = vrot.slane %v1066, 7
        %v1083 = vrot.slane %v1067, 7
        %v1092 = vsel %vm472, 0.0, %v1076
        %v1093 = vsel %vm472, 0.0, %v1077
        %v1094 = vsel %vm472, 0.0, %v1078
        %v1095 = vsel %vm472, 0.0, %v1079
        %v1096 = vsel %vm472, 0.0, %v1080
        %v1097 = vsel %vm472, 0.0, %v1081
        %v1098 = vsel %vm472, 0.0, %v1082
        %v1099 = vsel %vm472, 0.0, %v1083
        %v1100 = vsel %vm472, %v1076, 0.0
        %v1101 = vsel %vm472, %v1077, 0.0
        %v1102 = vsel %vm472, %v1078, 0.0
        %v1103 = vsel %vm472, %v1079, 0.0
        %v1104 = vsel %vm472, %v1080, 0.0
        %v1105 = vsel %vm472, %v1081, 0.0
        %v1106 = vsel %vm472, %v1082, 0.0
        %v1107 = vsel %vm472, %v1083, 0.0
        %v1108 = vlaneseq
        %v1109 = vshrl.u32 %v1108, 7
        %v1110 = vsub.s32 2, %v1109
        %v1111 = vrot.slane %v398, %v1110
        %v1112 = vmul.f32 %v1111, 0.0
        %v1113 = vmul.f32 %v1092, %v1111
        %v1114 = vmul.f32 %v1093, %v1111
        %v1115 = vmul.f32 %v1094, %v1111
        %v1116 = vmul.f32 %v1095, %v1111
        %v1117 = vmul.f32 %v1096, %v1111
        %v1118 = vmul.f32 %v1097, %v1111
        %v1119 = vmul.f32 %v1098, %v1111
        %v1120 = vadd.f32 %v1051, %v1112
        %v1121 = vadd.f32 %v1052, %v1113
        %v1122 = vadd.f32 %v1053, %v1114
        %v1123 = vadd.f32 %v1054, %v1115
        %v1124 = vadd.f32 %v1055, %v1116
        %v1125 = vadd.f32 %v1056, %v1117
        %v1126 = vadd.f32 %v1057, %v1118
        %v1127 = vadd.f32 %v1058, %v1119
        %v1128 = vlaneseq
        %v1129 = vshrl.u32 %v1128, 7
        %v1130 = vsub.s32 5, %v1129
        %v1131 = vrot.slane %v398, %v1130
        %v1132 = vmul.f32 %v1092, %v1131
        %v1133 = vmul.f32 %v1093, %v1131
        %v1134 = vmul.f32 %v1094, %v1131
        %v1135 = vmul.f32 %v1095, %v1131
        %v1136 = vmul.f32 %v1096, %v1131
        %v1137 = vmul.f32 %v1097, %v1131
        %v1138 = vmul.f32 %v1098, %v1131
        %v1139 = vmul.f32 %v1099, %v1131
        %v1140 = vadd.f32 %v1120, %v1132
        %v1141 = vadd.f32 %v1121, %v1133
        %v1142 = vadd.f32 %v1122, %v1134
        %v1143 = vadd.f32 %v1123, %v1135
        %v1144 = vadd.f32 %v1124, %v1136
        %v1145 = vadd.f32 %v1125, %v1137
        %v1146 = vadd.f32 %v1126, %v1138
        %v1147 = vadd.f32 %v1127, %v1139
        %v1148 = vlaneseq
        %v1149 = vshrl.u32 %v1148, 7
        %v1150 = vsub.s32 0, %v1149
        %v1151 = vrot.slane %v399, %v1150
        %v1152 = vmul.f32 %v1093, %v1151
        %v1153 = vmul.f32 %v1094, %v1151
        %v1154 = vmul.f32 %v1095, %v1151
        %v1155 = vmul.f32 %v1096, %v1151
        %v1156 = vmul.f32 %v1097, %v1151
        %v1157 = vmul.f32 %v1098, %v1151
        %v1158 = vmul.f32 %v1099, %v1151
        %v1159 = vmul.f32 %v1151, 0.0
        %v1160 = vadd.f32 %v1140, %v1152
        %v1161 = vadd.f32 %v1141, %v1153
        %v1162 = vadd.f32 %v1142, %v1154
        %v1163 = vadd.f32 %v1143, %v1155
        %v1164 = vadd.f32 %v1144, %v1156
        %v1165 = vadd.f32 %v1145, %v1157
        %v1166 = vadd.f32 %v1146, %v1158
        %v1167 = vadd.f32 %v1147, %v1159
        %v1184 = vrot.slane %v1092, 1
        %v1185 = vrot.slane %v1100, 1
        %v1186 = vsel %vm565, %v1184, %v1185
        %v1187 = vrot.slane %v1093, 1
        %v1188 = vrot.slane %v1101, 1
        %v1189 = vsel %vm565, %v1187, %v1188
        %v1190 = vrot.slane %v1094, 1
        %v1191 = vrot.slane %v1102, 1
        %v1192 = vsel %vm565, %v1190, %v1191
        %v1193 = vrot.slane %v1095, 1
        %v1194 = vrot.slane %v1103, 1
        %v1195 = vsel %vm565, %v1193, %v1194
        %v1196 = vrot.slane %v1096, 1
        %v1197 = vrot.slane %v1104, 1
        %v1198 = vsel %vm565, %v1196, %v1197
        %v1199 = vrot.slane %v1097, 1
        %v1200 = vrot.slane %v1105, 1
        %v1201 = vsel %vm565, %v1199, %v1200
        %v1202 = vrot.slane %v1098, 1
        %v1203 = vrot.slane %v1106, 1
        %v1204 = vsel %vm565, %v1202, %v1203
        %v1205 = vrot.slane %v1099, 1
        %v1206 = vrot.slane %v1107, 1
        %v1207 = vsel %vm565, %v1205, %v1206
        %v1216 = vlaneseq
        %v1217 = vshrl.u32 %v1216, 7
        %v1218 = vsub.s32 3, %v1217
        %v1219 = vrot.slane %v398, %v1218
        %v1220 = vmul.f32 %v1219, 0.0
        %v1221 = vmul.f32 %v1186, %v1219
        %v1222 = vmul.f32 %v1189, %v1219
        %v1223 = vmul.f32 %v1192, %v1219
        %v1224 = vmul.f32 %v1195, %v1219
        %v1225 = vmul.f32 %v1198, %v1219
        %v1226 = vmul.f32 %v1201, %v1219
        %v1227 = vmul.f32 %v1204, %v1219
        %v1228 = vadd.f32 %v1160, %v1220
        %v1229 = vadd.f32 %v1161, %v1221
        %v1230 = vadd.f32 %v1162, %v1222
        %v1231 = vadd.f32 %v1163, %v1223
        %v1232 = vadd.f32 %v1164, %v1224
        %v1233 = vadd.f32 %v1165, %v1225
        %v1234 = vadd.f32 %v1166, %v1226
        %v1235 = vadd.f32 %v1167, %v1227
        %v1236 = vlaneseq
        %v1237 = vshrl.u32 %v1236, 7
        %v1238 = vsub.s32 6, %v1237
        %v1239 = vrot.slane %v398, %v1238
        %v1240 = vmul.f32 %v1186, %v1239
        %v1241 = vmul.f32 %v1189, %v1239
        %v1242 = vmul.f32 %v1192, %v1239
        %v1243 = vmul.f32 %v1195, %v1239
        %v1244 = vmul.f32 %v1198, %v1239
        %v1245 = vmul.f32 %v1201, %v1239
        %v1246 = vmul.f32 %v1204, %v1239
        %v1247 = vmul.f32 %v1207, %v1239
        %v1248 = vadd.f32 %v1228, %v1240
        %v1249 = vadd.f32 %v1229, %v1241
        %v1250 = vadd.f32 %v1230, %v1242
        %v1251 = vadd.f32 %v1231, %v1243
        %v1252 = vadd.f32 %v1232, %v1244
        %v1253 = vadd.f32 %v1233, %v1245
        %v1254 = vadd.f32 %v1234, %v1246
        %v1255 = vadd.f32 %v1235, %v1247
        %v1256 = vlaneseq
        %v1257 = vshrl.u32 %v1256, 7
        %v1258 = vsub.s32 1, %v1257
        %v1259 = vrot.slane %v399, %v1258
        %v1260 = vmul.f32 %v1189, %v1259
        %v1261 = vmul.f32 %v1192, %v1259
        %v1262 = vmul.f32 %v1195, %v1259
        %v1263 = vmul.f32 %v1198, %v1259
        %v1264 = vmul.f32 %v1201, %v1259
        %v1265 = vmul.f32 %v1204, %v1259
        %v1266 = vmul.f32 %v1207, %v1259
        %v1267 = vmul.f32 %v1259, 0.0
        %v1268 = vadd.f32 %v1248, %v1260
        %v1269 = vadd.f32 %v1249, %v1261
        %v1270 = vadd.f32 %v1250, %v1262
        %v1271 = vadd.f32 %v1251, %v1263
        %v1272 = vadd.f32 %v1252, %v1264
        %v1273 = vadd.f32 %v1253, %v1265
        %v1274 = vadd.f32 %v1254, %v1266
        %v1275 = vadd.f32 %v1255, %v1267
        %v1276 = vrot.slane %v1092, 2
        %v1277 = vrot.slane %v1100, 2
        %v1278 = vsel %vm658, %v1276, %v1277
        %v1279 = vrot.slane %v1093, 2
        %v1280 = vrot.slane %v1101, 2
        %v1281 = vsel %vm658, %v1279, %v1280
        %v1282 = vrot.slane %v1094, 2
        %v1283 = vrot.slane %v1102, 2
        %v1284 = vsel %vm658, %v1282, %v1283
        %v1285 = vrot.slane %v1095, 2
        %v1286 = vrot.slane %v1103, 2
        %v1287 = vsel %vm658, %v1285, %v1286
        %v1288 = vrot.slane %v1096, 2
        %v1289 = vrot.slane %v1104, 2
        %v1290 = vsel %vm658, %v1288, %v1289
        %v1291 = vrot.slane %v1097, 2
        %v1292 = vrot.slane %v1105, 2
        %v1293 = vsel %vm658, %v1291, %v1292
        %v1294 = vrot.slane %v1098, 2
        %v1295 = vrot.slane %v1106, 2
        %v1296 = vsel %vm658, %v1294, %v1295
        %v1297 = vrot.slane %v1099, 2
        %v1298 = vrot.slane %v1107, 2
        %v1299 = vsel %vm658, %v1297, %v1298
        %v1308 = vlaneseq
        %v1309 = vshrl.u32 %v1308, 7
        %v1310 = vsub.s32 4, %v1309
        %v1311 = vrot.slane %v398, %v1310
        %v1312 = vmul.f32 %v1311, 0.0
        %v1313 = vmul.f32 %v1278, %v1311
        %v1314 = vmul.f32 %v1281, %v1311
        %v1315 = vmul.f32 %v1284, %v1311
        %v1316 = vmul.f32 %v1287, %v1311
        %v1317 = vmul.f32 %v1290, %v1311
        %v1318 = vmul.f32 %v1293, %v1311
        %v1319 = vmul.f32 %v1296, %v1311
        %v1320 = vadd.f32 %v1268, %v1312
        %v1321 = vadd.f32 %v1269, %v1313
        %v1322 = vadd.f32 %v1270, %v1314
        %v1323 = vadd.f32 %v1271, %v1315
        %v1324 = vadd.f32 %v1272, %v1316
        %v1325 = vadd.f32 %v1273, %v1317
        %v1326 = vadd.f32 %v1274, %v1318
        %v1327 = vadd.f32 %v1275, %v1319
        %v1328 = vlaneseq
        %v1329 = vshrl.u32 %v1328, 7
        %v1330 = vsub.s32 7, %v1329
        %v1331 = vrot.slane %v398, %v1330
        %v1332 = vmul.f32 %v1278, %v1331
        %v1333 = vmul.f32 %v1281, %v1331
        %v1334 = vmul.f32 %v1284, %v1331
        %v1335 = vmul.f32 %v1287, %v1331
        %v1336 = vmul.f32 %v1290, %v1331
        %v1337 = vmul.f32 %v1293, %v1331
        %v1338 = vmul.f32 %v1296, %v1331
        %v1339 = vmul.f32 %v1299, %v1331
        %v1340 = vadd.f32 %v1320, %v1332
        %v1341 = vadd.f32 %v1321, %v1333
        %v1342 = vadd.f32 %v1322, %v1334
        %v1343 = vadd.f32 %v1323, %v1335
        %v1344 = vadd.f32 %v1324, %v1336
        %v1345 = vadd.f32 %v1325, %v1337
        %v1346 = vadd.f32 %v1326, %v1338
        %v1347 = vadd.f32 %v1327, %v1339
        %v1348 = vlaneseq
        %v1349 = vshrl.u32 %v1348, 7
        %v1350 = vsub.s32 2, %v1349
        %v1351 = vrot.slane %v399, %v1350
        %v1352 = vmul.f32 %v1281, %v1351
        %v1353 = vmul.f32 %v1284, %v1351
        %v1354 = vmul.f32 %v1287, %v1351
        %v1355 = vmul.f32 %v1290, %v1351
        %v1356 = vmul.f32 %v1293, %v1351
        %v1357 = vmul.f32 %v1296, %v1351
        %v1358 = vmul.f32 %v1299, %v1351
        %v1359 = vmul.f32 %v1351, 0.0
        %v1360 = vadd.f32 %v1340, %v1352
        %v1361 = vadd.f32 %v1341, %v1353
        %v1362 = vadd.f32 %v1342, %v1354
        %v1363 = vadd.f32 %v1343, %v1355
        %v1364 = vadd.f32 %v1344, %v1356
        %v1365 = vadd.f32 %v1345, %v1357
        %v1366 = vadd.f32 %v1346, %v1358
        %v1367 = vadd.f32 %v1347, %v1359
        %vm1368 = vcmask 261120
        %1369 = vst.msk [vmem:[%s385] sm:$0xff] %vm1368, %v1360
        %1370 = vst.msk [vmem:[%s385 + $0x8] sm:$0xff] %vm1368, %v1361
        %1371 = vst.msk [vmem:[%s385 + $0x10] sm:$0xff] %vm1368, %v1362
        %1372 = vst.msk [vmem:[%s385 + $0x18] sm:$0xff] %vm1368, %v1363
        %1373 = vst.msk [vmem:[%s385 + $0x20] sm:$0xff] %vm1368, %v1364
        %1374 = vst.msk [vmem:[%s385 + $0x28] sm:$0xff] %vm1368, %v1365
        %1375 = vst.msk [vmem:[%s385 + $0x30] sm:$0xff] %vm1368, %v1366
        %1376 = vst.msk [vmem:[%s385 + $0x38] sm:$0xff] %vm1368, %v1367
        %v1377 = vld [vmem:[%s327] sm:$0xff]
        %v1378 = vld [vmem:[%s327 + $0x8] sm:$0xff]
        %v1379 = vld [vmem:[%s327 + $0x10] sm:$0xff]
        %v1380 = vld [vmem:[%s327 + $0x18] sm:$0xff]
        %v1381 = vld [vmem:[%s327 + $0x20] sm:$0xff]
        %v1382 = vld [vmem:[%s327 + $0x28] sm:$0xff]
        %v1383 = vld [vmem:[%s327 + $0x30] sm:$0xff]
        %v1384 = vld [vmem:[%s327 + $0x38] sm:$0xff]
        %v1393 = vrot.slane %v1377, 7
        %v1394 = vrot.slane %v1378, 7
        %v1395 = vrot.slane %v1379, 7
        %v1396 = vrot.slane %v1380, 7
        %v1397 = vrot.slane %v1381, 7
        %v1398 = vrot.slane %v1382, 7
        %v1399 = vrot.slane %v1383, 7
        %v1400 = vrot.slane %v1384, 7
        %v1409 = vsel %vm472, 0.0, %v1393
        %v1410 = vsel %vm472, 0.0, %v1394
        %v1411 = vsel %vm472, 0.0, %v1395
        %v1412 = vsel %vm472, 0.0, %v1396
        %v1413 = vsel %vm472, 0.0, %v1397
        %v1414 = vsel %vm472, 0.0, %v1398
        %v1415 = vsel %vm472, 0.0, %v1399
        %v1416 = vsel %vm472, 0.0, %v1400
        %v1417 = vsel %vm472, %v1393, 0.0
        %v1418 = vsel %vm472, %v1394, 0.0
        %v1419 = vsel %vm472, %v1395, 0.0
        %v1420 = vsel %vm472, %v1396, 0.0
        %v1421 = vsel %vm472, %v1397, 0.0
        %v1422 = vsel %vm472, %v1398, 0.0
        %v1423 = vsel %vm472, %v1399, 0.0
        %v1424 = vsel %vm472, %v1400, 0.0
        %v1425 = vmul.f32 %v1409, %v492
        %v1426 = vmul.f32 %v1410, %v492
        %v1427 = vmul.f32 %v1411, %v492
        %v1428 = vmul.f32 %v1412, %v492
        %v1429 = vmul.f32 %v1413, %v492
        %v1430 = vmul.f32 %v1414, %v492
        %v1431 = vmul.f32 %v1415, %v492
        %v1432 = vadd.f32 %v405, %v1425
        %v1433 = vadd.f32 %v405, %v1426
        %v1434 = vadd.f32 %v405, %v1427
        %v1435 = vadd.f32 %v405, %v1428
        %v1436 = vadd.f32 %v405, %v1429
        %v1437 = vadd.f32 %v405, %v1430
        %v1438 = vadd.f32 %v405, %v1431
        %v1439 = vmul.f32 %v1409, %v512
        %v1440 = vmul.f32 %v1410, %v512
        %v1441 = vmul.f32 %v1411, %v512
        %v1442 = vmul.f32 %v1412, %v512
        %v1443 = vmul.f32 %v1413, %v512
        %v1444 = vmul.f32 %v1414, %v512
        %v1445 = vmul.f32 %v1415, %v512
        %v1446 = vmul.f32 %v1416, %v512
        %v1447 = vadd.f32 %v501, %v1439
        %v1448 = vadd.f32 %v1432, %v1440
        %v1449 = vadd.f32 %v1433, %v1441
        %v1450 = vadd.f32 %v1434, %v1442
        %v1451 = vadd.f32 %v1435, %v1443
        %v1452 = vadd.f32 %v1436, %v1444
        %v1453 = vadd.f32 %v1437, %v1445
        %v1454 = vadd.f32 %v1438, %v1446
        %v1455 = vmul.f32 %v1410, %v532
        %v1456 = vmul.f32 %v1411, %v532
        %v1457 = vmul.f32 %v1412, %v532
        %v1458 = vmul.f32 %v1413, %v532
        %v1459 = vmul.f32 %v1414, %v532
        %v1460 = vmul.f32 %v1415, %v532
        %v1461 = vmul.f32 %v1416, %v532
        %v1462 = vadd.f32 %v1447, %v1455
        %v1463 = vadd.f32 %v1448, %v1456
        %v1464 = vadd.f32 %v1449, %v1457
        %v1465 = vadd.f32 %v1450, %v1458
        %v1466 = vadd.f32 %v1451, %v1459
        %v1467 = vadd.f32 %v1452, %v1460
        %v1468 = vadd.f32 %v1453, %v1461
        %v1469 = vadd.f32 %v1454, %v540
        %v1486 = vrot.slane %v1409, 1
        %v1487 = vrot.slane %v1417, 1
        %v1488 = vsel %vm565, %v1486, %v1487
        %v1489 = vrot.slane %v1410, 1
        %v1490 = vrot.slane %v1418, 1
        %v1491 = vsel %vm565, %v1489, %v1490
        %v1492 = vrot.slane %v1411, 1
        %v1493 = vrot.slane %v1419, 1
        %v1494 = vsel %vm565, %v1492, %v1493
        %v1495 = vrot.slane %v1412, 1
        %v1496 = vrot.slane %v1420, 1
        %v1497 = vsel %vm565, %v1495, %v1496
        %v1498 = vrot.slane %v1413, 1
        %v1499 = vrot.slane %v1421, 1
        %v1500 = vsel %vm565, %v1498, %v1499
        %v1501 = vrot.slane %v1414, 1
        %v1502 = vrot.slane %v1422, 1
        %v1503 = vsel %vm565, %v1501, %v1502
        %v1504 = vrot.slane %v1415, 1
        %v1505 = vrot.slane %v1423, 1
        %v1506 = vsel %vm565, %v1504, %v1505
        %v1507 = vrot.slane %v1416, 1
        %v1508 = vrot.slane %v1424, 1
        %v1509 = vsel %vm565, %v1507, %v1508
        %v1518 = vmul.f32 %v1488, %v601
        %v1519 = vmul.f32 %v1491, %v601
        %v1520 = vmul.f32 %v1494, %v601
        %v1521 = vmul.f32 %v1497, %v601
        %v1522 = vmul.f32 %v1500, %v601
        %v1523 = vmul.f32 %v1503, %v601
        %v1524 = vmul.f32 %v1506, %v601
        %v1525 = vadd.f32 %v1462, %v602
        %v1526 = vadd.f32 %v1463, %v1518
        %v1527 = vadd.f32 %v1464, %v1519
        %v1528 = vadd.f32 %v1465, %v1520
        %v1529 = vadd.f32 %v1466, %v1521
        %v1530 = vadd.f32 %v1467, %v1522
        %v1531 = vadd.f32 %v1468, %v1523
        %v1532 = vadd.f32 %v1469, %v1524
        %v1533 = vmul.f32 %v1488, %v621
        %v1534 = vmul.f32 %v1491, %v621
        %v1535 = vmul.f32 %v1494, %v621
        %v1536 = vmul.f32 %v1497, %v621
        %v1537 = vmul.f32 %v1500, %v621
        %v1538 = vmul.f32 %v1503, %v621
        %v1539 = vmul.f32 %v1506, %v621
        %v1540 = vmul.f32 %v1509, %v621
        %v1541 = vadd.f32 %v1525, %v1533
        %v1542 = vadd.f32 %v1526, %v1534
        %v1543 = vadd.f32 %v1527, %v1535
        %v1544 = vadd.f32 %v1528, %v1536
        %v1545 = vadd.f32 %v1529, %v1537
        %v1546 = vadd.f32 %v1530, %v1538
        %v1547 = vadd.f32 %v1531, %v1539
        %v1548 = vadd.f32 %v1532, %v1540
        %v1549 = vmul.f32 %v1491, %v641
        %v1550 = vmul.f32 %v1494, %v641
        %v1551 = vmul.f32 %v1497, %v641
        %v1552 = vmul.f32 %v1500, %v641
        %v1553 = vmul.f32 %v1503, %v641
        %v1554 = vmul.f32 %v1506, %v641
        %v1555 = vmul.f32 %v1509, %v641
        %v1556 = vadd.f32 %v1541, %v1549
        %v1557 = vadd.f32 %v1542, %v1550
        %v1558 = vadd.f32 %v1543, %v1551
        %v1559 = vadd.f32 %v1544, %v1552
        %v1560 = vadd.f32 %v1545, %v1553
        %v1561 = vadd.f32 %v1546, %v1554
        %v1562 = vadd.f32 %v1547, %v1555
        %v1563 = vadd.f32 %v1548, %v649
        %v1564 = vrot.slane %v1409, 2
        %v1565 = vrot.slane %v1417, 2
        %v1566 = vsel %vm658, %v1564, %v1565
        %v1567 = vrot.slane %v1410, 2
        %v1568 = vrot.slane %v1418, 2
        %v1569 = vsel %vm658, %v1567, %v1568
        %v1570 = vrot.slane %v1411, 2
        %v1571 = vrot.slane %v1419, 2
        %v1572 = vsel %vm658, %v1570, %v1571
        %v1573 = vrot.slane %v1412, 2
        %v1574 = vrot.slane %v1420, 2
        %v1575 = vsel %vm658, %v1573, %v1574
        %v1576 = vrot.slane %v1413, 2
        %v1577 = vrot.slane %v1421, 2
        %v1578 = vsel %vm658, %v1576, %v1577
        %v1579 = vrot.slane %v1414, 2
        %v1580 = vrot.slane %v1422, 2
        %v1581 = vsel %vm658, %v1579, %v1580
        %v1582 = vrot.slane %v1415, 2
        %v1583 = vrot.slane %v1423, 2
        %v1584 = vsel %vm658, %v1582, %v1583
        %v1585 = vrot.slane %v1416, 2
        %v1586 = vrot.slane %v1424, 2
        %v1587 = vsel %vm658, %v1585, %v1586
        %v1596 = vmul.f32 %v1566, %v694
        %v1597 = vmul.f32 %v1569, %v694
        %v1598 = vmul.f32 %v1572, %v694
        %v1599 = vmul.f32 %v1575, %v694
        %v1600 = vmul.f32 %v1578, %v694
        %v1601 = vmul.f32 %v1581, %v694
        %v1602 = vmul.f32 %v1584, %v694
        %v1603 = vadd.f32 %v1556, %v695
        %v1604 = vadd.f32 %v1557, %v1596
        %v1605 = vadd.f32 %v1558, %v1597
        %v1606 = vadd.f32 %v1559, %v1598
        %v1607 = vadd.f32 %v1560, %v1599
        %v1608 = vadd.f32 %v1561, %v1600
        %v1609 = vadd.f32 %v1562, %v1601
        %v1610 = vadd.f32 %v1563, %v1602
        %v1611 = vmul.f32 %v1566, %v714
        %v1612 = vmul.f32 %v1569, %v714
        %v1613 = vmul.f32 %v1572, %v714
        %v1614 = vmul.f32 %v1575, %v714
        %v1615 = vmul.f32 %v1578, %v714
        %v1616 = vmul.f32 %v1581, %v714
        %v1617 = vmul.f32 %v1584, %v714
        %v1618 = vmul.f32 %v1587, %v714
        %v1619 = vadd.f32 %v1603, %v1611
        %v1620 = vadd.f32 %v1604, %v1612
        %v1621 = vadd.f32 %v1605, %v1613
        %v1622 = vadd.f32 %v1606, %v1614
        %v1623 = vadd.f32 %v1607, %v1615
        %v1624 = vadd.f32 %v1608, %v1616
        %v1625 = vadd.f32 %v1609, %v1617
        %v1626 = vadd.f32 %v1610, %v1618
        %v1627 = vmul.f32 %v1569, %v734
        %v1628 = vmul.f32 %v1572, %v734
        %v1629 = vmul.f32 %v1575, %v734
        %v1630 = vmul.f32 %v1578, %v734
        %v1631 = vmul.f32 %v1581, %v734
        %v1632 = vmul.f32 %v1584, %v734
        %v1633 = vmul.f32 %v1587, %v734
        %v1634 = vadd.f32 %v1619, %v1627
        %v1635 = vadd.f32 %v1620, %v1628
        %v1636 = vadd.f32 %v1621, %v1629
        %v1637 = vadd.f32 %v1622, %v1630
        %v1638 = vadd.f32 %v1623, %v1631
        %v1639 = vadd.f32 %v1624, %v1632
        %v1640 = vadd.f32 %v1625, %v1633
        %v1641 = vadd.f32 %v1626, %v742
        %v1642 = vld [vmem:[%s1059] sm:$0xff]
        %v1643 = vld [vmem:[%s1059 + $0x8] sm:$0xff]
        %v1644 = vld [vmem:[%s1059 + $0x10] sm:$0xff]
        %v1645 = vld [vmem:[%s1059 + $0x18] sm:$0xff]
        %v1646 = vld [vmem:[%s1059 + $0x20] sm:$0xff]
        %v1647 = vld [vmem:[%s1059 + $0x28] sm:$0xff]
        %v1648 = vld [vmem:[%s1059 + $0x30] sm:$0xff]
        %v1649 = vld [vmem:[%s1059 + $0x38] sm:$0xff]
        %v1658 = vrot.slane %v1642, 7
        %v1659 = vrot.slane %v1643, 7
        %v1660 = vrot.slane %v1644, 7
        %v1661 = vrot.slane %v1645, 7
        %v1662 = vrot.slane %v1646, 7
        %v1663 = vrot.slane %v1647, 7
        %v1664 = vrot.slane %v1648, 7
        %v1665 = vrot.slane %v1649, 7
        %v1674 = vsel %vm472, 0.0, %v1658
        %v1675 = vsel %vm472, 0.0, %v1659
        %v1676 = vsel %vm472, 0.0, %v1660
        %v1677 = vsel %vm472, 0.0, %v1661
        %v1678 = vsel %vm472, 0.0, %v1662
        %v1679 = vsel %vm472, 0.0, %v1663
        %v1680 = vsel %vm472, 0.0, %v1664
        %v1681 = vsel %vm472, 0.0, %v1665
        %v1682 = vsel %vm472, %v1658, 0.0
        %v1683 = vsel %vm472, %v1659, 0.0
        %v1684 = vsel %vm472, %v1660, 0.0
        %v1685 = vsel %vm472, %v1661, 0.0
        %v1686 = vsel %vm472, %v1662, 0.0
        %v1687 = vsel %vm472, %v1663, 0.0
        %v1688 = vsel %vm472, %v1664, 0.0
        %v1689 = vsel %vm472, %v1665, 0.0
        %v1690 = vmul.f32 %v1674, %v802
        %v1691 = vmul.f32 %v1675, %v802
        %v1692 = vmul.f32 %v1676, %v802
        %v1693 = vmul.f32 %v1677, %v802
        %v1694 = vmul.f32 %v1678, %v802
        %v1695 = vmul.f32 %v1679, %v802
        %v1696 = vmul.f32 %v1680, %v802
        %v1697 = vadd.f32 %v1634, %v803
        %v1698 = vadd.f32 %v1635, %v1690
        %v1699 = vadd.f32 %v1636, %v1691
        %v1700 = vadd.f32 %v1637, %v1692
        %v1701 = vadd.f32 %v1638, %v1693
        %v1702 = vadd.f32 %v1639, %v1694
        %v1703 = vadd.f32 %v1640, %v1695
        %v1704 = vadd.f32 %v1641, %v1696
        %v1705 = vmul.f32 %v1674, %v822
        %v1706 = vmul.f32 %v1675, %v822
        %v1707 = vmul.f32 %v1676, %v822
        %v1708 = vmul.f32 %v1677, %v822
        %v1709 = vmul.f32 %v1678, %v822
        %v1710 = vmul.f32 %v1679, %v822
        %v1711 = vmul.f32 %v1680, %v822
        %v1712 = vmul.f32 %v1681, %v822
        %v1713 = vadd.f32 %v1697, %v1705
        %v1714 = vadd.f32 %v1698, %v1706
        %v1715 = vadd.f32 %v1699, %v1707
        %v1716 = vadd.f32 %v1700, %v1708
        %v1717 = vadd.f32 %v1701, %v1709
        %v1718 = vadd.f32 %v1702, %v1710
        %v1719 = vadd.f32 %v1703, %v1711
        %v1720 = vadd.f32 %v1704, %v1712
        %v1721 = vmul.f32 %v1675, %v842
        %v1722 = vmul.f32 %v1676, %v842
        %v1723 = vmul.f32 %v1677, %v842
        %v1724 = vmul.f32 %v1678, %v842
        %v1725 = vmul.f32 %v1679, %v842
        %v1726 = vmul.f32 %v1680, %v842
        %v1727 = vmul.f32 %v1681, %v842
        %v1728 = vadd.f32 %v1713, %v1721
        %v1729 = vadd.f32 %v1714, %v1722
        %v1730 = vadd.f32 %v1715, %v1723
        %v1731 = vadd.f32 %v1716, %v1724
        %v1732 = vadd.f32 %v1717, %v1725
        %v1733 = vadd.f32 %v1718, %v1726
        %v1734 = vadd.f32 %v1719, %v1727
        %v1735 = vadd.f32 %v1720, %v850
        %v1752 = vrot.slane %v1674, 1
        %v1753 = vrot.slane %v1682, 1
        %v1754 = vsel %vm565, %v1752, %v1753
        %v1755 = vrot.slane %v1675, 1
        %v1756 = vrot.slane %v1683, 1
        %v1757 = vsel %vm565, %v1755, %v1756
        %v1758 = vrot.slane %v1676, 1
        %v1759 = vrot.slane %v1684, 1
        %v1760 = vsel %vm565, %v1758, %v1759
        %v1761 = vrot.slane %v1677, 1
        %v1762 = vrot.slane %v1685, 1
        %v1763 = vsel %vm565, %v1761, %v1762
        %v1764 = vrot.slane %v1678, 1
        %v1765 = vrot.slane %v1686, 1
        %v1766 = vsel %vm565, %v1764, %v1765
        %v1767 = vrot.slane %v1679, 1
        %v1768 = vrot.slane %v1687, 1
        %v1769 = vsel %vm565, %v1767, %v1768
        %v1770 = vrot.slane %v1680, 1
        %v1771 = vrot.slane %v1688, 1
        %v1772 = vsel %vm565, %v1770, %v1771
        %v1773 = vrot.slane %v1681, 1
        %v1774 = vrot.slane %v1689, 1
        %v1775 = vsel %vm565, %v1773, %v1774
        %v1784 = vmul.f32 %v1754, %v910
        %v1785 = vmul.f32 %v1757, %v910
        %v1786 = vmul.f32 %v1760, %v910
        %v1787 = vmul.f32 %v1763, %v910
        %v1788 = vmul.f32 %v1766, %v910
        %v1789 = vmul.f32 %v1769, %v910
        %v1790 = vmul.f32 %v1772, %v910
        %v1791 = vadd.f32 %v1728, %v911
        %v1792 = vadd.f32 %v1729, %v1784
        %v1793 = vadd.f32 %v1730, %v1785
        %v1794 = vadd.f32 %v1731, %v1786
        %v1795 = vadd.f32 %v1732, %v1787
        %v1796 = vadd.f32 %v1733, %v1788
        %v1797 = vadd.f32 %v1734, %v1789
        %v1798 = vadd.f32 %v1735, %v1790
        %v1799 = vmul.f32 %v1754, %v930
        %v1800 = vmul.f32 %v1757, %v930
        %v1801 = vmul.f32 %v1760, %v930
        %v1802 = vmul.f32 %v1763, %v930
        %v1803 = vmul.f32 %v1766, %v930
        %v1804 = vmul.f32 %v1769, %v930
        %v1805 = vmul.f32 %v1772, %v930
        %v1806 = vmul.f32 %v1775, %v930
        %v1807 = vadd.f32 %v1791, %v1799
        %v1808 = vadd.f32 %v1792, %v1800
        %v1809 = vadd.f32 %v1793, %v1801
        %v1810 = vadd.f32 %v1794, %v1802
        %v1811 = vadd.f32 %v1795, %v1803
        %v1812 = vadd.f32 %v1796, %v1804
        %v1813 = vadd.f32 %v1797, %v1805
        %v1814 = vadd.f32 %v1798, %v1806
        %v1815 = vmul.f32 %v1757, %v950
        %v1816 = vmul.f32 %v1760, %v950
        %v1817 = vmul.f32 %v1763, %v950
        %v1818 = vmul.f32 %v1766, %v950
        %v1819 = vmul.f32 %v1769, %v950
        %v1820 = vmul.f32 %v1772, %v950
        %v1821 = vmul.f32 %v1775, %v950
        %v1822 = vadd.f32 %v1807, %v1815
        %v1823 = vadd.f32 %v1808, %v1816
        %v1824 = vadd.f32 %v1809, %v1817
        %v1825 = vadd.f32 %v1810, %v1818
        %v1826 = vadd.f32 %v1811, %v1819
        %v1827 = vadd.f32 %v1812, %v1820
        %v1828 = vadd.f32 %v1813, %v1821
        %v1829 = vadd.f32 %v1814, %v958
        %v1830 = vrot.slane %v1674, 2
        %v1831 = vrot.slane %v1682, 2
        %v1832 = vsel %vm658, %v1830, %v1831
        %v1833 = vrot.slane %v1675, 2
        %v1834 = vrot.slane %v1683, 2
        %v1835 = vsel %vm658, %v1833, %v1834
        %v1836 = vrot.slane %v1676, 2
        %v1837 = vrot.slane %v1684, 2
        %v1838 = vsel %vm658, %v1836, %v1837
        %v1839 = vrot.slane %v1677, 2
        %v1840 = vrot.slane %v1685, 2
        %v1841 = vsel %vm658, %v1839, %v1840
        %v1842 = vrot.slane %v1678, 2
        %v1843 = vrot.slane %v1686, 2
        %v1844 = vsel %vm658, %v1842, %v1843
        %v1845 = vrot.slane %v1679, 2
        %v1846 = vrot.slane %v1687, 2
        %v1847 = vsel %vm658, %v1845, %v1846
        %v1848 = vrot.slane %v1680, 2
        %v1849 = vrot.slane %v1688, 2
        %v1850 = vsel %vm658, %v1848, %v1849
        %v1851 = vrot.slane %v1681, 2
        %v1852 = vrot.slane %v1689, 2
        %v1853 = vsel %vm658, %v1851, %v1852
        %v1862 = vmul.f32 %v1832, %v1002
        %v1863 = vmul.f32 %v1835, %v1002
        %v1864 = vmul.f32 %v1838, %v1002
        %v1865 = vmul.f32 %v1841, %v1002
        %v1866 = vmul.f32 %v1844, %v1002
        %v1867 = vmul.f32 %v1847, %v1002
        %v1868 = vmul.f32 %v1850, %v1002
        %v1869 = vadd.f32 %v1822, %v1003
        %v1870 = vadd.f32 %v1823, %v1862
        %v1871 = vadd.f32 %v1824, %v1863
        %v1872 = vadd.f32 %v1825, %v1864
        %v1873 = vadd.f32 %v1826, %v1865
        %v1874 = vadd.f32 %v1827, %v1866
        %v1875 = vadd.f32 %v1828, %v1867
        %v1876 = vadd.f32 %v1829, %v1868
        %v1877 = vmul.f32 %v1832, %v1022
        %v1878 = vmul.f32 %v1835, %v1022
        %v1879 = vmul.f32 %v1838, %v1022
        %v1880 = vmul.f32 %v1841, %v1022
        %v1881 = vmul.f32 %v1844, %v1022
        %v1882 = vmul.f32 %v1847, %v1022
        %v1883 = vmul.f32 %v1850, %v1022
        %v1884 = vmul.f32 %v1853, %v1022
        %v1885 = vadd.f32 %v1869, %v1877
        %v1886 = vadd.f32 %v1870, %v1878
        %v1887 = vadd.f32 %v1871, %v1879
        %v1888 = vadd.f32 %v1872, %v1880
        %v1889 = vadd.f32 %v1873, %v1881
        %v1890 = vadd.f32 %v1874, %v1882
        %v1891 = vadd.f32 %v1875, %v1883
        %v1892 = vadd.f32 %v1876, %v1884
        %v1893 = vmul.f32 %v1835, %v1042
        %v1894 = vmul.f32 %v1838, %v1042
        %v1895 = vmul.f32 %v1841, %v1042
        %v1896 = vmul.f32 %v1844, %v1042
        %v1897 = vmul.f32 %v1847, %v1042
        %v1898 = vmul.f32 %v1850, %v1042
        %v1899 = vmul.f32 %v1853, %v1042
        %v1900 = vadd.f32 %v1885, %v1893
        %v1901 = vadd.f32 %v1886, %v1894
        %v1902 = vadd.f32 %v1887, %v1895
        %v1903 = vadd.f32 %v1888, %v1896
        %v1904 = vadd.f32 %v1889, %v1897
        %v1905 = vadd.f32 %v1890, %v1898
        %v1906 = vadd.f32 %v1891, %v1899
        %v1907 = vadd.f32 %v1892, %v1050
        %s1908 = scalar_lea.vmem %s327, 128 [#allocation2]
        %v1909 = vld [vmem:[%s1908] sm:$0xff]
        %v1910 = vld [vmem:[%s1908 + $0x8] sm:$0xff]
        %v1911 = vld [vmem:[%s1908 + $0x10] sm:$0xff]
        %v1912 = vld [vmem:[%s1908 + $0x18] sm:$0xff]
        %v1913 = vld [vmem:[%s1908 + $0x20] sm:$0xff]
        %v1914 = vld [vmem:[%s1908 + $0x28] sm:$0xff]
        %v1915 = vld [vmem:[%s1908 + $0x30] sm:$0xff]
        %v1916 = vld [vmem:[%s1908 + $0x38] sm:$0xff]
        %v1925 = vrot.slane %v1909, 7
        %v1926 = vrot.slane %v1910, 7
        %v1927 = vrot.slane %v1911, 7
        %v1928 = vrot.slane %v1912, 7
        %v1929 = vrot.slane %v1913, 7
        %v1930 = vrot.slane %v1914, 7
        %v1931 = vrot.slane %v1915, 7
        %v1932 = vrot.slane %v1916, 7
        %v1941 = vsel %vm472, 0.0, %v1925
        %v1942 = vsel %vm472, 0.0, %v1926
        %v1943 = vsel %vm472, 0.0, %v1927
        %v1944 = vsel %vm472, 0.0, %v1928
        %v1945 = vsel %vm472, 0.0, %v1929
        %v1946 = vsel %vm472, 0.0, %v1930
        %v1947 = vsel %vm472, 0.0, %v1931
        %v1948 = vsel %vm472, 0.0, %v1932
        %v1949 = vsel %vm472, %v1925, 0.0
        %v1950 = vsel %vm472, %v1926, 0.0
        %v1951 = vsel %vm472, %v1927, 0.0
        %v1952 = vsel %vm472, %v1928, 0.0
        %v1953 = vsel %vm472, %v1929, 0.0
        %v1954 = vsel %vm472, %v1930, 0.0
        %v1955 = vsel %vm472, %v1931, 0.0
        %v1956 = vsel %vm472, %v1932, 0.0
        %v1957 = vmul.f32 %v1941, %v1111
        %v1958 = vmul.f32 %v1942, %v1111
        %v1959 = vmul.f32 %v1943, %v1111
        %v1960 = vmul.f32 %v1944, %v1111
        %v1961 = vmul.f32 %v1945, %v1111
        %v1962 = vmul.f32 %v1946, %v1111
        %v1963 = vmul.f32 %v1947, %v1111
        %v1964 = vadd.f32 %v1900, %v1112
        %v1965 = vadd.f32 %v1901, %v1957
        %v1966 = vadd.f32 %v1902, %v1958
        %v1967 = vadd.f32 %v1903, %v1959
        %v1968 = vadd.f32 %v1904, %v1960
        %v1969 = vadd.f32 %v1905, %v1961
        %v1970 = vadd.f32 %v1906, %v1962
        %v1971 = vadd.f32 %v1907, %v1963
        %v1972 = vmul.f32 %v1941, %v1131
        %v1973 = vmul.f32 %v1942, %v1131
        %v1974 = vmul.f32 %v1943, %v1131
        %v1975 = vmul.f32 %v1944, %v1131
        %v1976 = vmul.f32 %v1945, %v1131
        %v1977 = vmul.f32 %v1946, %v1131
        %v1978 = vmul.f32 %v1947, %v1131
        %v1979 = vmul.f32 %v1948, %v1131
        %v1980 = vadd.f32 %v1964, %v1972
        %v1981 = vadd.f32 %v1965, %v1973
        %v1982 = vadd.f32 %v1966, %v1974
        %v1983 = vadd.f32 %v1967, %v1975
        %v1984 = vadd.f32 %v1968, %v1976
        %v1985 = vadd.f32 %v1969, %v1977
        %v1986 = vadd.f32 %v1970, %v1978
        %v1987 = vadd.f32 %v1971, %v1979
        %v1988 = vmul.f32 %v1942, %v1151
        %v1989 = vmul.f32 %v1943, %v1151
        %v1990 = vmul.f32 %v1944, %v1151
        %v1991 = vmul.f32 %v1945, %v1151
        %v1992 = vmul.f32 %v1946, %v1151
        %v1993 = vmul.f32 %v1947, %v1151
        %v1994 = vmul.f32 %v1948, %v1151
        %v1995 = vadd.f32 %v1980, %v1988
        %v1996 = vadd.f32 %v1981, %v1989
        %v1997 = vadd.f32 %v1982, %v1990
        %v1998 = vadd.f32 %v1983, %v1991
        %v1999 = vadd.f32 %v1984, %v1992
        %v2000 = vadd.f32 %v1985, %v1993
        %v2001 = vadd.f32 %v1986, %v1994
        %v2002 = vadd.f32 %v1987, %v1159
        %v2019 = vrot.slane %v1941, 1
        %v2020 = vrot.slane %v1949, 1
        %v2021 = vsel %vm565, %v2019, %v2020
        %v2022 = vrot.slane %v1942, 1
        %v2023 = vrot.slane %v1950, 1
        %v2024 = vsel %vm565, %v2022, %v2023
        %v2025 = vrot.slane %v1943, 1
        %v2026 = vrot.slane %v1951, 1
        %v2027 = vsel %vm565, %v2025, %v2026
        %v2028 = vrot.slane %v1944, 1
        %v2029 = vrot.slane %v1952, 1
        %v2030 = vsel %vm565, %v2028, %v2029
        %v2031 = vrot.slane %v1945, 1
        %v2032 = vrot.slane %v1953, 1
        %v2033 = vsel %vm565, %v2031, %v2032
        %v2034 = vrot.slane %v1946, 1
        %v2035 = vrot.slane %v1954, 1
        %v2036 = vsel %vm565, %v2034, %v2035
        %v2037 = vrot.slane %v1947, 1
        %v2038 = vrot.slane %v1955, 1
        %v2039 = vsel %vm565, %v2037, %v2038
        %v2040 = vrot.slane %v1948, 1
        %v2041 = vrot.slane %v1956, 1
        %v2042 = vsel %vm565, %v2040, %v2041
        %v2051 = vmul.f32 %v2021, %v1219
        %v2052 = vmul.f32 %v2024, %v1219
        %v2053 = vmul.f32 %v2027, %v1219
        %v2054 = vmul.f32 %v2030, %v1219
        %v2055 = vmul.f32 %v2033, %v1219
        %v2056 = vmul.f32 %v2036, %v1219
        %v2057 = vmul.f32 %v2039, %v1219
        %v2058 = vadd.f32 %v1995, %v1220
        %v2059 = vadd.f32 %v1996, %v2051
        %v2060 = vadd.f32 %v1997, %v2052
        %v2061 = vadd.f32 %v1998, %v2053
        %v2062 = vadd.f32 %v1999, %v2054
        %v2063 = vadd.f32 %v2000, %v2055
        %v2064 = vadd.f32 %v2001, %v2056
        %v2065 = vadd.f32 %v2002, %v2057
        %v2066 = vmul.f32 %v2021, %v1239
        %v2067 = vmul.f32 %v2024, %v1239
        %v2068 = vmul.f32 %v2027, %v1239
        %v2069 = vmul.f32 %v2030, %v1239
        %v2070 = vmul.f32 %v2033, %v1239
        %v2071 = vmul.f32 %v2036, %v1239
        %v2072 = vmul.f32 %v2039, %v1239
        %v2073 = vmul.f32 %v2042, %v1239
        %v2074 = vadd.f32 %v2058, %v2066
        %v2075 = vadd.f32 %v2059, %v2067
        %v2076 = vadd.f32 %v2060, %v2068
        %v2077 = vadd.f32 %v2061, %v2069
        %v2078 = vadd.f32 %v2062, %v2070
        %v2079 = vadd.f32 %v2063, %v2071
        %v2080 = vadd.f32 %v2064, %v2072
        %v2081 = vadd.f32 %v2065, %v2073
        %v2082 = vmul.f32 %v2024, %v1259
        %v2083 = vmul.f32 %v2027, %v1259
        %v2084 = vmul.f32 %v2030, %v1259
        %v2085 = vmul.f32 %v2033, %v1259
        %v2086 = vmul.f32 %v2036, %v1259
        %v2087 = vmul.f32 %v2039, %v1259
        %v2088 = vmul.f32 %v2042, %v1259
        %v2089 = vadd.f32 %v2074, %v2082
        %v2090 = vadd.f32 %v2075, %v2083
        %v2091 = vadd.f32 %v2076, %v2084
        %v2092 = vadd.f32 %v2077, %v2085
        %v2093 = vadd.f32 %v2078, %v2086
        %v2094 = vadd.f32 %v2079, %v2087
        %v2095 = vadd.f32 %v2080, %v2088
        %v2096 = vadd.f32 %v2081, %v1267
        %v2097 = vrot.slane %v1941, 2
        %v2098 = vrot.slane %v1949, 2
        %v2099 = vsel %vm658, %v2097, %v2098
        %v2100 = vrot.slane %v1942, 2
        %v2101 = vrot.slane %v1950, 2
        %v2102 = vsel %vm658, %v2100, %v2101
        %v2103 = vrot.slane %v1943, 2
        %v2104 = vrot.slane %v1951, 2
        %v2105 = vsel %vm658, %v2103, %v2104
        %v2106 = vrot.slane %v1944, 2
        %v2107 = vrot.slane %v1952, 2
        %v2108 = vsel %vm658, %v2106, %v2107
        %v2109 = vrot.slane %v1945, 2
        %v2110 = vrot.slane %v1953, 2
        %v2111 = vsel %vm658, %v2109, %v2110
        %v2112 = vrot.slane %v1946, 2
        %v2113 = vrot.slane %v1954, 2
        %v2114 = vsel %vm658, %v2112, %v2113
        %v2115 = vrot.slane %v1947, 2
        %v2116 = vrot.slane %v1955, 2
        %v2117 = vsel %vm658, %v2115, %v2116
        %v2118 = vrot.slane %v1948, 2
        %v2119 = vrot.slane %v1956, 2
        %v2120 = vsel %vm658, %v2118, %v2119
        %v2129 = vmul.f32 %v2099, %v1311
        %v2130 = vmul.f32 %v2102, %v1311
        %v2131 = vmul.f32 %v2105, %v1311
        %v2132 = vmul.f32 %v2108, %v1311
        %v2133 = vmul.f32 %v2111, %v1311
        %v2134 = vmul.f32 %v2114, %v1311
        %v2135 = vmul.f32 %v2117, %v1311
        %v2136 = vadd.f32 %v2089, %v1312
        %v2137 = vadd.f32 %v2090, %v2129
        %v2138 = vadd.f32 %v2091, %v2130
        %v2139 = vadd.f32 %v2092, %v2131
        %v2140 = vadd.f32 %v2093, %v2132
        %v2141 = vadd.f32 %v2094, %v2133
        %v2142 = vadd.f32 %v2095, %v2134
        %v2143 = vadd.f32 %v2096, %v2135
        %v2144 = vmul.f32 %v2099, %v1331
        %v2145 = vmul.f32 %v2102, %v1331
        %v2146 = vmul.f32 %v2105, %v1331
        %v2147 = vmul.f32 %v2108, %v1331
        %v2148 = vmul.f32 %v2111, %v1331
        %v2149 = vmul.f32 %v2114, %v1331
        %v2150 = vmul.f32 %v2117, %v1331
        %v2151 = vmul.f32 %v2120, %v1331
        %v2152 = vadd.f32 %v2136, %v2144
        %v2153 = vadd.f32 %v2137, %v2145
        %v2154 = vadd.f32 %v2138, %v2146
        %v2155 = vadd.f32 %v2139, %v2147
        %v2156 = vadd.f32 %v2140, %v2148
        %v2157 = vadd.f32 %v2141, %v2149
        %v2158 = vadd.f32 %v2142, %v2150
        %v2159 = vadd.f32 %v2143, %v2151
        %v2160 = vmul.f32 %v2102, %v1351
        %v2161 = vmul.f32 %v2105, %v1351
        %v2162 = vmul.f32 %v2108, %v1351
        %v2163 = vmul.f32 %v2111, %v1351
        %v2164 = vmul.f32 %v2114, %v1351
        %v2165 = vmul.f32 %v2117, %v1351
        %v2166 = vmul.f32 %v2120, %v1351
        %v2167 = vadd.f32 %v2152, %v2160
        %v2168 = vadd.f32 %v2153, %v2161
        %v2169 = vadd.f32 %v2154, %v2162
        %v2170 = vadd.f32 %v2155, %v2163
        %v2171 = vadd.f32 %v2156, %v2164
        %v2172 = vadd.f32 %v2157, %v2165
        %v2173 = vadd.f32 %v2158, %v2166
        %v2174 = vadd.f32 %v2159, %v1359
        %s2175 = scalar_lea.vmem %s385, 64 [#allocation10]
        %2176 = vst.msk [vmem:[%s2175] sm:$0xff] %vm1368, %v2167
        %2177 = vst.msk [vmem:[%s2175 + $0x8] sm:$0xff] %vm1368, %v2168
        %2178 = vst.msk [vmem:[%s2175 + $0x10] sm:$0xff] %vm1368, %v2169
        %2179 = vst.msk [vmem:[%s2175 + $0x18] sm:$0xff] %vm1368, %v2170
        %2180 = vst.msk [vmem:[%s2175 + $0x20] sm:$0xff] %vm1368, %v2171
        %2181 = vst.msk [vmem:[%s2175 + $0x28] sm:$0xff] %vm1368, %v2172
        %2182 = vst.msk [vmem:[%s2175 + $0x30] sm:$0xff] %vm1368, %v2173
        %2183 = vst.msk [vmem:[%s2175 + $0x38] sm:$0xff] %vm1368, %v2174
        %v2184 = vld [vmem:[%s1059] sm:$0xff]
        %v2185 = vld [vmem:[%s1059 + $0x8] sm:$0xff]
        %v2186 = vld [vmem:[%s1059 + $0x10] sm:$0xff]
        %v2187 = vld [vmem:[%s1059 + $0x18] sm:$0xff]
        %v2188 = vld [vmem:[%s1059 + $0x20] sm:$0xff]
        %v2189 = vld [vmem:[%s1059 + $0x28] sm:$0xff]
        %v2190 = vld [vmem:[%s1059 + $0x30] sm:$0xff]
        %v2191 = vld [vmem:[%s1059 + $0x38] sm:$0xff]
        %v2200 = vrot.slane %v2184, 7
        %v2201 = vrot.slane %v2185, 7
        %v2202 = vrot.slane %v2186, 7
        %v2203 = vrot.slane %v2187, 7
        %v2204 = vrot.slane %v2188, 7
        %v2205 = vrot.slane %v2189, 7
        %v2206 = vrot.slane %v2190, 7
        %v2207 = vrot.slane %v2191, 7
        %v2216 = vsel %vm472, 0.0, %v2200
        %v2217 = vsel %vm472, 0.0, %v2201
        %v2218 = vsel %vm472, 0.0, %v2202
        %v2219 = vsel %vm472, 0.0, %v2203
        %v2220 = vsel %vm472, 0.0, %v2204
        %v2221 = vsel %vm472, 0.0, %v2205
        %v2222 = vsel %vm472, 0.0, %v2206
        %v2223 = vsel %vm472, 0.0, %v2207
        %v2224 = vsel %vm472, %v2200, 0.0
        %v2225 = vsel %vm472, %v2201, 0.0
        %v2226 = vsel %vm472, %v2202, 0.0
        %v2227 = vsel %vm472, %v2203, 0.0
        %v2228 = vsel %vm472, %v2204, 0.0
        %v2229 = vsel %vm472, %v2205, 0.0
        %v2230 = vsel %vm472, %v2206, 0.0
        %v2231 = vsel %vm472, %v2207, 0.0
        %v2232 = vmul.f32 %v2216, %v492
        %v2233 = vmul.f32 %v2217, %v492
        %v2234 = vmul.f32 %v2218, %v492
        %v2235 = vmul.f32 %v2219, %v492
        %v2236 = vmul.f32 %v2220, %v492
        %v2237 = vmul.f32 %v2221, %v492
        %v2238 = vmul.f32 %v2222, %v492
        %v2239 = vadd.f32 %v405, %v2232
        %v2240 = vadd.f32 %v405, %v2233
        %v2241 = vadd.f32 %v405, %v2234
        %v2242 = vadd.f32 %v405, %v2235
        %v2243 = vadd.f32 %v405, %v2236
        %v2244 = vadd.f32 %v405, %v2237
        %v2245 = vadd.f32 %v405, %v2238
        %v2246 = vmul.f32 %v2216, %v512
        %v2247 = vmul.f32 %v2217, %v512
        %v2248 = vmul.f32 %v2218, %v512
        %v2249 = vmul.f32 %v2219, %v512
        %v2250 = vmul.f32 %v2220, %v512
        %v2251 = vmul.f32 %v2221, %v512
        %v2252 = vmul.f32 %v2222, %v512
        %v2253 = vmul.f32 %v2223, %v512
        %v2254 = vadd.f32 %v501, %v2246
        %v2255 = vadd.f32 %v2239, %v2247
        %v2256 = vadd.f32 %v2240, %v2248
        %v2257 = vadd.f32 %v2241, %v2249
        %v2258 = vadd.f32 %v2242, %v2250
        %v2259 = vadd.f32 %v2243, %v2251
        %v2260 = vadd.f32 %v2244, %v2252
        %v2261 = vadd.f32 %v2245, %v2253
        %v2262 = vmul.f32 %v2217, %v532
        %v2263 = vmul.f32 %v2218, %v532
        %v2264 = vmul.f32 %v2219, %v532
        %v2265 = vmul.f32 %v2220, %v532
        %v2266 = vmul.f32 %v2221, %v532
        %v2267 = vmul.f32 %v2222, %v532
        %v2268 = vmul.f32 %v2223, %v532
        %v2269 = vadd.f32 %v2254, %v2262
        %v2270 = vadd.f32 %v2255, %v2263
        %v2271 = vadd.f32 %v2256, %v2264
        %v2272 = vadd.f32 %v2257, %v2265
        %v2273 = vadd.f32 %v2258, %v2266
        %v2274 = vadd.f32 %v2259, %v2267
        %v2275 = vadd.f32 %v2260, %v2268
        %v2276 = vadd.f32 %v2261, %v540
        %v2293 = vrot.slane %v2216, 1
        %v2294 = vrot.slane %v2224, 1
        %v2295 = vsel %vm565, %v2293, %v2294
        %v2296 = vrot.slane %v2217, 1
        %v2297 = vrot.slane %v2225, 1
        %v2298 = vsel %vm565, %v2296, %v2297
        %v2299 = vrot.slane %v2218, 1
        %v2300 = vrot.slane %v2226, 1
        %v2301 = vsel %vm565, %v2299, %v2300
        %v2302 = vrot.slane %v2219, 1
        %v2303 = vrot.slane %v2227, 1
        %v2304 = vsel %vm565, %v2302, %v2303
        %v2305 = vrot.slane %v2220, 1
        %v2306 = vrot.slane %v2228, 1
        %v2307 = vsel %vm565, %v2305, %v2306
        %v2308 = vrot.slane %v2221, 1
        %v2309 = vrot.slane %v2229, 1
        %v2310 = vsel %vm565, %v2308, %v2309
        %v2311 = vrot.slane %v2222, 1
        %v2312 = vrot.slane %v2230, 1
        %v2313 = vsel %vm565, %v2311, %v2312
        %v2314 = vrot.slane %v2223, 1
        %v2315 = vrot.slane %v2231, 1
        %v2316 = vsel %vm565, %v2314, %v2315
        %v2325 = vmul.f32 %v2295, %v601
        %v2326 = vmul.f32 %v2298, %v601
        %v2327 = vmul.f32 %v2301, %v601
        %v2328 = vmul.f32 %v2304, %v601
        %v2329 = vmul.f32 %v2307, %v601
        %v2330 = vmul.f32 %v2310, %v601
        %v2331 = vmul.f32 %v2313, %v601
        %v2332 = vadd.f32 %v2269, %v602
        %v2333 = vadd.f32 %v2270, %v2325
        %v2334 = vadd.f32 %v2271, %v2326
        %v2335 = vadd.f32 %v2272, %v2327
        %v2336 = vadd.f32 %v2273, %v2328
        %v2337 = vadd.f32 %v2274, %v2329
        %v2338 = vadd.f32 %v2275, %v2330
        %v2339 = vadd.f32 %v2276, %v2331
        %v2340 = vmul.f32 %v2295, %v621
        %v2341 = vmul.f32 %v2298, %v621
        %v2342 = vmul.f32 %v2301, %v621
        %v2343 = vmul.f32 %v2304, %v621
        %v2344 = vmul.f32 %v2307, %v621
        %v2345 = vmul.f32 %v2310, %v621
        %v2346 = vmul.f32 %v2313, %v621
        %v2347 = vmul.f32 %v2316, %v621
        %v2348 = vadd.f32 %v2332, %v2340
        %v2349 = vadd.f32 %v2333, %v2341
        %v2350 = vadd.f32 %v2334, %v2342
        %v2351 = vadd.f32 %v2335, %v2343
        %v2352 = vadd.f32 %v2336, %v2344
        %v2353 = vadd.f32 %v2337, %v2345
        %v2354 = vadd.f32 %v2338, %v2346
        %v2355 = vadd.f32 %v2339, %v2347
        %v2356 = vmul.f32 %v2298, %v641
        %v2357 = vmul.f32 %v2301, %v641
        %v2358 = vmul.f32 %v2304, %v641
        %v2359 = vmul.f32 %v2307, %v641
        %v2360 = vmul.f32 %v2310, %v641
        %v2361 = vmul.f32 %v2313, %v641
        %v2362 = vmul.f32 %v2316, %v641
        %v2363 = vadd.f32 %v2348, %v2356
        %v2364 = vadd.f32 %v2349, %v2357
        %v2365 = vadd.f32 %v2350, %v2358
        %v2366 = vadd.f32 %v2351, %v2359
        %v2367 = vadd.f32 %v2352, %v2360
        %v2368 = vadd.f32 %v2353, %v2361
        %v2369 = vadd.f32 %v2354, %v2362
        %v2370 = vadd.f32 %v2355, %v649
        %v2371 = vrot.slane %v2216, 2
        %v2372 = vrot.slane %v2224, 2
        %v2373 = vsel %vm658, %v2371, %v2372
        %v2374 = vrot.slane %v2217, 2
        %v2375 = vrot.slane %v2225, 2
        %v2376 = vsel %vm658, %v2374, %v2375
        %v2377 = vrot.slane %v2218, 2
        %v2378 = vrot.slane %v2226, 2
        %v2379 = vsel %vm658, %v2377, %v2378
        %v2380 = vrot.slane %v2219, 2
        %v2381 = vrot.slane %v2227, 2
        %v2382 = vsel %vm658, %v2380, %v2381
        %v2383 = vrot.slane %v2220, 2
        %v2384 = vrot.slane %v2228, 2
        %v2385 = vsel %vm658, %v2383, %v2384
        %v2386 = vrot.slane %v2221, 2
        %v2387 = vrot.slane %v2229, 2
        %v2388 = vsel %vm658, %v2386, %v2387
        %v2389 = vrot.slane %v2222, 2
        %v2390 = vrot.slane %v2230, 2
        %v2391 = vsel %vm658, %v2389, %v2390
        %v2392 = vrot.slane %v2223, 2
        %v2393 = vrot.slane %v2231, 2
        %v2394 = vsel %vm658, %v2392, %v2393
        %v2403 = vmul.f32 %v2373, %v694
        %v2404 = vmul.f32 %v2376, %v694
        %v2405 = vmul.f32 %v2379, %v694
        %v2406 = vmul.f32 %v2382, %v694
        %v2407 = vmul.f32 %v2385, %v694
        %v2408 = vmul.f32 %v2388, %v694
        %v2409 = vmul.f32 %v2391, %v694
        %v2410 = vadd.f32 %v2363, %v695
        %v2411 = vadd.f32 %v2364, %v2403
        %v2412 = vadd.f32 %v2365, %v2404
        %v2413 = vadd.f32 %v2366, %v2405
        %v2414 = vadd.f32 %v2367, %v2406
        %v2415 = vadd.f32 %v2368, %v2407
        %v2416 = vadd.f32 %v2369, %v2408
        %v2417 = vadd.f32 %v2370, %v2409
        %v2418 = vmul.f32 %v2373, %v714
        %v2419 = vmul.f32 %v2376, %v714
        %v2420 = vmul.f32 %v2379, %v714
        %v2421 = vmul.f32 %v2382, %v714
        %v2422 = vmul.f32 %v2385, %v714
        %v2423 = vmul.f32 %v2388, %v714
        %v2424 = vmul.f32 %v2391, %v714
        %v2425 = vmul.f32 %v2394, %v714
        %v2426 = vadd.f32 %v2410, %v2418
        %v2427 = vadd.f32 %v2411, %v2419
        %v2428 = vadd.f32 %v2412, %v2420
        %v2429 = vadd.f32 %v2413, %v2421
        %v2430 = vadd.f32 %v2414, %v2422
        %v2431 = vadd.f32 %v2415, %v2423
        %v2432 = vadd.f32 %v2416, %v2424
        %v2433 = vadd.f32 %v2417, %v2425
        %v2434 = vmul.f32 %v2376, %v734
        %v2435 = vmul.f32 %v2379, %v734
        %v2436 = vmul.f32 %v2382, %v734
        %v2437 = vmul.f32 %v2385, %v734
        %v2438 = vmul.f32 %v2388, %v734
        %v2439 = vmul.f32 %v2391, %v734
        %v2440 = vmul.f32 %v2394, %v734
        %v2441 = vadd.f32 %v2426, %v2434
        %v2442 = vadd.f32 %v2427, %v2435
        %v2443 = vadd.f32 %v2428, %v2436
        %v2444 = vadd.f32 %v2429, %v2437
        %v2445 = vadd.f32 %v2430, %v2438
        %v2446 = vadd.f32 %v2431, %v2439
        %v2447 = vadd.f32 %v2432, %v2440
        %v2448 = vadd.f32 %v2433, %v742
        %v2449 = vld [vmem:[%s1908] sm:$0xff]
        %v2450 = vld [vmem:[%s1908 + $0x8] sm:$0xff]
        %v2451 = vld [vmem:[%s1908 + $0x10] sm:$0xff]
        %v2452 = vld [vmem:[%s1908 + $0x18] sm:$0xff]
        %v2453 = vld [vmem:[%s1908 + $0x20] sm:$0xff]
        %v2454 = vld [vmem:[%s1908 + $0x28] sm:$0xff]
        %v2455 = vld [vmem:[%s1908 + $0x30] sm:$0xff]
        %v2456 = vld [vmem:[%s1908 + $0x38] sm:$0xff]
        %v2465 = vrot.slane %v2449, 7
        %v2466 = vrot.slane %v2450, 7
        %v2467 = vrot.slane %v2451, 7
        %v2468 = vrot.slane %v2452, 7
        %v2469 = vrot.slane %v2453, 7
        %v2470 = vrot.slane %v2454, 7
        %v2471 = vrot.slane %v2455, 7
        %v2472 = vrot.slane %v2456, 7
        %v2481 = vsel %vm472, 0.0, %v2465
        %v2482 = vsel %vm472, 0.0, %v2466
        %v2483 = vsel %vm472, 0.0, %v2467
        %v2484 = vsel %vm472, 0.0, %v2468
        %v2485 = vsel %vm472, 0.0, %v2469
        %v2486 = vsel %vm472, 0.0, %v2470
        %v2487 = vsel %vm472, 0.0, %v2471
        %v2488 = vsel %vm472, 0.0, %v2472
        %v2489 = vsel %vm472, %v2465, 0.0
        %v2490 = vsel %vm472, %v2466, 0.0
        %v2491 = vsel %vm472, %v2467, 0.0
        %v2492 = vsel %vm472, %v2468, 0.0
        %v2493 = vsel %vm472, %v2469, 0.0
        %v2494 = vsel %vm472, %v2470, 0.0
        %v2495 = vsel %vm472, %v2471, 0.0
        %v2496 = vsel %vm472, %v2472, 0.0
        %v2497 = vmul.f32 %v2481, %v802
        %v2498 = vmul.f32 %v2482, %v802
        %v2499 = vmul.f32 %v2483, %v802
        %v2500 = vmul.f32 %v2484, %v802
        %v2501 = vmul.f32 %v2485, %v802
        %v2502 = vmul.f32 %v2486, %v802
        %v2503 = vmul.f32 %v2487, %v802
        %v2504 = vadd.f32 %v2441, %v803
        %v2505 = vadd.f32 %v2442, %v2497
        %v2506 = vadd.f32 %v2443, %v2498
        %v2507 = vadd.f32 %v2444, %v2499
        %v2508 = vadd.f32 %v2445, %v2500
        %v2509 = vadd.f32 %v2446, %v2501
        %v2510 = vadd.f32 %v2447, %v2502
        %v2511 = vadd.f32 %v2448, %v2503
        %v2512 = vmul.f32 %v2481, %v822
        %v2513 = vmul.f32 %v2482, %v822
        %v2514 = vmul.f32 %v2483, %v822
        %v2515 = vmul.f32 %v2484, %v822
        %v2516 = vmul.f32 %v2485, %v822
        %v2517 = vmul.f32 %v2486, %v822
        %v2518 = vmul.f32 %v2487, %v822
        %v2519 = vmul.f32 %v2488, %v822
        %v2520 = vadd.f32 %v2504, %v2512
        %v2521 = vadd.f32 %v2505, %v2513
        %v2522 = vadd.f32 %v2506, %v2514
        %v2523 = vadd.f32 %v2507, %v2515
        %v2524 = vadd.f32 %v2508, %v2516
        %v2525 = vadd.f32 %v2509, %v2517
        %v2526 = vadd.f32 %v2510, %v2518
        %v2527 = vadd.f32 %v2511, %v2519
        %v2528 = vmul.f32 %v2482, %v842
        %v2529 = vmul.f32 %v2483, %v842
        %v2530 = vmul.f32 %v2484, %v842
        %v2531 = vmul.f32 %v2485, %v842
        %v2532 = vmul.f32 %v2486, %v842
        %v2533 = vmul.f32 %v2487, %v842
        %v2534 = vmul.f32 %v2488, %v842
        %v2535 = vadd.f32 %v2520, %v2528
        %v2536 = vadd.f32 %v2521, %v2529
        %v2537 = vadd.f32 %v2522, %v2530
        %v2538 = vadd.f32 %v2523, %v2531
        %v2539 = vadd.f32 %v2524, %v2532
        %v2540 = vadd.f32 %v2525, %v2533
        %v2541 = vadd.f32 %v2526, %v2534
        %v2542 = vadd.f32 %v2527, %v850
        %v2559 = vrot.slane %v2481, 1
        %v2560 = vrot.slane %v2489, 1
        %v2561 = vsel %vm565, %v2559, %v2560
        %v2562 = vrot.slane %v2482, 1
        %v2563 = vrot.slane %v2490, 1
        %v2564 = vsel %vm565, %v2562, %v2563
        %v2565 = vrot.slane %v2483, 1
        %v2566 = vrot.slane %v2491, 1
        %v2567 = vsel %vm565, %v2565, %v2566
        %v2568 = vrot.slane %v2484, 1
        %v2569 = vrot.slane %v2492, 1
        %v2570 = vsel %vm565, %v2568, %v2569
        %v2571 = vrot.slane %v2485, 1
        %v2572 = vrot.slane %v2493, 1
        %v2573 = vsel %vm565, %v2571, %v2572
        %v2574 = vrot.slane %v2486, 1
        %v2575 = vrot.slane %v2494, 1
        %v2576 = vsel %vm565, %v2574, %v2575
        %v2577 = vrot.slane %v2487, 1
        %v2578 = vrot.slane %v2495, 1
        %v2579 = vsel %vm565, %v2577, %v2578
        %v2580 = vrot.slane %v2488, 1
        %v2581 = vrot.slane %v2496, 1
        %v2582 = vsel %vm565, %v2580, %v2581
        %v2591 = vmul.f32 %v2561, %v910
        %v2592 = vmul.f32 %v2564, %v910
        %v2593 = vmul.f32 %v2567, %v910
        %v2594 = vmul.f32 %v2570, %v910
        %v2595 = vmul.f32 %v2573, %v910
        %v2596 = vmul.f32 %v2576, %v910
        %v2597 = vmul.f32 %v2579, %v910
        %v2598 = vadd.f32 %v2535, %v911
        %v2599 = vadd.f32 %v2536, %v2591
        %v2600 = vadd.f32 %v2537, %v2592
        %v2601 = vadd.f32 %v2538, %v2593
        %v2602 = vadd.f32 %v2539, %v2594
        %v2603 = vadd.f32 %v2540, %v2595
        %v2604 = vadd.f32 %v2541, %v2596
        %v2605 = vadd.f32 %v2542, %v2597
        %v2606 = vmul.f32 %v2561, %v930
        %v2607 = vmul.f32 %v2564, %v930
        %v2608 = vmul.f32 %v2567, %v930
        %v2609 = vmul.f32 %v2570, %v930
        %v2610 = vmul.f32 %v2573, %v930
        %v2611 = vmul.f32 %v2576, %v930
        %v2612 = vmul.f32 %v2579, %v930
        %v2613 = vmul.f32 %v2582, %v930
        %v2614 = vadd.f32 %v2598, %v2606
        %v2615 = vadd.f32 %v2599, %v2607
        %v2616 = vadd.f32 %v2600, %v2608
        %v2617 = vadd.f32 %v2601, %v2609
        %v2618 = vadd.f32 %v2602, %v2610
        %v2619 = vadd.f32 %v2603, %v2611
        %v2620 = vadd.f32 %v2604, %v2612
        %v2621 = vadd.f32 %v2605, %v2613
        %v2622 = vmul.f32 %v2564, %v950
        %v2623 = vmul.f32 %v2567, %v950
        %v2624 = vmul.f32 %v2570, %v950
        %v2625 = vmul.f32 %v2573, %v950
        %v2626 = vmul.f32 %v2576, %v950
        %v2627 = vmul.f32 %v2579, %v950
        %v2628 = vmul.f32 %v2582, %v950
        %v2629 = vadd.f32 %v2614, %v2622
        %v2630 = vadd.f32 %v2615, %v2623
        %v2631 = vadd.f32 %v2616, %v2624
        %v2632 = vadd.f32 %v2617, %v2625
        %v2633 = vadd.f32 %v2618, %v2626
        %v2634 = vadd.f32 %v2619, %v2627
        %v2635 = vadd.f32 %v2620, %v2628
        %v2636 = vadd.f32 %v2621, %v958
        %v2637 = vrot.slane %v2481, 2
        %v2638 = vrot.slane %v2489, 2
        %v2639 = vsel %vm658, %v2637, %v2638
        %v2640 = vrot.slane %v2482, 2
        %v2641 = vrot.slane %v2490, 2
        %v2642 = vsel %vm658, %v2640, %v2641
        %v2643 = vrot.slane %v2483, 2
        %v2644 = vrot.slane %v2491, 2
        %v2645 = vsel %vm658, %v2643, %v2644
        %v2646 = vrot.slane %v2484, 2
        %v2647 = vrot.slane %v2492, 2
        %v2648 = vsel %vm658, %v2646, %v2647
        %v2649 = vrot.slane %v2485, 2
        %v2650 = vrot.slane %v2493, 2
        %v2651 = vsel %vm658, %v2649, %v2650
        %v2652 = vrot.slane %v2486, 2
        %v2653 = vrot.slane %v2494, 2
        %v2654 = vsel %vm658, %v2652, %v2653
        %v2655 = vrot.slane %v2487, 2
        %v2656 = vrot.slane %v2495, 2
        %v2657 = vsel %vm658, %v2655, %v2656
        %v2658 = vrot.slane %v2488, 2
        %v2659 = vrot.slane %v2496, 2
        %v2660 = vsel %vm658, %v2658, %v2659
        %v2669 = vmul.f32 %v2639, %v1002
        %v2670 = vmul.f32 %v2642, %v1002
        %v2671 = vmul.f32 %v2645, %v1002
        %v2672 = vmul.f32 %v2648, %v1002
        %v2673 = vmul.f32 %v2651, %v1002
        %v2674 = vmul.f32 %v2654, %v1002
        %v2675 = vmul.f32 %v2657, %v1002
        %v2676 = vadd.f32 %v2629, %v1003
        %v2677 = vadd.f32 %v2630, %v2669
        %v2678 = vadd.f32 %v2631, %v2670
        %v2679 = vadd.f32 %v2632, %v2671
        %v2680 = vadd.f32 %v2633, %v2672
        %v2681 = vadd.f32 %v2634, %v2673
        %v2682 = vadd.f32 %v2635, %v2674
        %v2683 = vadd.f32 %v2636, %v2675
        %v2684 = vmul.f32 %v2639, %v1022
        %v2685 = vmul.f32 %v2642, %v1022
        %v2686 = vmul.f32 %v2645, %v1022
        %v2687 = vmul.f32 %v2648, %v1022
        %v2688 = vmul.f32 %v2651, %v1022
        %v2689 = vmul.f32 %v2654, %v1022
        %v2690 = vmul.f32 %v2657, %v1022
        %v2691 = vmul.f32 %v2660, %v1022
        %v2692 = vadd.f32 %v2676, %v2684
        %v2693 = vadd.f32 %v2677, %v2685
        %v2694 = vadd.f32 %v2678, %v2686
        %v2695 = vadd.f32 %v2679, %v2687
        %v2696 = vadd.f32 %v2680, %v2688
        %v2697 = vadd.f32 %v2681, %v2689
        %v2698 = vadd.f32 %v2682, %v2690
        %v2699 = vadd.f32 %v2683, %v2691
        %v2700 = vmul.f32 %v2642, %v1042
        %v2701 = vmul.f32 %v2645, %v1042
        %v2702 = vmul.f32 %v2648, %v1042
        %v2703 = vmul.f32 %v2651, %v1042
        %v2704 = vmul.f32 %v2654, %v1042
        %v2705 = vmul.f32 %v2657, %v1042
        %v2706 = vmul.f32 %v2660, %v1042
        %v2707 = vadd.f32 %v2692, %v2700
        %v2708 = vadd.f32 %v2693, %v2701
        %v2709 = vadd.f32 %v2694, %v2702
        %v2710 = vadd.f32 %v2695, %v2703
        %v2711 = vadd.f32 %v2696, %v2704
        %v2712 = vadd.f32 %v2697, %v2705
        %v2713 = vadd.f32 %v2698, %v2706
        %v2714 = vadd.f32 %v2699, %v1050
        %s2715 = scalar_lea.vmem %s327, 192 [#allocation2]
        %v2716 = vld [vmem:[%s2715] sm:$0xff]
        %v2717 = vld [vmem:[%s2715 + $0x8] sm:$0xff]
        %v2718 = vld [vmem:[%s2715 + $0x10] sm:$0xff]
        %v2719 = vld [vmem:[%s2715 + $0x18] sm:$0xff]
        %v2720 = vld [vmem:[%s2715 + $0x20] sm:$0xff]
        %v2721 = vld [vmem:[%s2715 + $0x28] sm:$0xff]
        %v2722 = vld [vmem:[%s2715 + $0x30] sm:$0xff]
        %v2723 = vld [vmem:[%s2715 + $0x38] sm:$0xff]
        %v2732 = vrot.slane %v2716, 7
        %v2733 = vrot.slane %v2717, 7
        %v2734 = vrot.slane %v2718, 7
        %v2735 = vrot.slane %v2719, 7
        %v2736 = vrot.slane %v2720, 7
        %v2737 = vrot.slane %v2721, 7
        %v2738 = vrot.slane %v2722, 7
        %v2739 = vrot.slane %v2723, 7
        %v2748 = vsel %vm472, 0.0, %v2732
        %v2749 = vsel %vm472, 0.0, %v2733
        %v2750 = vsel %vm472, 0.0, %v2734
        %v2751 = vsel %vm472, 0.0, %v2735
        %v2752 = vsel %vm472, 0.0, %v2736
        %v2753 = vsel %vm472, 0.0, %v2737
        %v2754 = vsel %vm472, 0.0, %v2738
        %v2755 = vsel %vm472, 0.0, %v2739
        %v2756 = vsel %vm472, %v2732, 0.0
        %v2757 = vsel %vm472, %v2733, 0.0
        %v2758 = vsel %vm472, %v2734, 0.0
        %v2759 = vsel %vm472, %v2735, 0.0
        %v2760 = vsel %vm472, %v2736, 0.0
        %v2761 = vsel %vm472, %v2737, 0.0
        %v2762 = vsel %vm472, %v2738, 0.0
        %v2763 = vsel %vm472, %v2739, 0.0
        %v2764 = vmul.f32 %v2748, %v1111
        %v2765 = vmul.f32 %v2749, %v1111
        %v2766 = vmul.f32 %v2750, %v1111
        %v2767 = vmul.f32 %v2751, %v1111
        %v2768 = vmul.f32 %v2752, %v1111
        %v2769 = vmul.f32 %v2753, %v1111
        %v2770 = vmul.f32 %v2754, %v1111
        %v2771 = vadd.f32 %v2707, %v1112
        %v2772 = vadd.f32 %v2708, %v2764
        %v2773 = vadd.f32 %v2709, %v2765
        %v2774 = vadd.f32 %v2710, %v2766
        %v2775 = vadd.f32 %v2711, %v2767
        %v2776 = vadd.f32 %v2712, %v2768
        %v2777 = vadd.f32 %v2713, %v2769
        %v2778 = vadd.f32 %v2714, %v2770
        %v2779 = vmul.f32 %v2748, %v1131
        %v2780 = vmul.f32 %v2749, %v1131
        %v2781 = vmul.f32 %v2750, %v1131
        %v2782 = vmul.f32 %v2751, %v1131
        %v2783 = vmul.f32 %v2752, %v1131
        %v2784 = vmul.f32 %v2753, %v1131
        %v2785 = vmul.f32 %v2754, %v1131
        %v2786 = vmul.f32 %v2755, %v1131
        %v2787 = vadd.f32 %v2771, %v2779
        %v2788 = vadd.f32 %v2772, %v2780
        %v2789 = vadd.f32 %v2773, %v2781
        %v2790 = vadd.f32 %v2774, %v2782
        %v2791 = vadd.f32 %v2775, %v2783
        %v2792 = vadd.f32 %v2776, %v2784
        %v2793 = vadd.f32 %v2777, %v2785
        %v2794 = vadd.f32 %v2778, %v2786
        %v2795 = vmul.f32 %v2749, %v1151
        %v2796 = vmul.f32 %v2750, %v1151
        %v2797 = vmul.f32 %v2751, %v1151
        %v2798 = vmul.f32 %v2752, %v1151
        %v2799 = vmul.f32 %v2753, %v1151
        %v2800 = vmul.f32 %v2754, %v1151
        %v2801 = vmul.f32 %v2755, %v1151
        %v2802 = vadd.f32 %v2787, %v2795
        %v2803 = vadd.f32 %v2788, %v2796
        %v2804 = vadd.f32 %v2789, %v2797
        %v2805 = vadd.f32 %v2790, %v2798
        %v2806 = vadd.f32 %v2791, %v2799
        %v2807 = vadd.f32 %v2792, %v2800
        %v2808 = vadd.f32 %v2793, %v2801
        %v2809 = vadd.f32 %v2794, %v1159
        %v2826 = vrot.slane %v2748, 1
        %v2827 = vrot.slane %v2756, 1
        %v2828 = vsel %vm565, %v2826, %v2827
        %v2829 = vrot.slane %v2749, 1
        %v2830 = vrot.slane %v2757, 1
        %v2831 = vsel %vm565, %v2829, %v2830
        %v2832 = vrot.slane %v2750, 1
        %v2833 = vrot.slane %v2758, 1
        %v2834 = vsel %vm565, %v2832, %v2833
        %v2835 = vrot.slane %v2751, 1
        %v2836 = vrot.slane %v2759, 1
        %v2837 = vsel %vm565, %v2835, %v2836
        %v2838 = vrot.slane %v2752, 1
        %v2839 = vrot.slane %v2760, 1
        %v2840 = vsel %vm565, %v2838, %v2839
        %v2841 = vrot.slane %v2753, 1
        %v2842 = vrot.slane %v2761, 1
        %v2843 = vsel %vm565, %v2841, %v2842
        %v2844 = vrot.slane %v2754, 1
        %v2845 = vrot.slane %v2762, 1
        %v2846 = vsel %vm565, %v2844, %v2845
        %v2847 = vrot.slane %v2755, 1
        %v2848 = vrot.slane %v2763, 1
        %v2849 = vsel %vm565, %v2847, %v2848
        %v2858 = vmul.f32 %v2828, %v1219
        %v2859 = vmul.f32 %v2831, %v1219
        %v2860 = vmul.f32 %v2834, %v1219
        %v2861 = vmul.f32 %v2837, %v1219
        %v2862 = vmul.f32 %v2840, %v1219
        %v2863 = vmul.f32 %v2843, %v1219
        %v2864 = vmul.f32 %v2846, %v1219
        %v2865 = vadd.f32 %v2802, %v1220
        %v2866 = vadd.f32 %v2803, %v2858
        %v2867 = vadd.f32 %v2804, %v2859
        %v2868 = vadd.f32 %v2805, %v2860
        %v2869 = vadd.f32 %v2806, %v2861
        %v2870 = vadd.f32 %v2807, %v2862
        %v2871 = vadd.f32 %v2808, %v2863
        %v2872 = vadd.f32 %v2809, %v2864
        %v2873 = vmul.f32 %v2828, %v1239
        %v2874 = vmul.f32 %v2831, %v1239
        %v2875 = vmul.f32 %v2834, %v1239
        %v2876 = vmul.f32 %v2837, %v1239
        %v2877 = vmul.f32 %v2840, %v1239
        %v2878 = vmul.f32 %v2843, %v1239
        %v2879 = vmul.f32 %v2846, %v1239
        %v2880 = vmul.f32 %v2849, %v1239
        %v2881 = vadd.f32 %v2865, %v2873
        %v2882 = vadd.f32 %v2866, %v2874
        %v2883 = vadd.f32 %v2867, %v2875
        %v2884 = vadd.f32 %v2868, %v2876
        %v2885 = vadd.f32 %v2869, %v2877
        %v2886 = vadd.f32 %v2870, %v2878
        %v2887 = vadd.f32 %v2871, %v2879
        %v2888 = vadd.f32 %v2872, %v2880
        %v2889 = vmul.f32 %v2831, %v1259
        %v2890 = vmul.f32 %v2834, %v1259
        %v2891 = vmul.f32 %v2837, %v1259
        %v2892 = vmul.f32 %v2840, %v1259
        %v2893 = vmul.f32 %v2843, %v1259
        %v2894 = vmul.f32 %v2846, %v1259
        %v2895 = vmul.f32 %v2849, %v1259
        %v2896 = vadd.f32 %v2881, %v2889
        %v2897 = vadd.f32 %v2882, %v2890
        %v2898 = vadd.f32 %v2883, %v2891
        %v2899 = vadd.f32 %v2884, %v2892
        %v2900 = vadd.f32 %v2885, %v2893
        %v2901 = vadd.f32 %v2886, %v2894
        %v2902 = vadd.f32 %v2887, %v2895
        %v2903 = vadd.f32 %v2888, %v1267
        %v2904 = vrot.slane %v2748, 2
        %v2905 = vrot.slane %v2756, 2
        %v2906 = vsel %vm658, %v2904, %v2905
        %v2907 = vrot.slane %v2749, 2
        %v2908 = vrot.slane %v2757, 2
        %v2909 = vsel %vm658, %v2907, %v2908
        %v2910 = vrot.slane %v2750, 2
        %v2911 = vrot.slane %v2758, 2
        %v2912 = vsel %vm658, %v2910, %v2911
        %v2913 = vrot.slane %v2751, 2
        %v2914 = vrot.slane %v2759, 2
        %v2915 = vsel %vm658, %v2913, %v2914
        %v2916 = vrot.slane %v2752, 2
        %v2917 = vrot.slane %v2760, 2
        %v2918 = vsel %vm658, %v2916, %v2917
        %v2919 = vrot.slane %v2753, 2
        %v2920 = vrot.slane %v2761, 2
        %v2921 = vsel %vm658, %v2919, %v2920
        %v2922 = vrot.slane %v2754, 2
        %v2923 = vrot.slane %v2762, 2
        %v2924 = vsel %vm658, %v2922, %v2923
        %v2925 = vrot.slane %v2755, 2
        %v2926 = vrot.slane %v2763, 2
        %v2927 = vsel %vm658, %v2925, %v2926
        %v2936 = vmul.f32 %v2906, %v1311
        %v2937 = vmul.f32 %v2909, %v1311
        %v2938 = vmul.f32 %v2912, %v1311
        %v2939 = vmul.f32 %v2915, %v1311
        %v2940 = vmul.f32 %v2918, %v1311
        %v2941 = vmul.f32 %v2921, %v1311
        %v2942 = vmul.f32 %v2924, %v1311
        %v2943 = vadd.f32 %v2896, %v1312
        %v2944 = vadd.f32 %v2897, %v2936
        %v2945 = vadd.f32 %v2898, %v2937
        %v2946 = vadd.f32 %v2899, %v2938
        %v2947 = vadd.f32 %v2900, %v2939
        %v2948 = vadd.f32 %v2901, %v2940
        %v2949 = vadd.f32 %v2902, %v2941
        %v2950 = vadd.f32 %v2903, %v2942
        %v2951 = vmul.f32 %v2906, %v1331
        %v2952 = vmul.f32 %v2909, %v1331
        %v2953 = vmul.f32 %v2912, %v1331
        %v2954 = vmul.f32 %v2915, %v1331
        %v2955 = vmul.f32 %v2918, %v1331
        %v2956 = vmul.f32 %v2921, %v1331
        %v2957 = vmul.f32 %v2924, %v1331
        %v2958 = vmul.f32 %v2927, %v1331
        %v2959 = vadd.f32 %v2943, %v2951
        %v2960 = vadd.f32 %v2944, %v2952
        %v2961 = vadd.f32 %v2945, %v2953
        %v2962 = vadd.f32 %v2946, %v2954
        %v2963 = vadd.f32 %v2947, %v2955
        %v2964 = vadd.f32 %v2948, %v2956
        %v2965 = vadd.f32 %v2949, %v2957
        %v2966 = vadd.f32 %v2950, %v2958
        %v2967 = vmul.f32 %v2909, %v1351
        %v2968 = vmul.f32 %v2912, %v1351
        %v2969 = vmul.f32 %v2915, %v1351
        %v2970 = vmul.f32 %v2918, %v1351
        %v2971 = vmul.f32 %v2921, %v1351
        %v2972 = vmul.f32 %v2924, %v1351
        %v2973 = vmul.f32 %v2927, %v1351
        %v2974 = vadd.f32 %v2959, %v2967
        %v2975 = vadd.f32 %v2960, %v2968
        %v2976 = vadd.f32 %v2961, %v2969
        %v2977 = vadd.f32 %v2962, %v2970
        %v2978 = vadd.f32 %v2963, %v2971
        %v2979 = vadd.f32 %v2964, %v2972
        %v2980 = vadd.f32 %v2965, %v2973
        %v2981 = vadd.f32 %v2966, %v1359
        %s2982 = scalar_lea.vmem %s385, 128 [#allocation10]
        %2983 = vst.msk [vmem:[%s2982] sm:$0xff] %vm1368, %v2974
        %2984 = vst.msk [vmem:[%s2982 + $0x8] sm:$0xff] %vm1368, %v2975
        %2985 = vst.msk [vmem:[%s2982 + $0x10] sm:$0xff] %vm1368, %v2976
        %2986 = vst.msk [vmem:[%s2982 + $0x18] sm:$0xff] %vm1368, %v2977
        %2987 = vst.msk [vmem:[%s2982 + $0x20] sm:$0xff] %vm1368, %v2978
        %2988 = vst.msk [vmem:[%s2982 + $0x28] sm:$0xff] %vm1368, %v2979
        %2989 = vst.msk [vmem:[%s2982 + $0x30] sm:$0xff] %vm1368, %v2980
        %2990 = vst.msk [vmem:[%s2982 + $0x38] sm:$0xff] %vm1368, %v2981
        %v2991 = vld [vmem:[%s1908] sm:$0xff]
        %v2992 = vld [vmem:[%s1908 + $0x8] sm:$0xff]
        %v2993 = vld [vmem:[%s1908 + $0x10] sm:$0xff]
        %v2994 = vld [vmem:[%s1908 + $0x18] sm:$0xff]
        %v2995 = vld [vmem:[%s1908 + $0x20] sm:$0xff]
        %v2996 = vld [vmem:[%s1908 + $0x28] sm:$0xff]
        %v2997 = vld [vmem:[%s1908 + $0x30] sm:$0xff]
        %v2998 = vld [vmem:[%s1908 + $0x38] sm:$0xff]
        %v3007 = vrot.slane %v2991, 7
        %v3008 = vrot.slane %v2992, 7
        %v3009 = vrot.slane %v2993, 7
        %v3010 = vrot.slane %v2994, 7
        %v3011 = vrot.slane %v2995, 7
        %v3012 = vrot.slane %v2996, 7
        %v3013 = vrot.slane %v2997, 7
        %v3014 = vrot.slane %v2998, 7
        %v3023 = vsel %vm472, 0.0, %v3007
        %v3024 = vsel %vm472, 0.0, %v3008
        %v3025 = vsel %vm472, 0.0, %v3009
        %v3026 = vsel %vm472, 0.0, %v3010
        %v3027 = vsel %vm472, 0.0, %v3011
        %v3028 = vsel %vm472, 0.0, %v3012
        %v3029 = vsel %vm472, 0.0, %v3013
        %v3030 = vsel %vm472, 0.0, %v3014
        %v3031 = vsel %vm472, %v3007, 0.0
        %v3032 = vsel %vm472, %v3008, 0.0
        %v3033 = vsel %vm472, %v3009, 0.0
        %v3034 = vsel %vm472, %v3010, 0.0
        %v3035 = vsel %vm472, %v3011, 0.0
        %v3036 = vsel %vm472, %v3012, 0.0
        %v3037 = vsel %vm472, %v3013, 0.0
        %v3038 = vsel %vm472, %v3014, 0.0
        %v3039 = vmul.f32 %v3023, %v492
        %v3040 = vmul.f32 %v3024, %v492
        %v3041 = vmul.f32 %v3025, %v492
        %v3042 = vmul.f32 %v3026, %v492
        %v3043 = vmul.f32 %v3027, %v492
        %v3044 = vmul.f32 %v3028, %v492
        %v3045 = vmul.f32 %v3029, %v492
        %v3046 = vadd.f32 %v405, %v3039
        %v3047 = vadd.f32 %v405, %v3040
        %v3048 = vadd.f32 %v405, %v3041
        %v3049 = vadd.f32 %v405, %v3042
        %v3050 = vadd.f32 %v405, %v3043
        %v3051 = vadd.f32 %v405, %v3044
        %v3052 = vadd.f32 %v405, %v3045
        %v3053 = vmul.f32 %v3023, %v512
        %v3054 = vmul.f32 %v3024, %v512
        %v3055 = vmul.f32 %v3025, %v512
        %v3056 = vmul.f32 %v3026, %v512
        %v3057 = vmul.f32 %v3027, %v512
        %v3058 = vmul.f32 %v3028, %v512
        %v3059 = vmul.f32 %v3029, %v512
        %v3060 = vmul.f32 %v3030, %v512
        %v3061 = vadd.f32 %v501, %v3053
        %v3062 = vadd.f32 %v3046, %v3054
        %v3063 = vadd.f32 %v3047, %v3055
        %v3064 = vadd.f32 %v3048, %v3056
        %v3065 = vadd.f32 %v3049, %v3057
        %v3066 = vadd.f32 %v3050, %v3058
        %v3067 = vadd.f32 %v3051, %v3059
        %v3068 = vadd.f32 %v3052, %v3060
        %v3069 = vmul.f32 %v3024, %v532
        %v3070 = vmul.f32 %v3025, %v532
        %v3071 = vmul.f32 %v3026, %v532
        %v3072 = vmul.f32 %v3027, %v532
        %v3073 = vmul.f32 %v3028, %v532
        %v3074 = vmul.f32 %v3029, %v532
        %v3075 = vmul.f32 %v3030, %v532
        %v3076 = vadd.f32 %v3061, %v3069
        %v3077 = vadd.f32 %v3062, %v3070
        %v3078 = vadd.f32 %v3063, %v3071
        %v3079 = vadd.f32 %v3064, %v3072
        %v3080 = vadd.f32 %v3065, %v3073
        %v3081 = vadd.f32 %v3066, %v3074
        %v3082 = vadd.f32 %v3067, %v3075
        %v3083 = vadd.f32 %v3068, %v540
        %v3100 = vrot.slane %v3023, 1
        %v3101 = vrot.slane %v3031, 1
        %v3102 = vsel %vm565, %v3100, %v3101
        %v3103 = vrot.slane %v3024, 1
        %v3104 = vrot.slane %v3032, 1
        %v3105 = vsel %vm565, %v3103, %v3104
        %v3106 = vrot.slane %v3025, 1
        %v3107 = vrot.slane %v3033, 1
        %v3108 = vsel %vm565, %v3106, %v3107
        %v3109 = vrot.slane %v3026, 1
        %v3110 = vrot.slane %v3034, 1
        %v3111 = vsel %vm565, %v3109, %v3110
        %v3112 = vrot.slane %v3027, 1
        %v3113 = vrot.slane %v3035, 1
        %v3114 = vsel %vm565, %v3112, %v3113
        %v3115 = vrot.slane %v3028, 1
        %v3116 = vrot.slane %v3036, 1
        %v3117 = vsel %vm565, %v3115, %v3116
        %v3118 = vrot.slane %v3029, 1
        %v3119 = vrot.slane %v3037, 1
        %v3120 = vsel %vm565, %v3118, %v3119
        %v3121 = vrot.slane %v3030, 1
        %v3122 = vrot.slane %v3038, 1
        %v3123 = vsel %vm565, %v3121, %v3122
        %v3132 = vmul.f32 %v3102, %v601
        %v3133 = vmul.f32 %v3105, %v601
        %v3134 = vmul.f32 %v3108, %v601
        %v3135 = vmul.f32 %v3111, %v601
        %v3136 = vmul.f32 %v3114, %v601
        %v3137 = vmul.f32 %v3117, %v601
        %v3138 = vmul.f32 %v3120, %v601
        %v3139 = vadd.f32 %v3076, %v602
        %v3140 = vadd.f32 %v3077, %v3132
        %v3141 = vadd.f32 %v3078, %v3133
        %v3142 = vadd.f32 %v3079, %v3134
        %v3143 = vadd.f32 %v3080, %v3135
        %v3144 = vadd.f32 %v3081, %v3136
        %v3145 = vadd.f32 %v3082, %v3137
        %v3146 = vadd.f32 %v3083, %v3138
        %v3147 = vmul.f32 %v3102, %v621
        %v3148 = vmul.f32 %v3105, %v621
        %v3149 = vmul.f32 %v3108, %v621
        %v3150 = vmul.f32 %v3111, %v621
        %v3151 = vmul.f32 %v3114, %v621
        %v3152 = vmul.f32 %v3117, %v621
        %v3153 = vmul.f32 %v3120, %v621
        %v3154 = vmul.f32 %v3123, %v621
        %v3155 = vadd.f32 %v3139, %v3147
        %v3156 = vadd.f32 %v3140, %v3148
        %v3157 = vadd.f32 %v3141, %v3149
        %v3158 = vadd.f32 %v3142, %v3150
        %v3159 = vadd.f32 %v3143, %v3151
        %v3160 = vadd.f32 %v3144, %v3152
        %v3161 = vadd.f32 %v3145, %v3153
        %v3162 = vadd.f32 %v3146, %v3154
        %v3163 = vmul.f32 %v3105, %v641
        %v3164 = vmul.f32 %v3108, %v641
        %v3165 = vmul.f32 %v3111, %v641
        %v3166 = vmul.f32 %v3114, %v641
        %v3167 = vmul.f32 %v3117, %v641
        %v3168 = vmul.f32 %v3120, %v641
        %v3169 = vmul.f32 %v3123, %v641
        %v3170 = vadd.f32 %v3155, %v3163
        %v3171 = vadd.f32 %v3156, %v3164
        %v3172 = vadd.f32 %v3157, %v3165
        %v3173 = vadd.f32 %v3158, %v3166
        %v3174 = vadd.f32 %v3159, %v3167
        %v3175 = vadd.f32 %v3160, %v3168
        %v3176 = vadd.f32 %v3161, %v3169
        %v3177 = vadd.f32 %v3162, %v649
        %v3178 = vrot.slane %v3023, 2
        %v3179 = vrot.slane %v3031, 2
        %v3180 = vsel %vm658, %v3178, %v3179
        %v3181 = vrot.slane %v3024, 2
        %v3182 = vrot.slane %v3032, 2
        %v3183 = vsel %vm658, %v3181, %v3182
        %v3184 = vrot.slane %v3025, 2
        %v3185 = vrot.slane %v3033, 2
        %v3186 = vsel %vm658, %v3184, %v3185
        %v3187 = vrot.slane %v3026, 2
        %v3188 = vrot.slane %v3034, 2
        %v3189 = vsel %vm658, %v3187, %v3188
        %v3190 = vrot.slane %v3027, 2
        %v3191 = vrot.slane %v3035, 2
        %v3192 = vsel %vm658, %v3190, %v3191
        %v3193 = vrot.slane %v3028, 2
        %v3194 = vrot.slane %v3036, 2
        %v3195 = vsel %vm658, %v3193, %v3194
        %v3196 = vrot.slane %v3029, 2
        %v3197 = vrot.slane %v3037, 2
        %v3198 = vsel %vm658, %v3196, %v3197
        %v3199 = vrot.slane %v3030, 2
        %v3200 = vrot.slane %v3038, 2
        %v3201 = vsel %vm658, %v3199, %v3200
        %v3210 = vmul.f32 %v3180, %v694
        %v3211 = vmul.f32 %v3183, %v694
        %v3212 = vmul.f32 %v3186, %v694
        %v3213 = vmul.f32 %v3189, %v694
        %v3214 = vmul.f32 %v3192, %v694
        %v3215 = vmul.f32 %v3195, %v694
        %v3216 = vmul.f32 %v3198, %v694
        %v3217 = vadd.f32 %v3170, %v695
        %v3218 = vadd.f32 %v3171, %v3210
        %v3219 = vadd.f32 %v3172, %v3211
        %v3220 = vadd.f32 %v3173, %v3212
        %v3221 = vadd.f32 %v3174, %v3213
        %v3222 = vadd.f32 %v3175, %v3214
        %v3223 = vadd.f32 %v3176, %v3215
        %v3224 = vadd.f32 %v3177, %v3216
        %v3225 = vmul.f32 %v3180, %v714
        %v3226 = vmul.f32 %v3183, %v714
        %v3227 = vmul.f32 %v3186, %v714
        %v3228 = vmul.f32 %v3189, %v714
        %v3229 = vmul.f32 %v3192, %v714
        %v3230 = vmul.f32 %v3195, %v714
        %v3231 = vmul.f32 %v3198, %v714
        %v3232 = vmul.f32 %v3201, %v714
        %v3233 = vadd.f32 %v3217, %v3225
        %v3234 = vadd.f32 %v3218, %v3226
        %v3235 = vadd.f32 %v3219, %v3227
        %v3236 = vadd.f32 %v3220, %v3228
        %v3237 = vadd.f32 %v3221, %v3229
        %v3238 = vadd.f32 %v3222, %v3230
        %v3239 = vadd.f32 %v3223, %v3231
        %v3240 = vadd.f32 %v3224, %v3232
        %v3241 = vmul.f32 %v3183, %v734
        %v3242 = vmul.f32 %v3186, %v734
        %v3243 = vmul.f32 %v3189, %v734
        %v3244 = vmul.f32 %v3192, %v734
        %v3245 = vmul.f32 %v3195, %v734
        %v3246 = vmul.f32 %v3198, %v734
        %v3247 = vmul.f32 %v3201, %v734
        %v3248 = vadd.f32 %v3233, %v3241
        %v3249 = vadd.f32 %v3234, %v3242
        %v3250 = vadd.f32 %v3235, %v3243
        %v3251 = vadd.f32 %v3236, %v3244
        %v3252 = vadd.f32 %v3237, %v3245
        %v3253 = vadd.f32 %v3238, %v3246
        %v3254 = vadd.f32 %v3239, %v3247
        %v3255 = vadd.f32 %v3240, %v742
        %v3256 = vld [vmem:[%s2715] sm:$0xff]
        %v3257 = vld [vmem:[%s2715 + $0x8] sm:$0xff]
        %v3258 = vld [vmem:[%s2715 + $0x10] sm:$0xff]
        %v3259 = vld [vmem:[%s2715 + $0x18] sm:$0xff]
        %v3260 = vld [vmem:[%s2715 + $0x20] sm:$0xff]
        %v3261 = vld [vmem:[%s2715 + $0x28] sm:$0xff]
        %v3262 = vld [vmem:[%s2715 + $0x30] sm:$0xff]
        %v3263 = vld [vmem:[%s2715 + $0x38] sm:$0xff]
        %v3272 = vrot.slane %v3256, 7
        %v3273 = vrot.slane %v3257, 7
        %v3274 = vrot.slane %v3258, 7
        %v3275 = vrot.slane %v3259, 7
        %v3276 = vrot.slane %v3260, 7
        %v3277 = vrot.slane %v3261, 7
        %v3278 = vrot.slane %v3262, 7
        %v3279 = vrot.slane %v3263, 7
        %v3288 = vsel %vm472, 0.0, %v3272
        %v3289 = vsel %vm472, 0.0, %v3273
        %v3290 = vsel %vm472, 0.0, %v3274
        %v3291 = vsel %vm472, 0.0, %v3275
        %v3292 = vsel %vm472, 0.0, %v3276
        %v3293 = vsel %vm472, 0.0, %v3277
        %v3294 = vsel %vm472, 0.0, %v3278
        %v3295 = vsel %vm472, 0.0, %v3279
        %v3296 = vsel %vm472, %v3272, 0.0
        %v3297 = vsel %vm472, %v3273, 0.0
        %v3298 = vsel %vm472, %v3274, 0.0
        %v3299 = vsel %vm472, %v3275, 0.0
        %v3300 = vsel %vm472, %v3276, 0.0
        %v3301 = vsel %vm472, %v3277, 0.0
        %v3302 = vsel %vm472, %v3278, 0.0
        %v3303 = vsel %vm472, %v3279, 0.0
        %v3304 = vmul.f32 %v3288, %v802
        %v3305 = vmul.f32 %v3289, %v802
        %v3306 = vmul.f32 %v3290, %v802
        %v3307 = vmul.f32 %v3291, %v802
        %v3308 = vmul.f32 %v3292, %v802
        %v3309 = vmul.f32 %v3293, %v802
        %v3310 = vmul.f32 %v3294, %v802
        %v3311 = vadd.f32 %v3248, %v803
        %v3312 = vadd.f32 %v3249, %v3304
        %v3313 = vadd.f32 %v3250, %v3305
        %v3314 = vadd.f32 %v3251, %v3306
        %v3315 = vadd.f32 %v3252, %v3307
        %v3316 = vadd.f32 %v3253, %v3308
        %v3317 = vadd.f32 %v3254, %v3309
        %v3318 = vadd.f32 %v3255, %v3310
        %v3319 = vmul.f32 %v3288, %v822
        %v3320 = vmul.f32 %v3289, %v822
        %v3321 = vmul.f32 %v3290, %v822
        %v3322 = vmul.f32 %v3291, %v822
        %v3323 = vmul.f32 %v3292, %v822
        %v3324 = vmul.f32 %v3293, %v822
        %v3325 = vmul.f32 %v3294, %v822
        %v3326 = vmul.f32 %v3295, %v822
        %v3327 = vadd.f32 %v3311, %v3319
        %v3328 = vadd.f32 %v3312, %v3320
        %v3329 = vadd.f32 %v3313, %v3321
        %v3330 = vadd.f32 %v3314, %v3322
        %v3331 = vadd.f32 %v3315, %v3323
        %v3332 = vadd.f32 %v3316, %v3324
        %v3333 = vadd.f32 %v3317, %v3325
        %v3334 = vadd.f32 %v3318, %v3326
        %v3335 = vmul.f32 %v3289, %v842
        %v3336 = vmul.f32 %v3290, %v842
        %v3337 = vmul.f32 %v3291, %v842
        %v3338 = vmul.f32 %v3292, %v842
        %v3339 = vmul.f32 %v3293, %v842
        %v3340 = vmul.f32 %v3294, %v842
        %v3341 = vmul.f32 %v3295, %v842
        %v3342 = vadd.f32 %v3327, %v3335
        %v3343 = vadd.f32 %v3328, %v3336
        %v3344 = vadd.f32 %v3329, %v3337
        %v3345 = vadd.f32 %v3330, %v3338
        %v3346 = vadd.f32 %v3331, %v3339
        %v3347 = vadd.f32 %v3332, %v3340
        %v3348 = vadd.f32 %v3333, %v3341
        %v3349 = vadd.f32 %v3334, %v850
        %v3366 = vrot.slane %v3288, 1
        %v3367 = vrot.slane %v3296, 1
        %v3368 = vsel %vm565, %v3366, %v3367
        %v3369 = vrot.slane %v3289, 1
        %v3370 = vrot.slane %v3297, 1
        %v3371 = vsel %vm565, %v3369, %v3370
        %v3372 = vrot.slane %v3290, 1
        %v3373 = vrot.slane %v3298, 1
        %v3374 = vsel %vm565, %v3372, %v3373
        %v3375 = vrot.slane %v3291, 1
        %v3376 = vrot.slane %v3299, 1
        %v3377 = vsel %vm565, %v3375, %v3376
        %v3378 = vrot.slane %v3292, 1
        %v3379 = vrot.slane %v3300, 1
        %v3380 = vsel %vm565, %v3378, %v3379
        %v3381 = vrot.slane %v3293, 1
        %v3382 = vrot.slane %v3301, 1
        %v3383 = vsel %vm565, %v3381, %v3382
        %v3384 = vrot.slane %v3294, 1
        %v3385 = vrot.slane %v3302, 1
        %v3386 = vsel %vm565, %v3384, %v3385
        %v3387 = vrot.slane %v3295, 1
        %v3388 = vrot.slane %v3303, 1
        %v3389 = vsel %vm565, %v3387, %v3388
        %v3398 = vmul.f32 %v3368, %v910
        %v3399 = vmul.f32 %v3371, %v910
        %v3400 = vmul.f32 %v3374, %v910
        %v3401 = vmul.f32 %v3377, %v910
        %v3402 = vmul.f32 %v3380, %v910
        %v3403 = vmul.f32 %v3383, %v910
        %v3404 = vmul.f32 %v3386, %v910
        %v3405 = vadd.f32 %v3342, %v911
        %v3406 = vadd.f32 %v3343, %v3398
        %v3407 = vadd.f32 %v3344, %v3399
        %v3408 = vadd.f32 %v3345, %v3400
        %v3409 = vadd.f32 %v3346, %v3401
        %v3410 = vadd.f32 %v3347, %v3402
        %v3411 = vadd.f32 %v3348, %v3403
        %v3412 = vadd.f32 %v3349, %v3404
        %v3413 = vmul.f32 %v3368, %v930
        %v3414 = vmul.f32 %v3371, %v930
        %v3415 = vmul.f32 %v3374, %v930
        %v3416 = vmul.f32 %v3377, %v930
        %v3417 = vmul.f32 %v3380, %v930
        %v3418 = vmul.f32 %v3383, %v930
        %v3419 = vmul.f32 %v3386, %v930
        %v3420 = vmul.f32 %v3389, %v930
        %v3421 = vadd.f32 %v3405, %v3413
        %v3422 = vadd.f32 %v3406, %v3414
        %v3423 = vadd.f32 %v3407, %v3415
        %v3424 = vadd.f32 %v3408, %v3416
        %v3425 = vadd.f32 %v3409, %v3417
        %v3426 = vadd.f32 %v3410, %v3418
        %v3427 = vadd.f32 %v3411, %v3419
        %v3428 = vadd.f32 %v3412, %v3420
        %v3429 = vmul.f32 %v3371, %v950
        %v3430 = vmul.f32 %v3374, %v950
        %v3431 = vmul.f32 %v3377, %v950
        %v3432 = vmul.f32 %v3380, %v950
        %v3433 = vmul.f32 %v3383, %v950
        %v3434 = vmul.f32 %v3386, %v950
        %v3435 = vmul.f32 %v3389, %v950
        %v3436 = vadd.f32 %v3421, %v3429
        %v3437 = vadd.f32 %v3422, %v3430
        %v3438 = vadd.f32 %v3423, %v3431
        %v3439 = vadd.f32 %v3424, %v3432
        %v3440 = vadd.f32 %v3425, %v3433
        %v3441 = vadd.f32 %v3426, %v3434
        %v3442 = vadd.f32 %v3427, %v3435
        %v3443 = vadd.f32 %v3428, %v958
        %v3444 = vrot.slane %v3288, 2
        %v3445 = vrot.slane %v3296, 2
        %v3446 = vsel %vm658, %v3444, %v3445
        %v3447 = vrot.slane %v3289, 2
        %v3448 = vrot.slane %v3297, 2
        %v3449 = vsel %vm658, %v3447, %v3448
        %v3450 = vrot.slane %v3290, 2
        %v3451 = vrot.slane %v3298, 2
        %v3452 = vsel %vm658, %v3450, %v3451
        %v3453 = vrot.slane %v3291, 2
        %v3454 = vrot.slane %v3299, 2
        %v3455 = vsel %vm658, %v3453, %v3454
        %v3456 = vrot.slane %v3292, 2
        %v3457 = vrot.slane %v3300, 2
        %v3458 = vsel %vm658, %v3456, %v3457
        %v3459 = vrot.slane %v3293, 2
        %v3460 = vrot.slane %v3301, 2
        %v3461 = vsel %vm658, %v3459, %v3460
        %v3462 = vrot.slane %v3294, 2
        %v3463 = vrot.slane %v3302, 2
        %v3464 = vsel %vm658, %v3462, %v3463
        %v3465 = vrot.slane %v3295, 2
        %v3466 = vrot.slane %v3303, 2
        %v3467 = vsel %vm658, %v3465, %v3466
        %v3476 = vmul.f32 %v3446, %v1002
        %v3477 = vmul.f32 %v3449, %v1002
        %v3478 = vmul.f32 %v3452, %v1002
        %v3479 = vmul.f32 %v3455, %v1002
        %v3480 = vmul.f32 %v3458, %v1002
        %v3481 = vmul.f32 %v3461, %v1002
        %v3482 = vmul.f32 %v3464, %v1002
        %v3483 = vadd.f32 %v3436, %v1003
        %v3484 = vadd.f32 %v3437, %v3476
        %v3485 = vadd.f32 %v3438, %v3477
        %v3486 = vadd.f32 %v3439, %v3478
        %v3487 = vadd.f32 %v3440, %v3479
        %v3488 = vadd.f32 %v3441, %v3480
        %v3489 = vadd.f32 %v3442, %v3481
        %v3490 = vadd.f32 %v3443, %v3482
        %v3491 = vmul.f32 %v3446, %v1022
        %v3492 = vmul.f32 %v3449, %v1022
        %v3493 = vmul.f32 %v3452, %v1022
        %v3494 = vmul.f32 %v3455, %v1022
        %v3495 = vmul.f32 %v3458, %v1022
        %v3496 = vmul.f32 %v3461, %v1022
        %v3497 = vmul.f32 %v3464, %v1022
        %v3498 = vmul.f32 %v3467, %v1022
        %v3499 = vadd.f32 %v3483, %v3491
        %v3500 = vadd.f32 %v3484, %v3492
        %v3501 = vadd.f32 %v3485, %v3493
        %v3502 = vadd.f32 %v3486, %v3494
        %v3503 = vadd.f32 %v3487, %v3495
        %v3504 = vadd.f32 %v3488, %v3496
        %v3505 = vadd.f32 %v3489, %v3497
        %v3506 = vadd.f32 %v3490, %v3498
        %v3507 = vmul.f32 %v3449, %v1042
        %v3508 = vmul.f32 %v3452, %v1042
        %v3509 = vmul.f32 %v3455, %v1042
        %v3510 = vmul.f32 %v3458, %v1042
        %v3511 = vmul.f32 %v3461, %v1042
        %v3512 = vmul.f32 %v3464, %v1042
        %v3513 = vmul.f32 %v3467, %v1042
        %v3514 = vadd.f32 %v3499, %v3507
        %v3515 = vadd.f32 %v3500, %v3508
        %v3516 = vadd.f32 %v3501, %v3509
        %v3517 = vadd.f32 %v3502, %v3510
        %v3518 = vadd.f32 %v3503, %v3511
        %v3519 = vadd.f32 %v3504, %v3512
        %v3520 = vadd.f32 %v3505, %v3513
        %v3521 = vadd.f32 %v3506, %v1050
        %v3530 = vrot.slane %v440, 7
        %v3531 = vrot.slane %v441, 7
        %v3532 = vrot.slane %v442, 7
        %v3533 = vrot.slane %v443, 7
        %v3534 = vrot.slane %v444, 7
        %v3535 = vrot.slane %v445, 7
        %v3536 = vrot.slane %v446, 7
        %v3537 = vrot.slane %v447, 7
        %v3546 = vsel %vm472, 0.0, %v3530
        %v3547 = vsel %vm472, 0.0, %v3531
        %v3548 = vsel %vm472, 0.0, %v3532
        %v3549 = vsel %vm472, 0.0, %v3533
        %v3550 = vsel %vm472, 0.0, %v3534
        %v3551 = vsel %vm472, 0.0, %v3535
        %v3552 = vsel %vm472, 0.0, %v3536
        %v3553 = vsel %vm472, 0.0, %v3537
        %v3554 = vsel %vm472, %v3530, 0.0
        %v3555 = vsel %vm472, %v3531, 0.0
        %v3556 = vsel %vm472, %v3532, 0.0
        %v3557 = vsel %vm472, %v3533, 0.0
        %v3558 = vsel %vm472, %v3534, 0.0
        %v3559 = vsel %vm472, %v3535, 0.0
        %v3560 = vsel %vm472, %v3536, 0.0
        %v3561 = vsel %vm472, %v3537, 0.0
        %v3562 = vmul.f32 %v3546, %v1111
        %v3563 = vmul.f32 %v3547, %v1111
        %v3564 = vmul.f32 %v3548, %v1111
        %v3565 = vmul.f32 %v3549, %v1111
        %v3566 = vmul.f32 %v3550, %v1111
        %v3567 = vmul.f32 %v3551, %v1111
        %v3568 = vmul.f32 %v3552, %v1111
        %v3569 = vadd.f32 %v3514, %v1112
        %v3570 = vadd.f32 %v3515, %v3562
        %v3571 = vadd.f32 %v3516, %v3563
        %v3572 = vadd.f32 %v3517, %v3564
        %v3573 = vadd.f32 %v3518, %v3565
        %v3574 = vadd.f32 %v3519, %v3566
        %v3575 = vadd.f32 %v3520, %v3567
        %v3576 = vadd.f32 %v3521, %v3568
        %v3577 = vmul.f32 %v3546, %v1131
        %v3578 = vmul.f32 %v3547, %v1131
        %v3579 = vmul.f32 %v3548, %v1131
        %v3580 = vmul.f32 %v3549, %v1131
        %v3581 = vmul.f32 %v3550, %v1131
        %v3582 = vmul.f32 %v3551, %v1131
        %v3583 = vmul.f32 %v3552, %v1131
        %v3584 = vmul.f32 %v3553, %v1131
        %v3585 = vadd.f32 %v3569, %v3577
        %v3586 = vadd.f32 %v3570, %v3578
        %v3587 = vadd.f32 %v3571, %v3579
        %v3588 = vadd.f32 %v3572, %v3580
        %v3589 = vadd.f32 %v3573, %v3581
        %v3590 = vadd.f32 %v3574, %v3582
        %v3591 = vadd.f32 %v3575, %v3583
        %v3592 = vadd.f32 %v3576, %v3584
        %v3593 = vmul.f32 %v3547, %v1151
        %v3594 = vmul.f32 %v3548, %v1151
        %v3595 = vmul.f32 %v3549, %v1151
        %v3596 = vmul.f32 %v3550, %v1151
        %v3597 = vmul.f32 %v3551, %v1151
        %v3598 = vmul.f32 %v3552, %v1151
        %v3599 = vmul.f32 %v3553, %v1151
        %v3600 = vadd.f32 %v3585, %v3593
        %v3601 = vadd.f32 %v3586, %v3594
        %v3602 = vadd.f32 %v3587, %v3595
        %v3603 = vadd.f32 %v3588, %v3596
        %v3604 = vadd.f32 %v3589, %v3597
        %v3605 = vadd.f32 %v3590, %v3598
        %v3606 = vadd.f32 %v3591, %v3599
        %v3607 = vadd.f32 %v3592, %v1159
        %v3624 = vrot.slane %v3546, 1
        %v3625 = vrot.slane %v3554, 1
        %v3626 = vsel %vm565, %v3624, %v3625
        %v3627 = vrot.slane %v3547, 1
        %v3628 = vrot.slane %v3555, 1
        %v3629 = vsel %vm565, %v3627, %v3628
        %v3630 = vrot.slane %v3548, 1
        %v3631 = vrot.slane %v3556, 1
        %v3632 = vsel %vm565, %v3630, %v3631
        %v3633 = vrot.slane %v3549, 1
        %v3634 = vrot.slane %v3557, 1
        %v3635 = vsel %vm565, %v3633, %v3634
        %v3636 = vrot.slane %v3550, 1
        %v3637 = vrot.slane %v3558, 1
        %v3638 = vsel %vm565, %v3636, %v3637
        %v3639 = vrot.slane %v3551, 1
        %v3640 = vrot.slane %v3559, 1
        %v3641 = vsel %vm565, %v3639, %v3640
        %v3642 = vrot.slane %v3552, 1
        %v3643 = vrot.slane %v3560, 1
        %v3644 = vsel %vm565, %v3642, %v3643
        %v3645 = vrot.slane %v3553, 1
        %v3646 = vrot.slane %v3561, 1
        %v3647 = vsel %vm565, %v3645, %v3646
        %v3656 = vmul.f32 %v3626, %v1219
        %v3657 = vmul.f32 %v3629, %v1219
        %v3658 = vmul.f32 %v3632, %v1219
        %v3659 = vmul.f32 %v3635, %v1219
        %v3660 = vmul.f32 %v3638, %v1219
        %v3661 = vmul.f32 %v3641, %v1219
        %v3662 = vmul.f32 %v3644, %v1219
        %v3663 = vadd.f32 %v3600, %v1220
        %v3664 = vadd.f32 %v3601, %v3656
        %v3665 = vadd.f32 %v3602, %v3657
        %v3666 = vadd.f32 %v3603, %v3658
        %v3667 = vadd.f32 %v3604, %v3659
        %v3668 = vadd.f32 %v3605, %v3660
        %v3669 = vadd.f32 %v3606, %v3661
        %v3670 = vadd.f32 %v3607, %v3662
        %v3671 = vmul.f32 %v3626, %v1239
        %v3672 = vmul.f32 %v3629, %v1239
        %v3673 = vmul.f32 %v3632, %v1239
        %v3674 = vmul.f32 %v3635, %v1239
        %v3675 = vmul.f32 %v3638, %v1239
        %v3676 = vmul.f32 %v3641, %v1239
        %v3677 = vmul.f32 %v3644, %v1239
        %v3678 = vmul.f32 %v3647, %v1239
        %v3679 = vadd.f32 %v3663, %v3671
        %v3680 = vadd.f32 %v3664, %v3672
        %v3681 = vadd.f32 %v3665, %v3673
        %v3682 = vadd.f32 %v3666, %v3674
        %v3683 = vadd.f32 %v3667, %v3675
        %v3684 = vadd.f32 %v3668, %v3676
        %v3685 = vadd.f32 %v3669, %v3677
        %v3686 = vadd.f32 %v3670, %v3678
        %v3687 = vmul.f32 %v3629, %v1259
        %v3688 = vmul.f32 %v3632, %v1259
        %v3689 = vmul.f32 %v3635, %v1259
        %v3690 = vmul.f32 %v3638, %v1259
        %v3691 = vmul.f32 %v3641, %v1259
        %v3692 = vmul.f32 %v3644, %v1259
        %v3693 = vmul.f32 %v3647, %v1259
        %v3694 = vadd.f32 %v3679, %v3687
        %v3695 = vadd.f32 %v3680, %v3688
        %v3696 = vadd.f32 %v3681, %v3689
        %v3697 = vadd.f32 %v3682, %v3690
        %v3698 = vadd.f32 %v3683, %v3691
        %v3699 = vadd.f32 %v3684, %v3692
        %v3700 = vadd.f32 %v3685, %v3693
        %v3701 = vadd.f32 %v3686, %v1267
        %v3702 = vrot.slane %v3546, 2
        %v3703 = vrot.slane %v3554, 2
        %v3704 = vsel %vm658, %v3702, %v3703
        %v3705 = vrot.slane %v3547, 2
        %v3706 = vrot.slane %v3555, 2
        %v3707 = vsel %vm658, %v3705, %v3706
        %v3708 = vrot.slane %v3548, 2
        %v3709 = vrot.slane %v3556, 2
        %v3710 = vsel %vm658, %v3708, %v3709
        %v3711 = vrot.slane %v3549, 2
        %v3712 = vrot.slane %v3557, 2
        %v3713 = vsel %vm658, %v3711, %v3712
        %v3714 = vrot.slane %v3550, 2
        %v3715 = vrot.slane %v3558, 2
        %v3716 = vsel %vm658, %v3714, %v3715
        %v3717 = vrot.slane %v3551, 2
        %v3718 = vrot.slane %v3559, 2
        %v3719 = vsel %vm658, %v3717, %v3718
        %v3720 = vrot.slane %v3552, 2
        %v3721 = vrot.slane %v3560, 2
        %v3722 = vsel %vm658, %v3720, %v3721
        %v3723 = vrot.slane %v3553, 2
        %v3724 = vrot.slane %v3561, 2
        %v3725 = vsel %vm658, %v3723, %v3724
        %v3734 = vmul.f32 %v3704, %v1311
        %v3735 = vmul.f32 %v3707, %v1311
        %v3736 = vmul.f32 %v3710, %v1311
        %v3737 = vmul.f32 %v3713, %v1311
        %v3738 = vmul.f32 %v3716, %v1311
        %v3739 = vmul.f32 %v3719, %v1311
        %v3740 = vmul.f32 %v3722, %v1311
        %v3741 = vadd.f32 %v3694, %v1312
        %v3742 = vadd.f32 %v3695, %v3734
        %v3743 = vadd.f32 %v3696, %v3735
        %v3744 = vadd.f32 %v3697, %v3736
        %v3745 = vadd.f32 %v3698, %v3737
        %v3746 = vadd.f32 %v3699, %v3738
        %v3747 = vadd.f32 %v3700, %v3739
        %v3748 = vadd.f32 %v3701, %v3740
        %v3749 = vmul.f32 %v3704, %v1331
        %v3750 = vmul.f32 %v3707, %v1331
        %v3751 = vmul.f32 %v3710, %v1331
        %v3752 = vmul.f32 %v3713, %v1331
        %v3753 = vmul.f32 %v3716, %v1331
        %v3754 = vmul.f32 %v3719, %v1331
        %v3755 = vmul.f32 %v3722, %v1331
        %v3756 = vmul.f32 %v3725, %v1331
        %v3757 = vadd.f32 %v3741, %v3749
        %v3758 = vadd.f32 %v3742, %v3750
        %v3759 = vadd.f32 %v3743, %v3751
        %v3760 = vadd.f32 %v3744, %v3752
        %v3761 = vadd.f32 %v3745, %v3753
        %v3762 = vadd.f32 %v3746, %v3754
        %v3763 = vadd.f32 %v3747, %v3755
        %v3764 = vadd.f32 %v3748, %v3756
        %v3765 = vmul.f32 %v3707, %v1351
        %v3766 = vmul.f32 %v3710, %v1351
        %v3767 = vmul.f32 %v3713, %v1351
        %v3768 = vmul.f32 %v3716, %v1351
        %v3769 = vmul.f32 %v3719, %v1351
        %v3770 = vmul.f32 %v3722, %v1351
        %v3771 = vmul.f32 %v3725, %v1351
        %v3772 = vadd.f32 %v3757, %v3765
        %v3773 = vadd.f32 %v3758, %v3766
        %v3774 = vadd.f32 %v3759, %v3767
        %v3775 = vadd.f32 %v3760, %v3768
        %v3776 = vadd.f32 %v3761, %v3769
        %v3777 = vadd.f32 %v3762, %v3770
        %v3778 = vadd.f32 %v3763, %v3771
        %v3779 = vadd.f32 %v3764, %v1359
        %s3780 = scalar_lea.vmem %s385, 192 [#allocation10]
        %3781 = vst.msk [vmem:[%s3780] sm:$0xff] %vm1368, %v3772
        %3782 = vst.msk [vmem:[%s3780 + $0x8] sm:$0xff] %vm1368, %v3773
        %3783 = vst.msk [vmem:[%s3780 + $0x10] sm:$0xff] %vm1368, %v3774
        %3784 = vst.msk [vmem:[%s3780 + $0x18] sm:$0xff] %vm1368, %v3775
        %3785 = vst.msk [vmem:[%s3780 + $0x20] sm:$0xff] %vm1368, %v3776
        %3786 = vst.msk [vmem:[%s3780 + $0x28] sm:$0xff] %vm1368, %v3777
        %3787 = vst.msk [vmem:[%s3780 + $0x30] sm:$0xff] %vm1368, %v3778
        %3788 = vst.msk [vmem:[%s3780 + $0x38] sm:$0xff] %vm1368, %v3779
        %s3789 = sand.u32 %s190, 1
        %s3790 = scalar_lea.sflag [#allocation4], %s3789
        %s3791 = sand.u32 %s190, 1
        %s3792 = smul.addr %s3791, 256
        %s3793 = scalar_lea.vmem [#allocation10], %s3792
        // Predicated region
        $region57: #{tpu_custom_call.1} parent=39 // pred_check
          %p3794 = pneg %p200
        $region58: #{tpu_custom_call.1} parent=39 // pred_check_branch
          %3796 = sbr.rel (%p3794) target = $region60
        $region59: #{tpu_custom_call.1} parent=39 // pred_region
          %s3797 = smul.u32 4, %s31
          %s3799 = ssub.s32 4096, 4096
          %3800 = vsyncadd %s3790, %s3799
          %s3801 = smul.addr %s3797, 8
          %s3802 = smul.addr %s30, 32
          %s3803 = sadd.s32 %s3801, %s3802
          %s3804 = smul.addr %s3803, 128
          %s3805 = scalar_lea.hbm %s5, %s3804
          %s3806 = sshll.u32 %s3793, 4
          %s3807 = int_to_ptr.vmem [resolvable:$true] %s3806
          %3812 = dma.vmem_to_hbm [thread:$0]  %s3807, 4096, %s3805, %s3790, 128, 128, 8
        $region60: #{tpu_custom_call.1} parent=39 // pred_fallthru
          _
      $region40: #{tpu_custom_call.1} parent=5 // pred_fallthru
        _
      %p3813 = scmp.le.s32.totalorder 2, %s21
      // Predicated region
      $region61: #{tpu_custom_call.1} parent=5 // pred_check
        %p3814 = pneg %p3813
      $region62: #{tpu_custom_call.1} parent=5 // pred_check_branch
        %3816 = sbr.rel (%p3814) target = $region64
      $region63: #{tpu_custom_call.1} parent=5 // pred_region
        %s3817 = ssub.s32 %s21, 2
        // Predicated region
        $region65: #{tpu_custom_call.1} parent=63 // pred_check
          %p3818 = pneg %p206
        $region66: #{tpu_custom_call.1} parent=63 // pred_check_branch
          %3820 = sbr.rel (%p3818) target = $region68
        $region67: #{tpu_custom_call.1} parent=63 // pred_region
          %s3821 = sand.u32 %s191, 1
          %s3822 = scalar_lea.sflag [#allocation4], %s3821
          %s3823 = sand.u32 %s191, 1
          %s3824 = smul.addr %s3823, 256
          %s3825 = scalar_lea.vmem [#allocation10], %s3824
          %3826 = dma.done %s3822, 4096
        $region68: #{tpu_custom_call.1} parent=63 // pred_fallthru
          _
      $region64: #{tpu_custom_call.1} parent=5 // pred_fallthru
        _
    $region6: #{tpu_custom_call.1} parent=1 // loop_footer
      %s25 = sadd.s32 1, %s21
    $region7: #{tpu_custom_call.1} parent=1 // loop_footer_branch
      %20 = sbr.rel target = $region3
    $region8: #{tpu_custom_call.1} parent=1 // loop_exit
      _
    %3827 = vsyncpa [#allocation3], 1
    %s3828 = scalar_lea.sflag [#allocation3], 1
    %3829 = vsyncpa %s3828, 1
    %3830 = vsyncpa [#allocation6], 1
    %s3831 = scalar_lea.sflag [#allocation6], 1
    %3832 = vsyncpa %s3831, 1
    %3833 = vsyncpa [#allocation9], 1
    %3834 = vsyncpa [#allocation4], 1
    %s3835 = scalar_lea.sflag [#allocation4], 1
    %3836 = vsyncpa %s3835, 1

</llo_original>
